<compile_context>
chip_gen: v7x
topology: tpu7x:2x2x1
jax: 0.10.0
libtpu: 0.0.40
codegen_flags: <defaults>
</compile_context>

<pallas_src>
import functools

import jax
import jax.numpy as jnp
from jax import lax
from jax.experimental import pallas as pl
from jax.experimental.pallas import tpu as pltpu


def _resblock_kernel(x_ref, w1_ref, b1_ref, a1_ref, w2_ref, b2_ref, a2_ref,
                     o_ref, xp_ref, p1_ref, h_ref, *, H, W, C, F, FP):
    """One image per grid step.

    x_ref : (1, H, W, C)        unpadded input image
    w1_ref: (9*C, FP)           conv1 im2col weights (out channels padded to FP)
    b1_ref, a1_ref: (1, FP)     conv1 bias / PReLU1 slope (zero-padded)
    w2_ref: (9*FP, FP)          conv2 im2col weights + residual identity rows
    b2_ref, a2_ref: (1, FP)     conv2 bias / PReLU2 slope (zero-padded)
    o_ref : (1, H*W, FP)        lane-dense output slab
    xp_ref: (H+2, W+2, C)       scratch: spatially padded input
    p1_ref: (H*W, 9*C)          scratch: conv1 im2col patch
    h_ref : (H+2, W+2, FP)      scratch: padded intermediate activation
    """
    f32 = jnp.float32

    # ---- stage input into padded scratch; zero only the 1-px border.
    xp_ref[0:1, :, :] = jnp.zeros((1, W + 2, C), f32)
    xp_ref[H + 1:H + 2, :, :] = jnp.zeros((1, W + 2, C), f32)
    xp_ref[:, 0:1, :] = jnp.zeros((H + 2, 1, C), f32)
    xp_ref[:, W + 1:W + 2, :] = jnp.zeros((H + 2, 1, C), f32)
    orig = x_ref[0].astype(f32)                      # (H, W, C)
    xp_ref[1:H + 1, 1:W + 1, :] = orig

    # ---- conv1: build (H*W, 9*C) patch, single MXU matmul, bias + PReLU.
    for kh in range(3):
        for kw in range(3):
            t = kh * 3 + kw
            p1_ref[:, t * C:(t + 1) * C] = (
                xp_ref[kh:kh + H, kw:kw + W, :].reshape(H * W, C))
    hact = jnp.dot(p1_ref[...], w1_ref[...], preferred_element_type=f32)
    hact = hact + b1_ref[...]
    hact = jnp.where(hact > 0, hact, a1_ref[...] * hact)     # PReLU1; padded ch = 0

    # ---- stage intermediate (lane-dense, FP channels) into padded scratch.
    h_ref[0:1, :, :] = jnp.zeros((1, W + 2, FP), f32)
    h_ref[H + 1:H + 2, :, :] = jnp.zeros((1, W + 2, FP), f32)
    h_ref[:, 0:1, :] = jnp.zeros((H + 2, 1, FP), f32)
    h_ref[:, W + 1:W + 2, :] = jnp.zeros((H + 2, 1, FP), f32)
    h_ref[1:H + 1, 1:W + 1, :] = hact.reshape(H, W, FP)
    # stash original input in channel slots [F:F+C) -> residual is folded into
    # conv2's matmul via identity rows on the centre tap of w2_ref.
    h_ref[1:H + 1, 1:W + 1, F:F + C] = orig

    # ---- conv2 (+ folded residual): lane-aligned im2col concat, single matmul.
    taps = []
    for kh in range(3):
        for kw in range(3):
            taps.append(h_ref[kh:kh + H, kw:kw + W, :].reshape(H * W, FP))
    patch2 = jnp.concatenate(taps, axis=-1)                  # (H*W, 9*FP)
    r = jnp.dot(patch2, w2_ref[...], preferred_element_type=f32)
    r = r + b2_ref[...]
    r = jnp.where(r > 0, r, a2_ref[...] * r)                 # PReLU2

    # lane-dense, unmasked store; wrapper slices the valid F channels.
    o_ref[...] = r.reshape(1, H * W, FP).astype(o_ref.dtype)


def resblock_a(x, w1, b1, a1, w2, b2, a2):
    """x: (N, H, W, C) NHWC.  w1: (3,3,C,F) HWIO, w2: (3,3,F,F) HWIO."""
    N, H, W, C = x.shape
    F = w1.shape[-1]
    assert C == F, "ResBlockA residual requires in_channels == nr_filters"
    FP = 128                      # lane-dense padded channel width
    assert 2 * F <= FP
    f32 = jnp.float32

    # conv1 im2col weights, output channels zero-padded to FP.
    w1_p = jnp.zeros((9 * C, FP), f32).at[:, :F].set(
        w1.reshape(9 * C, F).astype(f32))
    # conv2 im2col weights over FP-wide channel blocks; identity rows on the
    # centre tap's channel slots [F:2F) implement the residual add.
    w2_p = jnp.zeros((9, FP, FP), f32)
    w2_p = w2_p.at[:, :F, :F].set(w2.reshape(9, F, F).astype(f32))
    w2_p = w2_p.at[4, F:F + C, :F].set(jnp.eye(F, dtype=f32))
    w2_p = w2_p.reshape(9 * FP, FP)

    def pad_vec(v):
        return jnp.zeros((1, FP), f32).at[0, :F].set(v.astype(f32))

    b1_p, a1_p, b2_p, a2_p = pad_vec(b1), pad_vec(a1), pad_vec(b2), pad_vec(a2)

    kernel = functools.partial(_resblock_kernel, H=H, W=W, C=C, F=F, FP=FP)

    out = pl.pallas_call(
        kernel,
        out_shape=jax.ShapeDtypeStruct((N, H * W, FP), x.dtype),
        grid_spec=pltpu.PrefetchScalarGridSpec(
            num_scalar_prefetch=0,
            grid=(N,),
            in_specs=[
                pl.BlockSpec((1, H, W, C), lambda n: (n, 0, 0, 0)),   # x
                pl.BlockSpec((9 * C, FP), lambda n: (0, 0)),          # w1
                pl.BlockSpec((1, FP), lambda n: (0, 0)),              # b1
                pl.BlockSpec((1, FP), lambda n: (0, 0)),              # a1
                pl.BlockSpec((9 * FP, FP), lambda n: (0, 0)),         # w2 (+res)
                pl.BlockSpec((1, FP), lambda n: (0, 0)),              # b2
                pl.BlockSpec((1, FP), lambda n: (0, 0)),              # a2
            ],
            out_specs=pl.BlockSpec((1, H * W, FP), lambda n: (n, 0, 0)),
            scratch_shapes=[
                pltpu.VMEM((H + 2, W + 2, C), f32),    # padded input
                pltpu.VMEM((H * W, 9 * C), f32),       # conv1 im2col patch
                pltpu.VMEM((H + 2, W + 2, FP), f32),   # padded intermediate
            ],
        ),
        compiler_params=pltpu.CompilerParams(
            dimension_semantics=("parallel",),
            vmem_limit_bytes=32 * 1024 * 1024,
        ),
    )(x, w1_p, b1_p, a1_p, w2_p, b2_p, a2_p)

    return out.reshape(N, H, W, FP)[..., :F]


def _reference(x, w1, b1, a1, w2, b2, a2):
    """Pure-JAX reference (NHWC), mirrors the PyTorch forward semantics."""
    dn = ("NHWC", "HWIO", "NHWC")
    def prelu(v, alpha):
        return jnp.where(v > 0, v, alpha * v)
    h = lax.conv_general_dilated(x, w1, (1, 1), "SAME", dimension_numbers=dn) + b1
    h = prelu(h, a1)
    h = lax.conv_general_dilated(h, w2, (1, 1), "SAME", dimension_numbers=dn) + b2
    h = prelu(h + x, a2)
    return h


if __name__ == "__main__":
    # Small shapes: batch=2, in_channels = nr_filters = 4, spatial = 16x16.
    N, C, H, W = 2, 4, 16, 16
    F = C  # nr_filters (must equal in_channels for the residual add)

    key = jax.random.PRNGKey(0)
    kx, kw1, kb1, ka1, kw2, kb2, ka2 = jax.random.split(key, 7)

    # PyTorch input is NCHW; generate NCHW then move to NHWC for the kernel.
    x_nchw = jax.random.normal(kx, (N, C, H, W), jnp.float32)
    x = jnp.transpose(x_nchw, (0, 2, 3, 1))  # NHWC

    # Conv weights generated in PyTorch OIHW layout, converted to HWIO.
    w1_oihw = 0.1 * jax.random.normal(kw1, (F, C, 3, 3), jnp.float32)
    w2_oihw = 0.1 * jax.random.normal(kw2, (F, F, 3, 3), jnp.float32)
    w1 = jnp.transpose(w1_oihw, (2, 3, 1, 0))  # HWIO
    w2 = jnp.transpose(w2_oihw, (2, 3, 1, 0))
    b1 = 0.05 * jax.random.normal(kb1, (F,), jnp.float32)
    b2 = 0.05 * jax.random.normal(kb2, (F,), jnp.float32)
    # nn.PReLU default init is 0.25 per channel; add a small perturbation.
    a1 = 0.25 + 0.05 * jax.random.uniform(ka1, (F,), jnp.float32)
    a2 = 0.25 + 0.05 * jax.random.uniform(ka2, (F,), jnp.float32)

    out = resblock_a(x, w1, b1, a1, w2, b2, a2)
    out = jax.block_until_ready(out)

    ref = _reference(x, w1, b1, a1, w2, b2, a2)
    assert out.shape == (N, H, W, F)
    assert jnp.allclose(out, ref, atol=1e-4, rtol=1e-4), "mismatch vs reference"

    print("KERNEL_OK")
</pallas_src>

<mosaic_0001>
module attributes {stable_mosaic.version = 11 : i64} {
  func.func @_resblock_kernel(%arg0: i32, %arg1: memref<1x16x16x4xf32, #tpu.memory_space<vmem>>, %arg2: memref<36x128xf32, #tpu.memory_space<vmem>>, %arg3: memref<1x128xf32, #tpu.memory_space<vmem>>, %arg4: memref<1x128xf32, #tpu.memory_space<vmem>>, %arg5: memref<1152x128xf32, #tpu.memory_space<vmem>>, %arg6: memref<1x128xf32, #tpu.memory_space<vmem>>, %arg7: memref<1x128xf32, #tpu.memory_space<vmem>>, %arg8: memref<1x256x128xf32, #tpu.memory_space<vmem>>, %arg9: memref<18x18x4xf32, #tpu.memory_space<vmem>>, %arg10: memref<256x36xf32, #tpu.memory_space<vmem>>, %arg11: memref<18x18x128xf32, #tpu.memory_space<vmem>>) attributes {dimension_semantics = [#tpu.dimension_semantics<parallel>], iteration_bounds = array<i64: 2>, scalar_prefetch = 0 : i64, scratch_operands = 3 : i64, tpu.core_type = #tpu.core_type<tc>, window_params = [{transform_indices = @transform_0, window_bounds = array<i64: 1, 16, 16, 4>}, {pipeline_mode = #tpu.pipeline_mode<synchronous>, transform_indices = @transform_1, window_bounds = array<i64: 36, 128>}, {pipeline_mode = #tpu.pipeline_mode<synchronous>, transform_indices = @transform_2, window_bounds = array<i64: 1, 128>}, {pipeline_mode = #tpu.pipeline_mode<synchronous>, transform_indices = @transform_3, window_bounds = array<i64: 1, 128>}, {pipeline_mode = #tpu.pipeline_mode<synchronous>, transform_indices = @transform_4, window_bounds = array<i64: 1152, 128>}, {pipeline_mode = #tpu.pipeline_mode<synchronous>, transform_indices = @transform_5, window_bounds = array<i64: 1, 128>}, {pipeline_mode = #tpu.pipeline_mode<synchronous>, transform_indices = @transform_6, window_bounds = array<i64: 1, 128>}, {transform_indices = @transform_7, window_bounds = array<i64: 1, 256, 128>}]} {
    %cst = arith.constant 0.000000e+00 : f32
    %0 = vector.broadcast %cst : f32 to vector<1x18x4xf32>
    %c0 = arith.constant 0 : index
    %c0_0 = arith.constant 0 : index
    %c0_1 = arith.constant 0 : index
    %1 = vector.load %arg9[%c0, %c0_0, %c0_1] : memref<18x18x4xf32, #tpu.memory_space<vmem>>, vector<1x18x4xf32>
    tpu.vector_store %arg9[%c0, %c0_0, %c0_1], %0 {strides = array<i32>} : memref<18x18x4xf32, #tpu.memory_space<vmem>>, vector<1x18x4xf32>,
    %cst_2 = arith.constant 0.000000e+00 : f32
    %2 = vector.broadcast %cst_2 : f32 to vector<1x18x4xf32>
    %c17 = arith.constant 17 : index
    %c0_3 = arith.constant 0 : index
    %c0_4 = arith.constant 0 : index
    %3 = vector.load %arg9[%c17, %c0_3, %c0_4] : memref<18x18x4xf32, #tpu.memory_space<vmem>>, vector<1x18x4xf32>
    tpu.vector_store %arg9[%c17, %c0_3, %c0_4], %2 {strides = array<i32>} : memref<18x18x4xf32, #tpu.memory_space<vmem>>, vector<1x18x4xf32>,
    %cst_5 = arith.constant 0.000000e+00 : f32
    %4 = vector.broadcast %cst_5 : f32 to vector<18x1x4xf32>
    %c0_6 = arith.constant 0 : index
    %c0_7 = arith.constant 0 : index
    %c0_8 = arith.constant 0 : index
    %5 = vector.load %arg9[%c0_6, %c0_7, %c0_8] : memref<18x18x4xf32, #tpu.memory_space<vmem>>, vector<18x1x4xf32>
    tpu.vector_store %arg9[%c0_6, %c0_7, %c0_8], %4 {strides = array<i32>} : memref<18x18x4xf32, #tpu.memory_space<vmem>>, vector<18x1x4xf32>,
    %cst_9 = arith.constant 0.000000e+00 : f32
    %6 = vector.broadcast %cst_9 : f32 to vector<18x1x4xf32>
    %c0_10 = arith.constant 0 : index
    %c17_11 = arith.constant 17 : index
    %c0_12 = arith.constant 0 : index
    %7 = vector.load %arg9[%c0_10, %c17_11, %c0_12] : memref<18x18x4xf32, #tpu.memory_space<vmem>>, vector<18x1x4xf32>
    tpu.vector_store %arg9[%c0_10, %c17_11, %c0_12], %6 {strides = array<i32>} : memref<18x18x4xf32, #tpu.memory_space<vmem>>, vector<18x1x4xf32>,
    %c0_13 = arith.constant 0 : index
    %c0_14 = arith.constant 0 : index
    %c0_15 = arith.constant 0 : index
    %c0_16 = arith.constant 0 : index
    %8 = vector.load %arg1[%c0_13, %c0_14, %c0_15, %c0_16] : memref<1x16x16x4xf32, #tpu.memory_space<vmem>>, vector<1x16x16x4xf32>
    %9 = vector.shape_cast %8 : vector<1x16x16x4xf32> to vector<16x16x4xf32>
    %c1 = arith.constant 1 : index
    %c1_17 = arith.constant 1 : index
    %c0_18 = arith.constant 0 : index
    %10 = vector.load %arg9[%c1, %c1_17, %c0_18] : memref<18x18x4xf32, #tpu.memory_space<vmem>>, vector<16x16x4xf32>
    tpu.vector_store %arg9[%c1, %c1_17, %c0_18], %9 {strides = array<i32>} : memref<18x18x4xf32, #tpu.memory_space<vmem>>, vector<16x16x4xf32>,
    %c0_19 = arith.constant 0 : index
    %c0_20 = arith.constant 0 : index
    %c0_21 = arith.constant 0 : index
    %11 = vector.load %arg9[%c0_19, %c0_20, %c0_21] : memref<18x18x4xf32, #tpu.memory_space<vmem>>, vector<16x16x4xf32>
    %12 = vector.shape_cast %11 : vector<16x16x4xf32> to vector<256x4xf32>
    %c0_22 = arith.constant 0 : index
    %c0_23 = arith.constant 0 : index
    %13 = vector.load %arg10[%c0_22, %c0_23] : memref<256x36xf32, #tpu.memory_space<vmem>>, vector<256x4xf32>
    tpu.vector_store %arg10[%c0_22, %c0_23], %12 {strides = array<i32>} : memref<256x36xf32, #tpu.memory_space<vmem>>, vector<256x4xf32>,
    %c0_24 = arith.constant 0 : index
    %c1_25 = arith.constant 1 : index
    %c0_26 = arith.constant 0 : index
    %14 = vector.load %arg9[%c0_24, %c1_25, %c0_26] : memref<18x18x4xf32, #tpu.memory_space<vmem>>, vector<16x16x4xf32>
    %15 = vector.shape_cast %14 : vector<16x16x4xf32> to vector<256x4xf32>
    %c0_27 = arith.constant 0 : index
    %c4 = arith.constant 4 : index
    %16 = vector.load %arg10[%c0_27, %c4] : memref<256x36xf32, #tpu.memory_space<vmem>>, vector<256x4xf32>
    tpu.vector_store %arg10[%c0_27, %c4], %15 {strides = array<i32>} : memref<256x36xf32, #tpu.memory_space<vmem>>, vector<256x4xf32>,
    %c0_28 = arith.constant 0 : index
    %c2 = arith.constant 2 : index
    %c0_29 = arith.constant 0 : index
    %17 = vector.load %arg9[%c0_28, %c2, %c0_29] : memref<18x18x4xf32, #tpu.memory_space<vmem>>, vector<16x16x4xf32>
    %18 = vector.shape_cast %17 : vector<16x16x4xf32> to vector<256x4xf32>
    %c0_30 = arith.constant 0 : index
    %c8 = arith.constant 8 : index
    %19 = vector.load %arg10[%c0_30, %c8] : memref<256x36xf32, #tpu.memory_space<vmem>>, vector<256x4xf32>
    tpu.vector_store %arg10[%c0_30, %c8], %18 {strides = array<i32>} : memref<256x36xf32, #tpu.memory_space<vmem>>, vector<256x4xf32>,
    %c1_31 = arith.constant 1 : index
    %c0_32 = arith.constant 0 : index
    %c0_33 = arith.constant 0 : index
    %20 = vector.load %arg9[%c1_31, %c0_32, %c0_33] : memref<18x18x4xf32, #tpu.memory_space<vmem>>, vector<16x16x4xf32>
    %21 = vector.shape_cast %20 : vector<16x16x4xf32> to vector<256x4xf32>
    %c0_34 = arith.constant 0 : index
    %c12 = arith.constant 12 : index
    %22 = vector.load %arg10[%c0_34, %c12] : memref<256x36xf32, #tpu.memory_space<vmem>>, vector<256x4xf32>
    tpu.vector_store %arg10[%c0_34, %c12], %21 {strides = array<i32>} : memref<256x36xf32, #tpu.memory_space<vmem>>, vector<256x4xf32>,
    %c1_35 = arith.constant 1 : index
    %c1_36 = arith.constant 1 : index
    %c0_37 = arith.constant 0 : index
    %23 = vector.load %arg9[%c1_35, %c1_36, %c0_37] : memref<18x18x4xf32, #tpu.memory_space<vmem>>, vector<16x16x4xf32>
    %24 = vector.shape_cast %23 : vector<16x16x4xf32> to vector<256x4xf32>
    %c0_38 = arith.constant 0 : index
    %c16 = arith.constant 16 : index
    %25 = vector.load %arg10[%c0_38, %c16] : memref<256x36xf32, #tpu.memory_space<vmem>>, vector<256x4xf32>
    tpu.vector_store %arg10[%c0_38, %c16], %24 {strides = array<i32>} : memref<256x36xf32, #tpu.memory_space<vmem>>, vector<256x4xf32>,
    %c1_39 = arith.constant 1 : index
    %c2_40 = arith.constant 2 : index
    %c0_41 = arith.constant 0 : index
    %26 = vector.load %arg9[%c1_39, %c2_40, %c0_41] : memref<18x18x4xf32, #tpu.memory_space<vmem>>, vector<16x16x4xf32>
    %27 = vector.shape_cast %26 : vector<16x16x4xf32> to vector<256x4xf32>
    %c0_42 = arith.constant 0 : index
    %c20 = arith.constant 20 : index
    %28 = vector.load %arg10[%c0_42, %c20] : memref<256x36xf32, #tpu.memory_space<vmem>>, vector<256x4xf32>
    tpu.vector_store %arg10[%c0_42, %c20], %27 {strides = array<i32>} : memref<256x36xf32, #tpu.memory_space<vmem>>, vector<256x4xf32>,
    %c2_43 = arith.constant 2 : index
    %c0_44 = arith.constant 0 : index
    %c0_45 = arith.constant 0 : index
    %29 = vector.load %arg9[%c2_43, %c0_44, %c0_45] : memref<18x18x4xf32, #tpu.memory_space<vmem>>, vector<16x16x4xf32>
    %30 = vector.shape_cast %29 : vector<16x16x4xf32> to vector<256x4xf32>
    %c0_46 = arith.constant 0 : index
    %c24 = arith.constant 24 : index
    %31 = vector.load %arg10[%c0_46, %c24] : memref<256x36xf32, #tpu.memory_space<vmem>>, vector<256x4xf32>
    tpu.vector_store %arg10[%c0_46, %c24], %30 {strides = array<i32>} : memref<256x36xf32, #tpu.memory_space<vmem>>, vector<256x4xf32>,
    %c2_47 = arith.constant 2 : index
    %c1_48 = arith.constant 1 : index
    %c0_49 = arith.constant 0 : index
    %32 = vector.load %arg9[%c2_47, %c1_48, %c0_49] : memref<18x18x4xf32, #tpu.memory_space<vmem>>, vector<16x16x4xf32>
    %33 = vector.shape_cast %32 : vector<16x16x4xf32> to vector<256x4xf32>
    %c0_50 = arith.constant 0 : index
    %c28 = arith.constant 28 : index
    %34 = vector.load %arg10[%c0_50, %c28] : memref<256x36xf32, #tpu.memory_space<vmem>>, vector<256x4xf32>
    tpu.vector_store %arg10[%c0_50, %c28], %33 {strides = array<i32>} : memref<256x36xf32, #tpu.memory_space<vmem>>, vector<256x4xf32>,
    %c2_51 = arith.constant 2 : index
    %c2_52 = arith.constant 2 : index
    %c0_53 = arith.constant 0 : index
    %35 = vector.load %arg9[%c2_51, %c2_52, %c0_53] : memref<18x18x4xf32, #tpu.memory_space<vmem>>, vector<16x16x4xf32>
    %36 = vector.shape_cast %35 : vector<16x16x4xf32> to vector<256x4xf32>
    %c0_54 = arith.constant 0 : index
    %c32 = arith.constant 32 : index
    %37 = vector.load %arg10[%c0_54, %c32] : memref<256x36xf32, #tpu.memory_space<vmem>>, vector<256x4xf32>
    tpu.vector_store %arg10[%c0_54, %c32], %36 {strides = array<i32>} : memref<256x36xf32, #tpu.memory_space<vmem>>, vector<256x4xf32>,
    %c0_55 = arith.constant 0 : index
    %c0_56 = arith.constant 0 : index
    %38 = vector.load %arg10[%c0_55, %c0_56] : memref<256x36xf32, #tpu.memory_space<vmem>>, vector<256x36xf32>
    %c0_57 = arith.constant 0 : index
    %c0_58 = arith.constant 0 : index
    %39 = vector.load %arg2[%c0_57, %c0_58] : memref<36x128xf32, #tpu.memory_space<vmem>>, vector<36x128xf32>
    %cst_59 = arith.constant dense<0.000000e+00> : vector<256x128xf32>
    %40 = tpu.matmul %38, %39, %cst_59 {dimension_numbers = #tpu.dot_dimension_numbers<[1], [0], [0], [1], [0, 0, 1, 1], [], []>} : vector<256x36xf32>, vector<36x128xf32>, vector<256x128xf32> -> vector<256x128xf32>
    %c0_60 = arith.constant 0 : index
    %c0_61 = arith.constant 0 : index
    %41 = vector.load %arg3[%c0_60, %c0_61] : memref<1x128xf32, #tpu.memory_space<vmem>>, vector<1x128xf32>
    %42 = vector.broadcast %41 : vector<1x128xf32> to vector<256x128xf32>
    %43 = arith.addf %40, %42 : vector<256x128xf32>
    %cst_62 = arith.constant 0.000000e+00 : f32
    %44 = vector.broadcast %cst_62 : f32 to vector<256x128xf32>
    %45 = arith.cmpf ogt, %43, %44 : vector<256x128xf32>
    %c0_63 = arith.constant 0 : index
    %c0_64 = arith.constant 0 : index
    %46 = vector.load %arg4[%c0_63, %c0_64] : memref<1x128xf32, #tpu.memory_space<vmem>>, vector<1x128xf32>
    %47 = vector.broadcast %46 : vector<1x128xf32> to vector<256x128xf32>
    %48 = arith.mulf %47, %43 : vector<256x128xf32>
    %49 = arith.select %45, %43, %48 : vector<256x128xi1>, vector<256x128xf32>
    %cst_65 = arith.constant 0.000000e+00 : f32
    %50 = vector.broadcast %cst_65 : f32 to vector<1x18x128xf32>
    %c0_66 = arith.constant 0 : index
    %c0_67 = arith.constant 0 : index
    %c0_68 = arith.constant 0 : index
    %51 = vector.load %arg11[%c0_66, %c0_67, %c0_68] : memref<18x18x128xf32, #tpu.memory_space<vmem>>, vector<1x18x128xf32>
    tpu.vector_store %arg11[%c0_66, %c0_67, %c0_68], %50 {strides = array<i32>} : memref<18x18x128xf32, #tpu.memory_space<vmem>>, vector<1x18x128xf32>,
    %cst_69 = arith.constant 0.000000e+00 : f32
    %52 = vector.broadcast %cst_69 : f32 to vector<1x18x128xf32>
    %c17_70 = arith.constant 17 : index
    %c0_71 = arith.constant 0 : index
    %c0_72 = arith.constant 0 : index
    %53 = vector.load %arg11[%c17_70, %c0_71, %c0_72] : memref<18x18x128xf32, #tpu.memory_space<vmem>>, vector<1x18x128xf32>
    tpu.vector_store %arg11[%c17_70, %c0_71, %c0_72], %52 {strides = array<i32>} : memref<18x18x128xf32, #tpu.memory_space<vmem>>, vector<1x18x128xf32>,
    %cst_73 = arith.constant 0.000000e+00 : f32
    %54 = vector.broadcast %cst_73 : f32 to vector<18x1x128xf32>
    %c0_74 = arith.constant 0 : index
    %c0_75 = arith.constant 0 : index
    %c0_76 = arith.constant 0 : index
    %55 = vector.load %arg11[%c0_74, %c0_75, %c0_76] : memref<18x18x128xf32, #tpu.memory_space<vmem>>, vector<18x1x128xf32>
    tpu.vector_store %arg11[%c0_74, %c0_75, %c0_76], %54 {strides = array<i32>} : memref<18x18x128xf32, #tpu.memory_space<vmem>>, vector<18x1x128xf32>,
    %cst_77 = arith.constant 0.000000e+00 : f32
    %56 = vector.broadcast %cst_77 : f32 to vector<18x1x128xf32>
    %c0_78 = arith.constant 0 : index
    %c17_79 = arith.constant 17 : index
    %c0_80 = arith.constant 0 : index
    %57 = vector.load %arg11[%c0_78, %c17_79, %c0_80] : memref<18x18x128xf32, #tpu.memory_space<vmem>>, vector<18x1x128xf32>
    tpu.vector_store %arg11[%c0_78, %c17_79, %c0_80], %56 {strides = array<i32>} : memref<18x18x128xf32, #tpu.memory_space<vmem>>, vector<18x1x128xf32>,
    %58 = vector.shape_cast %49 : vector<256x128xf32> to vector<16x16x128xf32>
    %c1_81 = arith.constant 1 : index
    %c1_82 = arith.constant 1 : index
    %c0_83 = arith.constant 0 : index
    %59 = vector.load %arg11[%c1_81, %c1_82, %c0_83] : memref<18x18x128xf32, #tpu.memory_space<vmem>>, vector<16x16x128xf32>
    tpu.vector_store %arg11[%c1_81, %c1_82, %c0_83], %58 {strides = array<i32>} : memref<18x18x128xf32, #tpu.memory_space<vmem>>, vector<16x16x128xf32>,
    %c1_84 = arith.constant 1 : index
    %c1_85 = arith.constant 1 : index
    %c4_86 = arith.constant 4 : index
    %60 = vector.load %arg11[%c1_84, %c1_85, %c4_86] : memref<18x18x128xf32, #tpu.memory_space<vmem>>, vector<16x16x4xf32>
    tpu.vector_store %arg11[%c1_84, %c1_85, %c4_86], %9 {strides = array<i32>} : memref<18x18x128xf32, #tpu.memory_space<vmem>>, vector<16x16x4xf32>,
    %c0_87 = arith.constant 0 : index
    %c0_88 = arith.constant 0 : index
    %c0_89 = arith.constant 0 : index
    %61 = vector.load %arg11[%c0_87, %c0_88, %c0_89] : memref<18x18x128xf32, #tpu.memory_space<vmem>>, vector<16x16x128xf32>
    %62 = vector.shape_cast %61 : vector<16x16x128xf32> to vector<256x128xf32>
    %c0_90 = arith.constant 0 : index
    %c1_91 = arith.constant 1 : index
    %c0_92 = arith.constant 0 : index
    %63 = vector.load %arg11[%c0_90, %c1_91, %c0_92] : memref<18x18x128xf32, #tpu.memory_space<vmem>>, vector<16x16x128xf32>
    %64 = vector.shape_cast %63 : vector<16x16x128xf32> to vector<256x128xf32>
    %c0_93 = arith.constant 0 : index
    %c2_94 = arith.constant 2 : index
    %c0_95 = arith.constant 0 : index
    %65 = vector.load %arg11[%c0_93, %c2_94, %c0_95] : memref<18x18x128xf32, #tpu.memory_space<vmem>>, vector<16x16x128xf32>
    %66 = vector.shape_cast %65 : vector<16x16x128xf32> to vector<256x128xf32>
    %c1_96 = arith.constant 1 : index
    %c0_97 = arith.constant 0 : index
    %c0_98 = arith.constant 0 : index
    %67 = vector.load %arg11[%c1_96, %c0_97, %c0_98] : memref<18x18x128xf32, #tpu.memory_space<vmem>>, vector<16x16x128xf32>
    %68 = vector.shape_cast %67 : vector<16x16x128xf32> to vector<256x128xf32>
    %c1_99 = arith.constant 1 : index
    %c1_100 = arith.constant 1 : index
    %c0_101 = arith.constant 0 : index
    %69 = vector.load %arg11[%c1_99, %c1_100, %c0_101] : memref<18x18x128xf32, #tpu.memory_space<vmem>>, vector<16x16x128xf32>
    %70 = vector.shape_cast %69 : vector<16x16x128xf32> to vector<256x128xf32>
    %c1_102 = arith.constant 1 : index
    %c2_103 = arith.constant 2 : index
    %c0_104 = arith.constant 0 : index
    %71 = vector.load %arg11[%c1_102, %c2_103, %c0_104] : memref<18x18x128xf32, #tpu.memory_space<vmem>>, vector<16x16x128xf32>
    %72 = vector.shape_cast %71 : vector<16x16x128xf32> to vector<256x128xf32>
    %c2_105 = arith.constant 2 : index
    %c0_106 = arith.constant 0 : index
    %c0_107 = arith.constant 0 : index
    %73 = vector.load %arg11[%c2_105, %c0_106, %c0_107] : memref<18x18x128xf32, #tpu.memory_space<vmem>>, vector<16x16x128xf32>
    %74 = vector.shape_cast %73 : vector<16x16x128xf32> to vector<256x128xf32>
    %c2_108 = arith.constant 2 : index
    %c1_109 = arith.constant 1 : index
    %c0_110 = arith.constant 0 : index
    %75 = vector.load %arg11[%c2_108, %c1_109, %c0_110] : memref<18x18x128xf32, #tpu.memory_space<vmem>>, vector<16x16x128xf32>
    %76 = vector.shape_cast %75 : vector<16x16x128xf32> to vector<256x128xf32>
    %c2_111 = arith.constant 2 : index
    %c2_112 = arith.constant 2 : index
    %c0_113 = arith.constant 0 : index
    %77 = vector.load %arg11[%c2_111, %c2_112, %c0_113] : memref<18x18x128xf32, #tpu.memory_space<vmem>>, vector<16x16x128xf32>
    %78 = vector.shape_cast %77 : vector<16x16x128xf32> to vector<256x128xf32>
    %79 = tpu.concatenate %62, %64, %66, %68, %70, %72, %74, %76, %78 in 1 : vector<256x128xf32>, vector<256x128xf32>, vector<256x128xf32>, vector<256x128xf32>, vector<256x128xf32>, vector<256x128xf32>, vector<256x128xf32>, vector<256x128xf32>, vector<256x128xf32> -> vector<256x1152xf32>
    %c0_114 = arith.constant 0 : index
    %c0_115 = arith.constant 0 : index
    %80 = vector.load %arg5[%c0_114, %c0_115] : memref<1152x128xf32, #tpu.memory_space<vmem>>, vector<1152x128xf32>
    %cst_116 = arith.constant dense<0.000000e+00> : vector<256x128xf32>
    %81 = tpu.matmul %79, %80, %cst_116 {dimension_numbers = #tpu.dot_dimension_numbers<[1], [0], [0], [1], [0, 0, 1, 1], [], []>} : vector<256x1152xf32>, vector<1152x128xf32>, vector<256x128xf32> -> vector<256x128xf32>
    %c0_117 = arith.constant 0 : index
    %c0_118 = arith.constant 0 : index
    %82 = vector.load %arg6[%c0_117, %c0_118] : memref<1x128xf32, #tpu.memory_space<vmem>>, vector<1x128xf32>
    %83 = vector.broadcast %82 : vector<1x128xf32> to vector<256x128xf32>
    %84 = arith.addf %81, %83 : vector<256x128xf32>
    %cst_119 = arith.constant 0.000000e+00 : f32
    %85 = vector.broadcast %cst_119 : f32 to vector<256x128xf32>
    %86 = arith.cmpf ogt, %84, %85 : vector<256x128xf32>
    %c0_120 = arith.constant 0 : index
    %c0_121 = arith.constant 0 : index
    %87 = vector.load %arg7[%c0_120, %c0_121] : memref<1x128xf32, #tpu.memory_space<vmem>>, vector<1x128xf32>
    %88 = vector.broadcast %87 : vector<1x128xf32> to vector<256x128xf32>
    %89 = arith.mulf %88, %84 : vector<256x128xf32>
    %90 = arith.select %86, %84, %89 : vector<256x128xi1>, vector<256x128xf32>
    %91 = vector.shape_cast %90 : vector<256x128xf32> to vector<1x256x128xf32>
    %c0_122 = arith.constant 0 : index
    %c0_123 = arith.constant 0 : index
    %c0_124 = arith.constant 0 : index
    %92 = vector.load %arg8[%c0_122, %c0_123, %c0_124] : memref<1x256x128xf32, #tpu.memory_space<vmem>>, vector<1x256x128xf32>
    tpu.vector_store %arg8[%c0_122, %c0_123, %c0_124], %91 {strides = array<i32>} : memref<1x256x128xf32, #tpu.memory_space<vmem>>, vector<1x256x128xf32>,
    return
  }
  func.func @transform_0(%arg0: i32) -> (i32, i32, i32, i32) {
    %c0_i32 = arith.constant 0 : i32
    %c0_i32_0 = arith.constant 0 : i32
    %c0_i32_1 = arith.constant 0 : i32
    %c0_i32_2 = arith.constant 0 : i32
    return %arg0, %c0_i32, %c0_i32_0, %c0_i32_1 : i32, i32, i32, i32
  }
  func.func @transform_1(%arg0: i32) -> (i32, i32) {
    %c0_i32 = arith.constant 0 : i32
    %c0_i32_0 = arith.constant 0 : i32
    %c0_i32_1 = arith.constant 0 : i32
    return %c0_i32, %c0_i32_0 : i32, i32
  }
  func.func @transform_2(%arg0: i32) -> (i32, i32) {
    %c0_i32 = arith.constant 0 : i32
    %c0_i32_0 = arith.constant 0 : i32
    %c0_i32_1 = arith.constant 0 : i32
    return %c0_i32, %c0_i32_0 : i32, i32
  }
  func.func @transform_3(%arg0: i32) -> (i32, i32) {
    %c0_i32 = arith.constant 0 : i32
    %c0_i32_0 = arith.constant 0 : i32
    %c0_i32_1 = arith.constant 0 : i32
    return %c0_i32, %c0_i32_0 : i32, i32
  }
  func.func @transform_4(%arg0: i32) -> (i32, i32) {
    %c0_i32 = arith.constant 0 : i32
    %c0_i32_0 = arith.constant 0 : i32
    %c0_i32_1 = arith.constant 0 : i32
    return %c0_i32, %c0_i32_0 : i32, i32
  }
  func.func @transform_5(%arg0: i32) -> (i32, i32) {
    %c0_i32 = arith.constant 0 : i32
    %c0_i32_0 = arith.constant 0 : i32
    %c0_i32_1 = arith.constant 0 : i32
    return %c0_i32, %c0_i32_0 : i32, i32
  }
  func.func @transform_6(%arg0: i32) -> (i32, i32) {
    %c0_i32 = arith.constant 0 : i32
    %c0_i32_0 = arith.constant 0 : i32
    %c0_i32_1 = arith.constant 0 : i32
    return %c0_i32, %c0_i32_0 : i32, i32
  }
  func.func @transform_7(%arg0: i32) -> (i32, i32, i32) {
    %c0_i32 = arith.constant 0 : i32
    %c0_i32_0 = arith.constant 0 : i32
    %c0_i32_1 = arith.constant 0 : i32
    return %arg0, %c0_i32, %c0_i32_0 : i32, i32, i32
  }
}

</mosaic_0001>

<llo_original>
// kernel: tpu_custom_call.1
$region0: #{tpu_custom_call.1}
  #allocation0 [shape = 'u32[]', space=smem, size = 0x4, offset = 0x4, fixed_abs, tag = 'smem constant byte address 0x4 - core index']
  #allocation1 [shape = 'u32[144,128]{1,0:T(1,128)}', space=vmem, size = 0x12000, scoped, tag = 'internal scratch']
  #allocation2 [shape = 'f32[18,18,4]{2,1,0:T(8,128)}', space=vmem, size = 0x36000, scoped, tag = 'scratch operand']
  #allocation3 [shape = 'f32[256,36]{1,0:T(8,128)}', space=vmem, size = 0x20000, scoped, tag = 'scratch operand']
  #allocation4 [shape = 'f32[18,18,128]{2,1,0:T(8,128)}', space=vmem, size = 0x36000, scoped, tag = 'scratch operand']
  %s0 = inlined_call_operand.vmem [shape: f32[2,16,16,4], index: 0, kind: input, shape index: {}]
  %s1 = inlined_call_operand.vmem [shape: f32[36,128], index: 1, kind: input, shape index: {}]
  %s2 = inlined_call_operand.vmem [shape: f32[1,128], index: 2, kind: input, shape index: {}]
  %s3 = inlined_call_operand.vmem [shape: f32[1,128], index: 3, kind: input, shape index: {}]
  %s4 = inlined_call_operand.hbm [shape: f32[1152,128], index: 4, kind: input, shape index: {}]
  %s5 = inlined_call_operand.vmem [shape: f32[1,128], index: 5, kind: input, shape index: {}]
  %s6 = inlined_call_operand.vmem [shape: f32[1,128], index: 6, kind: input, shape index: {}]
  %s7 = inlined_call_operand.hbm [shape: f32[2,256,128], index: 7, kind: output, shape index: {}]
  %s8 = sld [smem:[#allocation0]]
  $region65: #{tpu_custom_call.1} parent=0
    _
  %s10 = ssub.s32 1, %s8
  %s11 = scalar_select 0, %s10, %s8
  $region1: #{tpu_custom_call.1} parent=0
    #allocation5 [shape = 'u8[589824]{0}', space=vmem, size = 0x90000, scoped, tag = 'input window, operand 4, single buffered']
    #allocation6 [shape = 's32[2]{0}', space=sflag, size = 0x8, scoped, tag = 'scoped memory for tpu_custom_call.1']
    #allocation7 [shape = 's32[2]{0}', space=sflag, size = 0x8, scoped, tag = 'scoped memory for tpu_custom_call.1']
    #allocation8 [shape = 'u8[262144]{0}', space=vmem, size = 0x40000, scoped, tag = 'output window, operand 0']
    %12 = vsyncpa [#allocation6], 0
    %13 = vsyncpa [#allocation7], 0
    %s14 = scalar_lea.sflag [#allocation7], 1
    %15 = vsyncpa %s14, 0
    loop: start=0, step=1, limit=4
    $region2: #{tpu_custom_call.1} parent=1 // loop_pre_header
      _
    $region3: #{tpu_custom_call.1} parent=1 // loop_header
      %s17 = sphi 0, %s21
      %p18 = scmp.ge.s32.totalorder %s17, 4
      %s27 = sphi 0, %s29
      %s30 = sphi 0, %s27
      %s31 = sphi 0, %s30
      %s47 = sphi 0, %s31
      %s51 = sphi 0, %s51
      %s53 = sphi 0, %s51
      %s54 = sphi 0, %s53
      %s68 = sphi 0, %s54
      %s72 = sphi 0, %s72
      %s74 = sphi 0, %s72
      %s75 = sphi 0, %s74
      %s89 = sphi 0, %s75
      %s93 = sphi 0, %s93
      %s95 = sphi 0, %s93
      %s96 = sphi 0, %s95
      %s110 = sphi 0, %s96
      %s114 = sphi 0, %s114
      %s116 = sphi 0, %s114
      %s117 = sphi 0, %s116
      %s131 = sphi 0, %s117
      %s135 = sphi 0, %s135
      %s137 = sphi 0, %s135
      %s138 = sphi 0, %s137
      %s152 = sphi 0, %s138
      %s156 = sphi 0, %s156
      %s158 = sphi 0, %s156
      %s159 = sphi 0, %s158
      %s173 = sphi 0, %s159
      %s179 = sphi 0, %s181
      %s182 = sphi 0, %s179
      %s183 = sphi 0, %s182
      %s199 = sphi 0, %s183
    $region4: #{tpu_custom_call.1} parent=1 // loop_header_branch
      %20 = sbr.rel (%p18) target = $region8
    $region5: #{tpu_custom_call.1} parent=1 // loop_body
      %s22 = ssub.s32 %s17, 1
      %s23 = ssub.s32 %s17, 2
      %s24 = sadd.s32 %s17, 1
      %s25 = ssub.s32 %s17, %s24
      %p26 = scmp.eq.s32.totalorder %s25, 0
      %s28 = sadd.s32 %s27, 1
      %s29 = scalar_select %p26, %s27, %s28
      %p32 = pneg %p26
      %p33 = scmp.eq.s32.totalorder %s17, 1
      %p34 = por %p32, %p33
      %p35 = scmp.ne.s32.totalorder %s27, %s30
      %p36 = scmp.eq.s32.totalorder %s17, 0
      %p37 = por %p35, %p36
      %p38 = scmp.ne.s32.totalorder %s27, %s30
      %p39 = scmp.eq.s32.totalorder %s22, 1
      %p40 = por %p38, %p39
      %p41 = scmp.ne.s32.totalorder %s30, %s31
      %p42 = scmp.eq.s32.totalorder %s22, 0
      %p43 = por %p41, %p42
      %p44 = scmp.ne.s32.totalorder %s30, %s31
      %p45 = scmp.eq.s32.totalorder %s23, 1
      %p46 = por %p44, %p45
      %p48 = scmp.ne.s32.totalorder %s31, %s47
      %p49 = scmp.eq.s32.totalorder %s23, 0
      %p50 = por %p48, %p49
      %s52 = sadd.s32 %s51, 1
      %p55 = scmp.eq.s32.totalorder %s17, 1
      %p56 = scmp.ne.s32.totalorder %s51, %s53
      %p57 = scmp.eq.s32.totalorder %s17, 0
      %p58 = por %p56, %p57
      %p59 = scmp.ne.s32.totalorder %s51, %s53
      %p60 = scmp.eq.s32.totalorder %s22, 1
      %p61 = por %p59, %p60
      %p62 = scmp.ne.s32.totalorder %s53, %s54
      %p63 = scmp.eq.s32.totalorder %s22, 0
      %p64 = por %p62, %p63
      %p65 = scmp.ne.s32.totalorder %s53, %s54
      %p66 = scmp.eq.s32.totalorder %s23, 1
      %p67 = por %p65, %p66
      %p69 = scmp.ne.s32.totalorder %s54, %s68
      %p70 = scmp.eq.s32.totalorder %s23, 0
      %p71 = por %p69, %p70
      %s73 = sadd.s32 %s72, 1
      %p76 = scmp.eq.s32.totalorder %s17, 1
      %p77 = scmp.ne.s32.totalorder %s72, %s74
      %p78 = scmp.eq.s32.totalorder %s17, 0
      %p79 = por %p77, %p78
      %p80 = scmp.ne.s32.totalorder %s72, %s74
      %p81 = scmp.eq.s32.totalorder %s22, 1
      %p82 = por %p80, %p81
      %p83 = scmp.ne.s32.totalorder %s74, %s75
      %p84 = scmp.eq.s32.totalorder %s22, 0
      %p85 = por %p83, %p84
      %p86 = scmp.ne.s32.totalorder %s74, %s75
      %p87 = scmp.eq.s32.totalorder %s23, 1
      %p88 = por %p86, %p87
      %p90 = scmp.ne.s32.totalorder %s75, %s89
      %p91 = scmp.eq.s32.totalorder %s23, 0
      %p92 = por %p90, %p91
      %s94 = sadd.s32 %s93, 1
      %p97 = scmp.eq.s32.totalorder %s17, 1
      %p98 = scmp.ne.s32.totalorder %s93, %s95
      %p99 = scmp.eq.s32.totalorder %s17, 0
      %p100 = por %p98, %p99
      %p101 = scmp.ne.s32.totalorder %s93, %s95
      %p102 = scmp.eq.s32.totalorder %s22, 1
      %p103 = por %p101, %p102
      %p104 = scmp.ne.s32.totalorder %s95, %s96
      %p105 = scmp.eq.s32.totalorder %s22, 0
      %p106 = por %p104, %p105
      %p107 = scmp.ne.s32.totalorder %s95, %s96
      %p108 = scmp.eq.s32.totalorder %s23, 1
      %p109 = por %p107, %p108
      %p111 = scmp.ne.s32.totalorder %s96, %s110
      %p112 = scmp.eq.s32.totalorder %s23, 0
      %p113 = por %p111, %p112
      %s115 = sadd.s32 %s114, 1
      %p118 = scmp.eq.s32.totalorder %s17, 1
      %p119 = scmp.ne.s32.totalorder %s114, %s116
      %p120 = scmp.eq.s32.totalorder %s17, 0
      %p121 = por %p119, %p120
      %p122 = scmp.ne.s32.totalorder %s114, %s116
      %p123 = scmp.eq.s32.totalorder %s22, 1
      %p124 = por %p122, %p123
      %p125 = scmp.ne.s32.totalorder %s116, %s117
      %p126 = scmp.eq.s32.totalorder %s22, 0
      %p127 = por %p125, %p126
      %p128 = scmp.ne.s32.totalorder %s116, %s117
      %p129 = scmp.eq.s32.totalorder %s23, 1
      %p130 = por %p128, %p129
      %p132 = scmp.ne.s32.totalorder %s117, %s131
      %p133 = scmp.eq.s32.totalorder %s23, 0
      %p134 = por %p132, %p133
      %s136 = sadd.s32 %s135, 1
      %p139 = scmp.eq.s32.totalorder %s17, 1
      %p140 = scmp.ne.s32.totalorder %s135, %s137
      %p141 = scmp.eq.s32.totalorder %s17, 0
      %p142 = por %p140, %p141
      %p143 = scmp.ne.s32.totalorder %s135, %s137
      %p144 = scmp.eq.s32.totalorder %s22, 1
      %p145 = por %p143, %p144
      %p146 = scmp.ne.s32.totalorder %s137, %s138
      %p147 = scmp.eq.s32.totalorder %s22, 0
      %p148 = por %p146, %p147
      %p149 = scmp.ne.s32.totalorder %s137, %s138
      %p150 = scmp.eq.s32.totalorder %s23, 1
      %p151 = por %p149, %p150
      %p153 = scmp.ne.s32.totalorder %s138, %s152
      %p154 = scmp.eq.s32.totalorder %s23, 0
      %p155 = por %p153, %p154
      %s157 = sadd.s32 %s156, 1
      %p160 = scmp.eq.s32.totalorder %s17, 1
      %p161 = scmp.ne.s32.totalorder %s156, %s158
      %p162 = scmp.eq.s32.totalorder %s17, 0
      %p163 = por %p161, %p162
      %p164 = scmp.ne.s32.totalorder %s156, %s158
      %p165 = scmp.eq.s32.totalorder %s22, 1
      %p166 = por %p164, %p165
      %p167 = scmp.ne.s32.totalorder %s158, %s159
      %p168 = scmp.eq.s32.totalorder %s22, 0
      %p169 = por %p167, %p168
      %p170 = scmp.ne.s32.totalorder %s158, %s159
      %p171 = scmp.eq.s32.totalorder %s23, 1
      %p172 = por %p170, %p171
      %p174 = scmp.ne.s32.totalorder %s159, %s173
      %p175 = scmp.eq.s32.totalorder %s23, 0
      %p176 = por %p174, %p175
      %s177 = ssub.s32 %s17, %s24
      %p178 = scmp.eq.s32.totalorder %s177, 0
      %s180 = sadd.s32 %s179, 1
      %s181 = scalar_select %p178, %s179, %s180
      %p184 = pneg %p178
      %p185 = scmp.eq.s32.totalorder %s17, 1
      %p186 = por %p184, %p185
      %p187 = scmp.ne.s32.totalorder %s179, %s182
      %p188 = scmp.eq.s32.totalorder %s17, 0
      %p189 = por %p187, %p188
      %p190 = scmp.ne.s32.totalorder %s179, %s182
      %p191 = scmp.eq.s32.totalorder %s22, 1
      %p192 = por %p190, %p191
      %p193 = scmp.ne.s32.totalorder %s182, %s183
      %p194 = scmp.eq.s32.totalorder %s22, 0
      %p195 = por %p193, %p194
      %p196 = scmp.ne.s32.totalorder %s182, %s183
      %p197 = scmp.eq.s32.totalorder %s23, 1
      %p198 = por %p196, %p197
      %p200 = scmp.ne.s32.totalorder %s183, %s199
      %p201 = scmp.eq.s32.totalorder %s23, 0
      %p202 = por %p200, %p201
      %p203 = scmp.le.s32.totalorder 1, %s17
      %p204 = scmp.lt.s32.totalorder %s17, 3
      %p205 = pnand %p203, %p204
      %p206 = pneg %p205
      // Predicated region
      $region9: #{tpu_custom_call.1} parent=5 // pred_check
        _
      $region10: #{tpu_custom_call.1} parent=5 // pred_check_branch
        %208 = sbr.rel (%p205) target = $region12
      $region11: #{tpu_custom_call.1} parent=5 // pred_region
        %s209 = ssub.s32 %s17, 1
        // Predicated region
        $region13: #{tpu_custom_call.1} parent=11 // pred_check
          %p210 = pneg %p64
        $region14: #{tpu_custom_call.1} parent=11 // pred_check_branch
          %212 = sbr.rel (%p210) target = $region16
        $region15: #{tpu_custom_call.1} parent=11 // pred_region
          _
        $region16: #{tpu_custom_call.1} parent=11 // pred_fallthru
          _
        // Predicated region
        $region17: #{tpu_custom_call.1} parent=11 // pred_check
          %p213 = pneg %p85
        $region18: #{tpu_custom_call.1} parent=11 // pred_check_branch
          %215 = sbr.rel (%p213) target = $region20
        $region19: #{tpu_custom_call.1} parent=11 // pred_region
          _
        $region20: #{tpu_custom_call.1} parent=11 // pred_fallthru
          _
        // Predicated region
        $region21: #{tpu_custom_call.1} parent=11 // pred_check
          %p216 = pneg %p106
        $region22: #{tpu_custom_call.1} parent=11 // pred_check_branch
          %218 = sbr.rel (%p216) target = $region24
        $region23: #{tpu_custom_call.1} parent=11 // pred_region
          _
        $region24: #{tpu_custom_call.1} parent=11 // pred_fallthru
          _
        // Predicated region
        $region25: #{tpu_custom_call.1} parent=11 // pred_check
          %p219 = pneg %p127
        $region26: #{tpu_custom_call.1} parent=11 // pred_check_branch
          %221 = sbr.rel (%p219) target = $region28
        $region27: #{tpu_custom_call.1} parent=11 // pred_region
          %s223 = ssub.s32 18432, 18432
          %224 = vsyncadd [#allocation6], %s223
          %s225 = sshll.u32 [#allocation5], 4
          %s226 = int_to_ptr.vmem [resolvable:$true] %s225
          %231 = dma.hbm_to_vmem [thread:$0]  %s4, 18432, %s226, [#allocation6], 128, 128, 8
        $region28: #{tpu_custom_call.1} parent=11 // pred_fallthru
          _
        // Predicated region
        $region29: #{tpu_custom_call.1} parent=11 // pred_check
          %p232 = pneg %p148
        $region30: #{tpu_custom_call.1} parent=11 // pred_check_branch
          %234 = sbr.rel (%p232) target = $region32
        $region31: #{tpu_custom_call.1} parent=11 // pred_region
          _
        $region32: #{tpu_custom_call.1} parent=11 // pred_fallthru
          _
        // Predicated region
        $region33: #{tpu_custom_call.1} parent=11 // pred_check
          %p235 = pneg %p169
        $region34: #{tpu_custom_call.1} parent=11 // pred_check_branch
          %237 = sbr.rel (%p235) target = $region36
        $region35: #{tpu_custom_call.1} parent=11 // pred_region
          _
        $region36: #{tpu_custom_call.1} parent=11 // pred_fallthru
          _
      $region12: #{tpu_custom_call.1} parent=5 // pred_fallthru
        _
      %p238 = scmp.lt.s32.totalorder %s17, 2
      // Predicated region
      $region37: #{tpu_custom_call.1} parent=5 // pred_check
        %p239 = pneg %p238
      $region38: #{tpu_custom_call.1} parent=5 // pred_check_branch
        %241 = sbr.rel (%p239) target = $region40
      $region39: #{tpu_custom_call.1} parent=5 // pred_region
        // Predicated region
        $region41: #{tpu_custom_call.1} parent=39 // pred_check
          %p242 = pneg %p37
        $region42: #{tpu_custom_call.1} parent=39 // pred_check_branch
          %244 = sbr.rel (%p242) target = $region44
        $region43: #{tpu_custom_call.1} parent=39 // pred_region
          %p245 = scmp.lt.s32.totalorder %s17, 1
          %s246 = scalar_select %p245, %s17, 1
          %s247 = smul.addr %s246, 32
          %s248 = smul.addr %s247, 8
          %s249 = scalar_lea.vmem %s0, %s248
        $region44: #{tpu_custom_call.1} parent=39 // pred_fallthru
          _
      $region40: #{tpu_custom_call.1} parent=5 // pred_fallthru
        _
      %p250 = scmp.le.s32.totalorder 1, %s17
      %p251 = scmp.lt.s32.totalorder %s17, 3
      %p252 = pnand %p250, %p251
      %p253 = pneg %p252
      // Predicated region
      $region45: #{tpu_custom_call.1} parent=5 // pred_check
        _
      $region46: #{tpu_custom_call.1} parent=5 // pred_check_branch
        %255 = sbr.rel (%p252) target = $region48
      $region47: #{tpu_custom_call.1} parent=5 // pred_region
        %s256 = ssub.s32 %s17, 1
        // Predicated region
        $region49: #{tpu_custom_call.1} parent=47 // pred_check
          %p257 = pneg %p127
        $region50: #{tpu_custom_call.1} parent=47 // pred_check_branch
          %259 = sbr.rel (%p257) target = $region52
        $region51: #{tpu_custom_call.1} parent=47 // pred_region
          %260 = dma.done [#allocation6], 18432
        $region52: #{tpu_custom_call.1} parent=47 // pred_fallthru
          _
        %p261 = scmp.lt.s32.totalorder %s22, 1
        %s262 = scalar_select %p261, %s22, 1
        %s263 = smul.addr %s262, 32
        %s264 = smul.addr %s263, 8
        %s265 = scalar_lea.vmem %s0, %s264
        %p266 = pneg %p43
        %p267 = pneg %p40
        %p268 = pneg %p64
        %p269 = pneg %p61
        %p270 = pneg %p85
        %p271 = pneg %p82
        %p272 = pneg %p106
        %p273 = pneg %p103
        %p274 = pneg %p127
        %p275 = pneg %p124
        %p276 = pneg %p148
        %p277 = pneg %p145
        %p278 = pneg %p169
        %p279 = pneg %p166
        %p280 = pneg %p195
        %p281 = pneg %p192
        %s282 = sand.u32 %s182, 1
        %s283 = scalar_lea.sflag [#allocation7], %s282
        %s284 = sand.u32 %s182, 1
        %s285 = smul.addr %s284, 256
        %s286 = scalar_lea.vmem [#allocation8], %s285
        %p287 = scmp.lt.s32.totalorder %s22, 1
        %s288 = scalar_select %p287, %s22, 1
        %s289 = smul.addr %s288, 32
        %s290 = smul.addr %s289, 8
        %s291 = scalar_lea.vmem %s0, %s290
        %vm292 = vcmask 31744
        %293 = vst.msk [vmem:[#allocation2] sm:$0xff] %vm292, 0.0
        %294 = vst.msk [vmem:[#allocation2 + $0x8] sm:$0xff] %vm292, 0.0
        %vm295 = vcmask 25600
        %296 = vst.msk [vmem:[#allocation2 + $0x10] sm:$0x3] %vm295, 0.0
        %s297 = scalar_lea.vmem [#allocation2], 408
        %298 = vst.msk [vmem:[%s297] sm:$0xff] %vm292, 0.0
        %299 = vst.msk [vmem:[%s297 + $0x8] sm:$0xff] %vm292, 0.0
        %300 = vst.msk [vmem:[%s297 + $0x10] sm:$0x3] %vm295, 0.0
        %vm301 = vcmask 24576
        %302 = vst.msk [vmem:[#allocation2] sm:$0x1] %vm301, 0.0
        %303 = vst.msk [vmem:[#allocation2 + $0x18] sm:$0x1] %vm301, 0.0
        %304 = vst.msk [vmem:[#allocation2 + $0x30] sm:$0x1] %vm301, 0.0
        %305 = vst.msk [vmem:[#allocation2 + $0x48] sm:$0x1] %vm301, 0.0
        %306 = vst.msk [vmem:[#allocation2 + $0x60] sm:$0x1] %vm301, 0.0
        %307 = vst.msk [vmem:[#allocation2 + $0x78] sm:$0x1] %vm301, 0.0
        %308 = vst.msk [vmem:[#allocation2 + $0x90] sm:$0x1] %vm301, 0.0
        %309 = vst.msk [vmem:[#allocation2 + $0xa8] sm:$0x1] %vm301, 0.0
        %310 = vst.msk [vmem:[#allocation2 + $0xc0] sm:$0x1] %vm301, 0.0
        %311 = vst.msk [vmem:[#allocation2 + $0xd8] sm:$0x1] %vm301, 0.0
        %312 = vst.msk [vmem:[#allocation2 + $0xf0] sm:$0x1] %vm301, 0.0
        %313 = vst.msk [vmem:[#allocation2 + $0x108] sm:$0x1] %vm301, 0.0
        %314 = vst.msk [vmem:[#allocation2 + $0x120] sm:$0x1] %vm301, 0.0
        %315 = vst.msk [vmem:[#allocation2 + $0x138] sm:$0x1] %vm301, 0.0
        %316 = vst.msk [vmem:[#allocation2 + $0x150] sm:$0x1] %vm301, 0.0
        %317 = vst.msk [vmem:[#allocation2 + $0x168] sm:$0x1] %vm301, 0.0
        %318 = vst.msk [vmem:[#allocation2 + $0x180] sm:$0x1] %vm301, 0.0
        %319 = vst.msk [vmem:[#allocation2 + $0x198] sm:$0x1] %vm301, 0.0
        %320 = vst.msk [vmem:[#allocation2 + $0x11] sm:$0x1] %vm301, 0.0
        %321 = vst.msk [vmem:[#allocation2 + $0x29] sm:$0x1] %vm301, 0.0
        %322 = vst.msk [vmem:[#allocation2 + $0x41] sm:$0x1] %vm301, 0.0
        %323 = vst.msk [vmem:[#allocation2 + $0x59] sm:$0x1] %vm301, 0.0
        %324 = vst.msk [vmem:[#allocation2 + $0x71] sm:$0x1] %vm301, 0.0
        %325 = vst.msk [vmem:[#allocation2 + $0x89] sm:$0x1] %vm301, 0.0
        %326 = vst.msk [vmem:[#allocation2 + $0xa1] sm:$0x1] %vm301, 0.0
        %327 = vst.msk [vmem:[#allocation2 + $0xb9] sm:$0x1] %vm301, 0.0
        %328 = vst.msk [vmem:[#allocation2 + $0xd1] sm:$0x1] %vm301, 0.0
        %329 = vst.msk [vmem:[#allocation2 + $0xe9] sm:$0x1] %vm301, 0.0
        %330 = vst.msk [vmem:[#allocation2 + $0x101] sm:$0x1] %vm301, 0.0
        %331 = vst.msk [vmem:[#allocation2 + $0x119] sm:$0x1] %vm301, 0.0
        %332 = vst.msk [vmem:[#allocation2 + $0x131] sm:$0x1] %vm301, 0.0
        %333 = vst.msk [vmem:[#allocation2 + $0x149] sm:$0x1] %vm301, 0.0
        %334 = vst.msk [vmem:[#allocation2 + $0x161] sm:$0x1] %vm301, 0.0
        %335 = vst.msk [vmem:[#allocation2 + $0x179] sm:$0x1] %vm301, 0.0
        %336 = vst.msk [vmem:[#allocation2 + $0x191] sm:$0x1] %vm301, 0.0
        %337 = vst.msk [vmem:[#allocation2 + $0x1a9] sm:$0x1] %vm301, 0.0
        %v338 = vld [vmem:[%s291] sm:$0xff]
        %v339 = vld [vmem:[%s291 + $0x8] sm:$0xff]
        %v340 = vld [vmem:[%s291 + $0x10] sm:$0xff]
        %v341 = vld [vmem:[%s291 + $0x18] sm:$0xff]
        %v342 = vld [vmem:[%s291 + $0x20] sm:$0xff]
        %v343 = vld [vmem:[%s291 + $0x28] sm:$0xff]
        %v344 = vld [vmem:[%s291 + $0x30] sm:$0xff]
        %v345 = vld [vmem:[%s291 + $0x38] sm:$0xff]
        %v346 = vld [vmem:[%s291 + $0x40] sm:$0xff]
        %v347 = vld [vmem:[%s291 + $0x48] sm:$0xff]
        %v348 = vld [vmem:[%s291 + $0x50] sm:$0xff]
        %v349 = vld [vmem:[%s291 + $0x58] sm:$0xff]
        %v350 = vld [vmem:[%s291 + $0x60] sm:$0xff]
        %v351 = vld [vmem:[%s291 + $0x68] sm:$0xff]
        %v352 = vld [vmem:[%s291 + $0x70] sm:$0xff]
        %v353 = vld [vmem:[%s291 + $0x78] sm:$0xff]
        %v354 = vld [vmem:[%s291 + $0x80] sm:$0xff]
        %v355 = vld [vmem:[%s291 + $0x88] sm:$0xff]
        %v356 = vld [vmem:[%s291 + $0x90] sm:$0xff]
        %v357 = vld [vmem:[%s291 + $0x98] sm:$0xff]
        %v358 = vld [vmem:[%s291 + $0xa0] sm:$0xff]
        %v359 = vld [vmem:[%s291 + $0xa8] sm:$0xff]
        %v360 = vld [vmem:[%s291 + $0xb0] sm:$0xff]
        %v361 = vld [vmem:[%s291 + $0xb8] sm:$0xff]
        %v362 = vld [vmem:[%s291 + $0xc0] sm:$0xff]
        %v363 = vld [vmem:[%s291 + $0xc8] sm:$0xff]
        %v364 = vld [vmem:[%s291 + $0xd0] sm:$0xff]
        %v365 = vld [vmem:[%s291 + $0xd8] sm:$0xff]
        %v366 = vld [vmem:[%s291 + $0xe0] sm:$0xff]
        %v367 = vld [vmem:[%s291 + $0xe8] sm:$0xff]
        %v368 = vld [vmem:[%s291 + $0xf0] sm:$0xff]
        %v369 = vld [vmem:[%s291 + $0xf8] sm:$0xff]
        %s370 = scalar_lea.vmem [#allocation2], 24
        %371 = vst.msk [vmem:[%s370 + $0x1] sm:$0xff] %vm292, %v338
        %372 = vst.msk [vmem:[%s370 + $0x9] sm:$0xff] %vm292, %v339
        %373 = vst.msk [vmem:[%s370 + $0x19] sm:$0xff] %vm292, %v340
        %374 = vst.msk [vmem:[%s370 + $0x21] sm:$0xff] %vm292, %v341
        %375 = vst.msk [vmem:[%s370 + $0x31] sm:$0xff] %vm292, %v342
        %376 = vst.msk [vmem:[%s370 + $0x39] sm:$0xff] %vm292, %v343
        %377 = vst.msk [vmem:[%s370 + $0x49] sm:$0xff] %vm292, %v344
        %378 = vst.msk [vmem:[%s370 + $0x51] sm:$0xff] %vm292, %v345
        %379 = vst.msk [vmem:[%s370 + $0x61] sm:$0xff] %vm292, %v346
        %380 = vst.msk [vmem:[%s370 + $0x69] sm:$0xff] %vm292, %v347
        %381 = vst.msk [vmem:[%s370 + $0x79] sm:$0xff] %vm292, %v348
        %382 = vst.msk [vmem:[%s370 + $0x81] sm:$0xff] %vm292, %v349
        %383 = vst.msk [vmem:[%s370 + $0x91] sm:$0xff] %vm292, %v350
        %384 = vst.msk [vmem:[%s370 + $0x99] sm:$0xff] %vm292, %v351
        %385 = vst.msk [vmem:[%s370 + $0xa9] sm:$0xff] %vm292, %v352
        %386 = vst.msk [vmem:[%s370 + $0xb1] sm:$0xff] %vm292, %v353
        %387 = vst.msk [vmem:[%s370 + $0xc1] sm:$0xff] %vm292, %v354
        %388 = vst.msk [vmem:[%s370 + $0xc9] sm:$0xff] %vm292, %v355
        %389 = vst.msk [vmem:[%s370 + $0xd9] sm:$0xff] %vm292, %v356
        %390 = vst.msk [vmem:[%s370 + $0xe1] sm:$0xff] %vm292, %v357
        %391 = vst.msk [vmem:[%s370 + $0xf1] sm:$0xff] %vm292, %v358
        %392 = vst.msk [vmem:[%s370 + $0xf9] sm:$0xff] %vm292, %v359
        %393 = vst.msk [vmem:[%s370 + $0x109] sm:$0xff] %vm292, %v360
        %394 = vst.msk [vmem:[%s370 + $0x111] sm:$0xff] %vm292, %v361
        %395 = vst.msk [vmem:[%s370 + $0x121] sm:$0xff] %vm292, %v362
        %396 = vst.msk [vmem:[%s370 + $0x129] sm:$0xff] %vm292, %v363
        %397 = vst.msk [vmem:[%s370 + $0x139] sm:$0xff] %vm292, %v364
        %398 = vst.msk [vmem:[%s370 + $0x141] sm:$0xff] %vm292, %v365
        %399 = vst.msk [vmem:[%s370 + $0x151] sm:$0xff] %vm292, %v366
        %400 = vst.msk [vmem:[%s370 + $0x159] sm:$0xff] %vm292, %v367
        %401 = vst.msk [vmem:[%s370 + $0x169] sm:$0xff] %vm292, %v368
        %402 = vst.msk [vmem:[%s370 + $0x171] sm:$0xff] %vm292, %v369
        %v403 = vld [vmem:[#allocation2] sm:$0xff]
        %v404 = vld [vmem:[#allocation2 + $0x8] sm:$0xff]
        %v405 = vld [vmem:[#allocation2 + $0x18] sm:$0xff]
        %v406 = vld [vmem:[#allocation2 + $0x20] sm:$0xff]
        %v407 = vld [vmem:[#allocation2 + $0x30] sm:$0xff]
        %v408 = vld [vmem:[#allocation2 + $0x38] sm:$0xff]
        %v409 = vld [vmem:[#allocation2 + $0x48] sm:$0xff]
        %v410 = vld [vmem:[#allocation2 + $0x50] sm:$0xff]
        %v411 = vld [vmem:[#allocation2 + $0x60] sm:$0xff]
        %v412 = vld [vmem:[#allocation2 + $0x68] sm:$0xff]
        %v413 = vld [vmem:[#allocation2 + $0x78] sm:$0xff]
        %v414 = vld [vmem:[#allocation2 + $0x80] sm:$0xff]
        %v415 = vld [vmem:[#allocation2 + $0x90] sm:$0xff]
        %v416 = vld [vmem:[#allocation2 + $0x98] sm:$0xff]
        %v417 = vld [vmem:[#allocation2 + $0xa8] sm:$0xff]
        %v418 = vld [vmem:[#allocation2 + $0xb0] sm:$0xff]
        %v419 = vld [vmem:[#allocation2 + $0xc0] sm:$0xff]
        %v420 = vld [vmem:[#allocation2 + $0xc8] sm:$0xff]
        %v421 = vld [vmem:[#allocation2 + $0xd8] sm:$0xff]
        %v422 = vld [vmem:[#allocation2 + $0xe0] sm:$0xff]
        %v423 = vld [vmem:[#allocation2 + $0xf0] sm:$0xff]
        %v424 = vld [vmem:[#allocation2 + $0xf8] sm:$0xff]
        %v425 = vld [vmem:[#allocation2 + $0x108] sm:$0xff]
        %v426 = vld [vmem:[#allocation2 + $0x110] sm:$0xff]
        %v427 = vld [vmem:[#allocation2 + $0x120] sm:$0xff]
        %v428 = vld [vmem:[#allocation2 + $0x128] sm:$0xff]
        %v429 = vld [vmem:[#allocation2 + $0x138] sm:$0xff]
        %v430 = vld [vmem:[#allocation2 + $0x140] sm:$0xff]
        %v431 = vld [vmem:[#allocation2 + $0x150] sm:$0xff]
        %v432 = vld [vmem:[#allocation2 + $0x158] sm:$0xff]
        %v433 = vld [vmem:[#allocation2 + $0x168] sm:$0xff]
        %v434 = vld [vmem:[#allocation2 + $0x170] sm:$0xff]
        %435 = vst.msk [vmem:[#allocation3] sm:$0xff] %vm292, %v403
        %436 = vst.msk [vmem:[#allocation3 + $0x8] sm:$0xff] %vm292, %v404
        %437 = vst.msk [vmem:[#allocation3 + $0x10] sm:$0xff] %vm292, %v405
        %438 = vst.msk [vmem:[#allocation3 + $0x18] sm:$0xff] %vm292, %v406
        %439 = vst.msk [vmem:[#allocation3 + $0x20] sm:$0xff] %vm292, %v407
        %440 = vst.msk [vmem:[#allocation3 + $0x28] sm:$0xff] %vm292, %v408
        %441 = vst.msk [vmem:[#allocation3 + $0x30] sm:$0xff] %vm292, %v409
        %442 = vst.msk [vmem:[#allocation3 + $0x38] sm:$0xff] %vm292, %v410
        %443 = vst.msk [vmem:[#allocation3 + $0x40] sm:$0xff] %vm292, %v411
        %444 = vst.msk [vmem:[#allocation3 + $0x48] sm:$0xff] %vm292, %v412
        %445 = vst.msk [vmem:[#allocation3 + $0x50] sm:$0xff] %vm292, %v413
        %446 = vst.msk [vmem:[#allocation3 + $0x58] sm:$0xff] %vm292, %v414
        %447 = vst.msk [vmem:[#allocation3 + $0x60] sm:$0xff] %vm292, %v415
        %448 = vst.msk [vmem:[#allocation3 + $0x68] sm:$0xff] %vm292, %v416
        %449 = vst.msk [vmem:[#allocation3 + $0x70] sm:$0xff] %vm292, %v417
        %450 = vst.msk [vmem:[#allocation3 + $0x78] sm:$0xff] %vm292, %v418
        %451 = vst.msk [vmem:[#allocation3 + $0x80] sm:$0xff] %vm292, %v419
        %452 = vst.msk [vmem:[#allocation3 + $0x88] sm:$0xff] %vm292, %v420
        %453 = vst.msk [vmem:[#allocation3 + $0x90] sm:$0xff] %vm292, %v421
        %454 = vst.msk [vmem:[#allocation3 + $0x98] sm:$0xff] %vm292, %v422
        %455 = vst.msk [vmem:[#allocation3 + $0xa0] sm:$0xff] %vm292, %v423
        %456 = vst.msk [vmem:[#allocation3 + $0xa8] sm:$0xff] %vm292, %v424
        %457 = vst.msk [vmem:[#allocation3 + $0xb0] sm:$0xff] %vm292, %v425
        %458 = vst.msk [vmem:[#allocation3 + $0xb8] sm:$0xff] %vm292, %v426
        %459 = vst.msk [vmem:[#allocation3 + $0xc0] sm:$0xff] %vm292, %v427
        %460 = vst.msk [vmem:[#allocation3 + $0xc8] sm:$0xff] %vm292, %v428
        %461 = vst.msk [vmem:[#allocation3 + $0xd0] sm:$0xff] %vm292, %v429
        %462 = vst.msk [vmem:[#allocation3 + $0xd8] sm:$0xff] %vm292, %v430
        %463 = vst.msk [vmem:[#allocation3 + $0xe0] sm:$0xff] %vm292, %v431
        %464 = vst.msk [vmem:[#allocation3 + $0xe8] sm:$0xff] %vm292, %v432
        %465 = vst.msk [vmem:[#allocation3 + $0xf0] sm:$0xff] %vm292, %v433
        %466 = vst.msk [vmem:[#allocation3 + $0xf8] sm:$0xff] %vm292, %v434
        %v467 = vld [vmem:[#allocation2 + $0x1] sm:$0xff]
        %v468 = vld [vmem:[#allocation2 + $0x9] sm:$0xff]
        %v469 = vld [vmem:[#allocation2 + $0x19] sm:$0xff]
        %v470 = vld [vmem:[#allocation2 + $0x21] sm:$0xff]
        %v471 = vld [vmem:[#allocation2 + $0x31] sm:$0xff]
        %v472 = vld [vmem:[#allocation2 + $0x39] sm:$0xff]
        %v473 = vld [vmem:[#allocation2 + $0x49] sm:$0xff]
        %v474 = vld [vmem:[#allocation2 + $0x51] sm:$0xff]
        %v475 = vld [vmem:[#allocation2 + $0x61] sm:$0xff]
        %v476 = vld [vmem:[#allocation2 + $0x69] sm:$0xff]
        %v477 = vld [vmem:[#allocation2 + $0x79] sm:$0xff]
        %v478 = vld [vmem:[#allocation2 + $0x81] sm:$0xff]
        %v479 = vld [vmem:[#allocation2 + $0x91] sm:$0xff]
        %v480 = vld [vmem:[#allocation2 + $0x99] sm:$0xff]
        %v481 = vld [vmem:[#allocation2 + $0xa9] sm:$0xff]
        %v482 = vld [vmem:[#allocation2 + $0xb1] sm:$0xff]
        %v483 = vld [vmem:[#allocation2 + $0xc1] sm:$0xff]
        %v484 = vld [vmem:[#allocation2 + $0xc9] sm:$0xff]
        %v485 = vld [vmem:[#allocation2 + $0xd9] sm:$0xff]
        %v486 = vld [vmem:[#allocation2 + $0xe1] sm:$0xff]
        %v487 = vld [vmem:[#allocation2 + $0xf1] sm:$0xff]
        %v488 = vld [vmem:[#allocation2 + $0xf9] sm:$0xff]
        %v489 = vld [vmem:[#allocation2 + $0x109] sm:$0xff]
        %v490 = vld [vmem:[#allocation2 + $0x111] sm:$0xff]
        %v491 = vld [vmem:[#allocation2 + $0x121] sm:$0xff]
        %v492 = vld [vmem:[#allocation2 + $0x129] sm:$0xff]
        %v493 = vld [vmem:[#allocation2 + $0x139] sm:$0xff]
        %v494 = vld [vmem:[#allocation2 + $0x141] sm:$0xff]
        %v495 = vld [vmem:[#allocation2 + $0x151] sm:$0xff]
        %v496 = vld [vmem:[#allocation2 + $0x159] sm:$0xff]
        %v497 = vld [vmem:[#allocation2 + $0x169] sm:$0xff]
        %v498 = vld [vmem:[#allocation2 + $0x171] sm:$0xff]
        %531 = vrot.lane.b32.xlu0 %v467, 4
        %v532 = vpop.permute.xlu0 %531
        %533 = vrot.lane.b32.xlu0 %v468, 4
        %v534 = vpop.permute.xlu0 %533
        %535 = vrot.lane.b32.xlu0 %v469, 4
        %v536 = vpop.permute.xlu0 %535
        %537 = vrot.lane.b32.xlu0 %v470, 4
        %v538 = vpop.permute.xlu0 %537
        %539 = vrot.lane.b32.xlu0 %v471, 4
        %v540 = vpop.permute.xlu0 %539
        %541 = vrot.lane.b32.xlu0 %v472, 4
        %v542 = vpop.permute.xlu0 %541
        %543 = vrot.lane.b32.xlu0 %v473, 4
        %v544 = vpop.permute.xlu0 %543
        %545 = vrot.lane.b32.xlu0 %v474, 4
        %v546 = vpop.permute.xlu0 %545
        %547 = vrot.lane.b32.xlu0 %v475, 4
        %v548 = vpop.permute.xlu0 %547
        %549 = vrot.lane.b32.xlu0 %v476, 4
        %v550 = vpop.permute.xlu0 %549
        %551 = vrot.lane.b32.xlu0 %v477, 4
        %v552 = vpop.permute.xlu0 %551
        %553 = vrot.lane.b32.xlu0 %v478, 4
        %v554 = vpop.permute.xlu0 %553
        %555 = vrot.lane.b32.xlu0 %v479, 4
        %v556 = vpop.permute.xlu0 %555
        %557 = vrot.lane.b32.xlu0 %v480, 4
        %v558 = vpop.permute.xlu0 %557
        %559 = vrot.lane.b32.xlu0 %v481, 4
        %v560 = vpop.permute.xlu0 %559
        %561 = vrot.lane.b32.xlu0 %v482, 4
        %v562 = vpop.permute.xlu0 %561
        %563 = vrot.lane.b32.xlu0 %v483, 4
        %v564 = vpop.permute.xlu0 %563
        %565 = vrot.lane.b32.xlu0 %v484, 4
        %v566 = vpop.permute.xlu0 %565
        %567 = vrot.lane.b32.xlu0 %v485, 4
        %v568 = vpop.permute.xlu0 %567
        %569 = vrot.lane.b32.xlu0 %v486, 4
        %v570 = vpop.permute.xlu0 %569
        %571 = vrot.lane.b32.xlu0 %v487, 4
        %v572 = vpop.permute.xlu0 %571
        %573 = vrot.lane.b32.xlu0 %v488, 4
        %v574 = vpop.permute.xlu0 %573
        %575 = vrot.lane.b32.xlu0 %v489, 4
        %v576 = vpop.permute.xlu0 %575
        %577 = vrot.lane.b32.xlu0 %v490, 4
        %v578 = vpop.permute.xlu0 %577
        %579 = vrot.lane.b32.xlu0 %v491, 4
        %v580 = vpop.permute.xlu0 %579
        %581 = vrot.lane.b32.xlu0 %v492, 4
        %v582 = vpop.permute.xlu0 %581
        %583 = vrot.lane.b32.xlu0 %v493, 4
        %v584 = vpop.permute.xlu0 %583
        %585 = vrot.lane.b32.xlu0 %v494, 4
        %v586 = vpop.permute.xlu0 %585
        %587 = vrot.lane.b32.xlu0 %v495, 4
        %v588 = vpop.permute.xlu0 %587
        %589 = vrot.lane.b32.xlu0 %v496, 4
        %v590 = vpop.permute.xlu0 %589
        %591 = vrot.lane.b32.xlu0 %v497, 4
        %v592 = vpop.permute.xlu0 %591
        %593 = vrot.lane.b32.xlu0 %v498, 4
        %v594 = vpop.permute.xlu0 %593
        %vm627 = vcmask 64544
        %628 = vst.msk [vmem:[#allocation3] sm:$0xff] %vm627, %v532
        %629 = vst.msk [vmem:[#allocation3 + $0x8] sm:$0xff] %vm627, %v534
        %630 = vst.msk [vmem:[#allocation3 + $0x10] sm:$0xff] %vm627, %v536
        %631 = vst.msk [vmem:[#allocation3 + $0x18] sm:$0xff] %vm627, %v538
        %632 = vst.msk [vmem:[#allocation3 + $0x20] sm:$0xff] %vm627, %v540
        %633 = vst.msk [vmem:[#allocation3 + $0x28] sm:$0xff] %vm627, %v542
        %634 = vst.msk [vmem:[#allocation3 + $0x30] sm:$0xff] %vm627, %v544
        %635 = vst.msk [vmem:[#allocation3 + $0x38] sm:$0xff] %vm627, %v546
        %636 = vst.msk [vmem:[#allocation3 + $0x40] sm:$0xff] %vm627, %v548
        %637 = vst.msk [vmem:[#allocation3 + $0x48] sm:$0xff] %vm627, %v550
        %638 = vst.msk [vmem:[#allocation3 + $0x50] sm:$0xff] %vm627, %v552
        %639 = vst.msk [vmem:[#allocation3 + $0x58] sm:$0xff] %vm627, %v554
        %640 = vst.msk [vmem:[#allocation3 + $0x60] sm:$0xff] %vm627, %v556
        %641 = vst.msk [vmem:[#allocation3 + $0x68] sm:$0xff] %vm627, %v558
        %642 = vst.msk [vmem:[#allocation3 + $0x70] sm:$0xff] %vm627, %v560
        %643 = vst.msk [vmem:[#allocation3 + $0x78] sm:$0xff] %vm627, %v562
        %644 = vst.msk [vmem:[#allocation3 + $0x80] sm:$0xff] %vm627, %v564
        %645 = vst.msk [vmem:[#allocation3 + $0x88] sm:$0xff] %vm627, %v566
        %646 = vst.msk [vmem:[#allocation3 + $0x90] sm:$0xff] %vm627, %v568
        %647 = vst.msk [vmem:[#allocation3 + $0x98] sm:$0xff] %vm627, %v570
        %648 = vst.msk [vmem:[#allocation3 + $0xa0] sm:$0xff] %vm627, %v572
        %649 = vst.msk [vmem:[#allocation3 + $0xa8] sm:$0xff] %vm627, %v574
        %650 = vst.msk [vmem:[#allocation3 + $0xb0] sm:$0xff] %vm627, %v576
        %651 = vst.msk [vmem:[#allocation3 + $0xb8] sm:$0xff] %vm627, %v578
        %652 = vst.msk [vmem:[#allocation3 + $0xc0] sm:$0xff] %vm627, %v580
        %653 = vst.msk [vmem:[#allocation3 + $0xc8] sm:$0xff] %vm627, %v582
        %654 = vst.msk [vmem:[#allocation3 + $0xd0] sm:$0xff] %vm627, %v584
        %655 = vst.msk [vmem:[#allocation3 + $0xd8] sm:$0xff] %vm627, %v586
        %656 = vst.msk [vmem:[#allocation3 + $0xe0] sm:$0xff] %vm627, %v588
        %657 = vst.msk [vmem:[#allocation3 + $0xe8] sm:$0xff] %vm627, %v590
        %658 = vst.msk [vmem:[#allocation3 + $0xf0] sm:$0xff] %vm627, %v592
        %659 = vst.msk [vmem:[#allocation3 + $0xf8] sm:$0xff] %vm627, %v594
        %v660 = vld [vmem:[#allocation2 + $0x2] sm:$0xff]
        %v661 = vld [vmem:[#allocation2 + $0xa] sm:$0xff]
        %v662 = vld [vmem:[#allocation2 + $0x1a] sm:$0xff]
        %v663 = vld [vmem:[#allocation2 + $0x22] sm:$0xff]
        %v664 = vld [vmem:[#allocation2 + $0x32] sm:$0xff]
        %v665 = vld [vmem:[#allocation2 + $0x3a] sm:$0xff]
        %v666 = vld [vmem:[#allocation2 + $0x4a] sm:$0xff]
        %v667 = vld [vmem:[#allocation2 + $0x52] sm:$0xff]
        %v668 = vld [vmem:[#allocation2 + $0x62] sm:$0xff]
        %v669 = vld [vmem:[#allocation2 + $0x6a] sm:$0xff]
        %v670 = vld [vmem:[#allocation2 + $0x7a] sm:$0xff]
        %v671 = vld [vmem:[#allocation2 + $0x82] sm:$0xff]
        %v672 = vld [vmem:[#allocation2 + $0x92] sm:$0xff]
        %v673 = vld [vmem:[#allocation2 + $0x9a] sm:$0xff]
        %v674 = vld [vmem:[#allocation2 + $0xaa] sm:$0xff]
        %v675 = vld [vmem:[#allocation2 + $0xb2] sm:$0xff]
        %v676 = vld [vmem:[#allocation2 + $0xc2] sm:$0xff]
        %v677 = vld [vmem:[#allocation2 + $0xca] sm:$0xff]
        %v678 = vld [vmem:[#allocation2 + $0xda] sm:$0xff]
        %v679 = vld [vmem:[#allocation2 + $0xe2] sm:$0xff]
        %v680 = vld [vmem:[#allocation2 + $0xf2] sm:$0xff]
        %v681 = vld [vmem:[#allocation2 + $0xfa] sm:$0xff]
        %v682 = vld [vmem:[#allocation2 + $0x10a] sm:$0xff]
        %v683 = vld [vmem:[#allocation2 + $0x112] sm:$0xff]
        %v684 = vld [vmem:[#allocation2 + $0x122] sm:$0xff]
        %v685 = vld [vmem:[#allocation2 + $0x12a] sm:$0xff]
        %v686 = vld [vmem:[#allocation2 + $0x13a] sm:$0xff]
        %v687 = vld [vmem:[#allocation2 + $0x142] sm:$0xff]
        %v688 = vld [vmem:[#allocation2 + $0x152] sm:$0xff]
        %v689 = vld [vmem:[#allocation2 + $0x15a] sm:$0xff]
        %v690 = vld [vmem:[#allocation2 + $0x16a] sm:$0xff]
        %v691 = vld [vmem:[#allocation2 + $0x172] sm:$0xff]
        %724 = vrot.lane.b32.xlu0 %v660, 8
        %v725 = vpop.permute.xlu0 %724
        %726 = vrot.lane.b32.xlu0 %v661, 8
        %v727 = vpop.permute.xlu0 %726
        %728 = vrot.lane.b32.xlu0 %v662, 8
        %v729 = vpop.permute.xlu0 %728
        %730 = vrot.lane.b32.xlu0 %v663, 8
        %v731 = vpop.permute.xlu0 %730
        %732 = vrot.lane.b32.xlu0 %v664, 8
        %v733 = vpop.permute.xlu0 %732
        %734 = vrot.lane.b32.xlu0 %v665, 8
        %v735 = vpop.permute.xlu0 %734
        %736 = vrot.lane.b32.xlu0 %v666, 8
        %v737 = vpop.permute.xlu0 %736
        %738 = vrot.lane.b32.xlu0 %v667, 8
        %v739 = vpop.permute.xlu0 %738
        %740 = vrot.lane.b32.xlu0 %v668, 8
        %v741 = vpop.permute.xlu0 %740
        %742 = vrot.lane.b32.xlu0 %v669, 8
        %v743 = vpop.permute.xlu0 %742
        %744 = vrot.lane.b32.xlu0 %v670, 8
        %v745 = vpop.permute.xlu0 %744
        %746 = vrot.lane.b32.xlu0 %v671, 8
        %v747 = vpop.permute.xlu0 %746
        %748 = vrot.lane.b32.xlu0 %v672, 8
        %v749 = vpop.permute.xlu0 %748
        %750 = vrot.lane.b32.xlu0 %v673, 8
        %v751 = vpop.permute.xlu0 %750
        %752 = vrot.lane.b32.xlu0 %v674, 8
        %v753 = vpop.permute.xlu0 %752
        %754 = vrot.lane.b32.xlu0 %v675, 8
        %v755 = vpop.permute.xlu0 %754
        %756 = vrot.lane.b32.xlu0 %v676, 8
        %v757 = vpop.permute.xlu0 %756
        %758 = vrot.lane.b32.xlu0 %v677, 8
        %v759 = vpop.permute.xlu0 %758
        %760 = vrot.lane.b32.xlu0 %v678, 8
        %v761 = vpop.permute.xlu0 %760
        %762 = vrot.lane.b32.xlu0 %v679, 8
        %v763 = vpop.permute.xlu0 %762
        %764 = vrot.lane.b32.xlu0 %v680, 8
        %v765 = vpop.permute.xlu0 %764
        %766 = vrot.lane.b32.xlu0 %v681, 8
        %v767 = vpop.permute.xlu0 %766
        %768 = vrot.lane.b32.xlu0 %v682, 8
        %v769 = vpop.permute.xlu0 %768
        %770 = vrot.lane.b32.xlu0 %v683, 8
        %v771 = vpop.permute.xlu0 %770
        %772 = vrot.lane.b32.xlu0 %v684, 8
        %v773 = vpop.permute.xlu0 %772
        %774 = vrot.lane.b32.xlu0 %v685, 8
        %v775 = vpop.permute.xlu0 %774
        %776 = vrot.lane.b32.xlu0 %v686, 8
        %v777 = vpop.permute.xlu0 %776
        %778 = vrot.lane.b32.xlu0 %v687, 8
        %v779 = vpop.permute.xlu0 %778
        %780 = vrot.lane.b32.xlu0 %v688, 8
        %v781 = vpop.permute.xlu0 %780
        %782 = vrot.lane.b32.xlu0 %v689, 8
        %v783 = vpop.permute.xlu0 %782
        %784 = vrot.lane.b32.xlu0 %v690, 8
        %v785 = vpop.permute.xlu0 %784
        %786 = vrot.lane.b32.xlu0 %v691, 8
        %v787 = vpop.permute.xlu0 %786
        %vm820 = vcmask 97344
        %821 = vst.msk [vmem:[#allocation3] sm:$0xff] %vm820, %v725
        %822 = vst.msk [vmem:[#allocation3 + $0x8] sm:$0xff] %vm820, %v727
        %823 = vst.msk [vmem:[#allocation3 + $0x10] sm:$0xff] %vm820, %v729
        %824 = vst.msk [vmem:[#allocation3 + $0x18] sm:$0xff] %vm820, %v731
        %825 = vst.msk [vmem:[#allocation3 + $0x20] sm:$0xff] %vm820, %v733
        %826 = vst.msk [vmem:[#allocation3 + $0x28] sm:$0xff] %vm820, %v735
        %827 = vst.msk [vmem:[#allocation3 + $0x30] sm:$0xff] %vm820, %v737
        %828 = vst.msk [vmem:[#allocation3 + $0x38] sm:$0xff] %vm820, %v739
        %829 = vst.msk [vmem:[#allocation3 + $0x40] sm:$0xff] %vm820, %v741
        %830 = vst.msk [vmem:[#allocation3 + $0x48] sm:$0xff] %vm820, %v743
        %831 = vst.msk [vmem:[#allocation3 + $0x50] sm:$0xff] %vm820, %v745
        %832 = vst.msk [vmem:[#allocation3 + $0x58] sm:$0xff] %vm820, %v747
        %833 = vst.msk [vmem:[#allocation3 + $0x60] sm:$0xff] %vm820, %v749
        %834 = vst.msk [vmem:[#allocation3 + $0x68] sm:$0xff] %vm820, %v751
        %835 = vst.msk [vmem:[#allocation3 + $0x70] sm:$0xff] %vm820, %v753
        %836 = vst.msk [vmem:[#allocation3 + $0x78] sm:$0xff] %vm820, %v755
        %837 = vst.msk [vmem:[#allocation3 + $0x80] sm:$0xff] %vm820, %v757
        %838 = vst.msk [vmem:[#allocation3 + $0x88] sm:$0xff] %vm820, %v759
        %839 = vst.msk [vmem:[#allocation3 + $0x90] sm:$0xff] %vm820, %v761
        %840 = vst.msk [vmem:[#allocation3 + $0x98] sm:$0xff] %vm820, %v763
        %841 = vst.msk [vmem:[#allocation3 + $0xa0] sm:$0xff] %vm820, %v765
        %842 = vst.msk [vmem:[#allocation3 + $0xa8] sm:$0xff] %vm820, %v767
        %843 = vst.msk [vmem:[#allocation3 + $0xb0] sm:$0xff] %vm820, %v769
        %844 = vst.msk [vmem:[#allocation3 + $0xb8] sm:$0xff] %vm820, %v771
        %845 = vst.msk [vmem:[#allocation3 + $0xc0] sm:$0xff] %vm820, %v773
        %846 = vst.msk [vmem:[#allocation3 + $0xc8] sm:$0xff] %vm820, %v775
        %847 = vst.msk [vmem:[#allocation3 + $0xd0] sm:$0xff] %vm820, %v777
        %848 = vst.msk [vmem:[#allocation3 + $0xd8] sm:$0xff] %vm820, %v779
        %849 = vst.msk [vmem:[#allocation3 + $0xe0] sm:$0xff] %vm820, %v781
        %850 = vst.msk [vmem:[#allocation3 + $0xe8] sm:$0xff] %vm820, %v783
        %851 = vst.msk [vmem:[#allocation3 + $0xf0] sm:$0xff] %vm820, %v785
        %852 = vst.msk [vmem:[#allocation3 + $0xf8] sm:$0xff] %vm820, %v787
        %v853 = vld [vmem:[%s370] sm:$0xff]
        %v854 = vld [vmem:[%s370 + $0x8] sm:$0xff]
        %v855 = vld [vmem:[%s370 + $0x18] sm:$0xff]
        %v856 = vld [vmem:[%s370 + $0x20] sm:$0xff]
        %v857 = vld [vmem:[%s370 + $0x30] sm:$0xff]
        %v858 = vld [vmem:[%s370 + $0x38] sm:$0xff]
        %v859 = vld [vmem:[%s370 + $0x48] sm:$0xff]
        %v860 = vld [vmem:[%s370 + $0x50] sm:$0xff]
        %v861 = vld [vmem:[%s370 + $0x60] sm:$0xff]
        %v862 = vld [vmem:[%s370 + $0x68] sm:$0xff]
        %v863 = vld [vmem:[%s370 + $0x78] sm:$0xff]
        %v864 = vld [vmem:[%s370 + $0x80] sm:$0xff]
        %v865 = vld [vmem:[%s370 + $0x90] sm:$0xff]
        %v866 = vld [vmem:[%s370 + $0x98] sm:$0xff]
        %v867 = vld [vmem:[%s370 + $0xa8] sm:$0xff]
        %v868 = vld [vmem:[%s370 + $0xb0] sm:$0xff]
        %v869 = vld [vmem:[%s370 + $0xc0] sm:$0xff]
        %v870 = vld [vmem:[%s370 + $0xc8] sm:$0xff]
        %v871 = vld [vmem:[%s370 + $0xd8] sm:$0xff]
        %v872 = vld [vmem:[%s370 + $0xe0] sm:$0xff]
        %v873 = vld [vmem:[%s370 + $0xf0] sm:$0xff]
        %v874 = vld [vmem:[%s370 + $0xf8] sm:$0xff]
        %v875 = vld [vmem:[%s370 + $0x108] sm:$0xff]
        %v876 = vld [vmem:[%s370 + $0x110] sm:$0xff]
        %v877 = vld [vmem:[%s370 + $0x120] sm:$0xff]
        %v878 = vld [vmem:[%s370 + $0x128] sm:$0xff]
        %v879 = vld [vmem:[%s370 + $0x138] sm:$0xff]
        %v880 = vld [vmem:[%s370 + $0x140] sm:$0xff]
        %v881 = vld [vmem:[%s370 + $0x150] sm:$0xff]
        %v882 = vld [vmem:[%s370 + $0x158] sm:$0xff]
        %v883 = vld [vmem:[%s370 + $0x168] sm:$0xff]
        %v884 = vld [vmem:[%s370 + $0x170] sm:$0xff]
        %917 = vrot.lane.b32.xlu0 %v853, 12
        %v918 = vpop.permute.xlu0 %917
        %919 = vrot.lane.b32.xlu0 %v854, 12
        %v920 = vpop.permute.xlu0 %919
        %921 = vrot.lane.b32.xlu0 %v855, 12
        %v922 = vpop.permute.xlu0 %921
        %923 = vrot.lane.b32.xlu0 %v856, 12
        %v924 = vpop.permute.xlu0 %923
        %925 = vrot.lane.b32.xlu0 %v857, 12
        %v926 = vpop.permute.xlu0 %925
        %927 = vrot.lane.b32.xlu0 %v858, 12
        %v928 = vpop.permute.xlu0 %927
        %929 = vrot.lane.b32.xlu0 %v859, 12
        %v930 = vpop.permute.xlu0 %929
        %931 = vrot.lane.b32.xlu0 %v860, 12
        %v932 = vpop.permute.xlu0 %931
        %933 = vrot.lane.b32.xlu0 %v861, 12
        %v934 = vpop.permute.xlu0 %933
        %935 = vrot.lane.b32.xlu0 %v862, 12
        %v936 = vpop.permute.xlu0 %935
        %937 = vrot.lane.b32.xlu0 %v863, 12
        %v938 = vpop.permute.xlu0 %937
        %939 = vrot.lane.b32.xlu0 %v864, 12
        %v940 = vpop.permute.xlu0 %939
        %941 = vrot.lane.b32.xlu0 %v865, 12
        %v942 = vpop.permute.xlu0 %941
        %943 = vrot.lane.b32.xlu0 %v866, 12
        %v944 = vpop.permute.xlu0 %943
        %945 = vrot.lane.b32.xlu0 %v867, 12
        %v946 = vpop.permute.xlu0 %945
        %947 = vrot.lane.b32.xlu0 %v868, 12
        %v948 = vpop.permute.xlu0 %947
        %949 = vrot.lane.b32.xlu0 %v869, 12
        %v950 = vpop.permute.xlu0 %949
        %951 = vrot.lane.b32.xlu0 %v870, 12
        %v952 = vpop.permute.xlu0 %951
        %953 = vrot.lane.b32.xlu0 %v871, 12
        %v954 = vpop.permute.xlu0 %953
        %955 = vrot.lane.b32.xlu0 %v872, 12
        %v956 = vpop.permute.xlu0 %955
        %957 = vrot.lane.b32.xlu0 %v873, 12
        %v958 = vpop.permute.xlu0 %957
        %959 = vrot.lane.b32.xlu0 %v874, 12
        %v960 = vpop.permute.xlu0 %959
        %961 = vrot.lane.b32.xlu0 %v875, 12
        %v962 = vpop.permute.xlu0 %961
        %963 = vrot.lane.b32.xlu0 %v876, 12
        %v964 = vpop.permute.xlu0 %963
        %965 = vrot.lane.b32.xlu0 %v877, 12
        %v966 = vpop.permute.xlu0 %965
        %967 = vrot.lane.b32.xlu0 %v878, 12
        %v968 = vpop.permute.xlu0 %967
        %969 = vrot.lane.b32.xlu0 %v879, 12
        %v970 = vpop.permute.xlu0 %969
        %971 = vrot.lane.b32.xlu0 %v880, 12
        %v972 = vpop.permute.xlu0 %971
        %973 = vrot.lane.b32.xlu0 %v881, 12
        %v974 = vpop.permute.xlu0 %973
        %975 = vrot.lane.b32.xlu0 %v882, 12
        %v976 = vpop.permute.xlu0 %975
        %977 = vrot.lane.b32.xlu0 %v883, 12
        %v978 = vpop.permute.xlu0 %977
        %979 = vrot.lane.b32.xlu0 %v884, 12
        %v980 = vpop.permute.xlu0 %979
        %vm1013 = vcmask 130144
        %1014 = vst.msk [vmem:[#allocation3] sm:$0xff] %vm1013, %v918
        %1015 = vst.msk [vmem:[#allocation3 + $0x8] sm:$0xff] %vm1013, %v920
        %1016 = vst.msk [vmem:[#allocation3 + $0x10] sm:$0xff] %vm1013, %v922
        %1017 = vst.msk [vmem:[#allocation3 + $0x18] sm:$0xff] %vm1013, %v924
        %1018 = vst.msk [vmem:[#allocation3 + $0x20] sm:$0xff] %vm1013, %v926
        %1019 = vst.msk [vmem:[#allocation3 + $0x28] sm:$0xff] %vm1013, %v928
        %1020 = vst.msk [vmem:[#allocation3 + $0x30] sm:$0xff] %vm1013, %v930
        %1021 = vst.msk [vmem:[#allocation3 + $0x38] sm:$0xff] %vm1013, %v932
        %1022 = vst.msk [vmem:[#allocation3 + $0x40] sm:$0xff] %vm1013, %v934
        %1023 = vst.msk [vmem:[#allocation3 + $0x48] sm:$0xff] %vm1013, %v936
        %1024 = vst.msk [vmem:[#allocation3 + $0x50] sm:$0xff] %vm1013, %v938
        %1025 = vst.msk [vmem:[#allocation3 + $0x58] sm:$0xff] %vm1013, %v940
        %1026 = vst.msk [vmem:[#allocation3 + $0x60] sm:$0xff] %vm1013, %v942
        %1027 = vst.msk [vmem:[#allocation3 + $0x68] sm:$0xff] %vm1013, %v944
        %1028 = vst.msk [vmem:[#allocation3 + $0x70] sm:$0xff] %vm1013, %v946
        %1029 = vst.msk [vmem:[#allocation3 + $0x78] sm:$0xff] %vm1013, %v948
        %1030 = vst.msk [vmem:[#allocation3 + $0x80] sm:$0xff] %vm1013, %v950
        %1031 = vst.msk [vmem:[#allocation3 + $0x88] sm:$0xff] %vm1013, %v952
        %1032 = vst.msk [vmem:[#allocation3 + $0x90] sm:$0xff] %vm1013, %v954
        %1033 = vst.msk [vmem:[#allocation3 + $0x98] sm:$0xff] %vm1013, %v956
        %1034 = vst.msk [vmem:[#allocation3 + $0xa0] sm:$0xff] %vm1013, %v958
        %1035 = vst.msk [vmem:[#allocation3 + $0xa8] sm:$0xff] %vm1013, %v960
        %1036 = vst.msk [vmem:[#allocation3 + $0xb0] sm:$0xff] %vm1013, %v962
        %1037 = vst.msk [vmem:[#allocation3 + $0xb8] sm:$0xff] %vm1013, %v964
        %1038 = vst.msk [vmem:[#allocation3 + $0xc0] sm:$0xff] %vm1013, %v966
        %1039 = vst.msk [vmem:[#allocation3 + $0xc8] sm:$0xff] %vm1013, %v968
        %1040 = vst.msk [vmem:[#allocation3 + $0xd0] sm:$0xff] %vm1013, %v970
        %1041 = vst.msk [vmem:[#allocation3 + $0xd8] sm:$0xff] %vm1013, %v972
        %1042 = vst.msk [vmem:[#allocation3 + $0xe0] sm:$0xff] %vm1013, %v974
        %1043 = vst.msk [vmem:[#allocation3 + $0xe8] sm:$0xff] %vm1013, %v976
        %1044 = vst.msk [vmem:[#allocation3 + $0xf0] sm:$0xff] %vm1013, %v978
        %1045 = vst.msk [vmem:[#allocation3 + $0xf8] sm:$0xff] %vm1013, %v980
        %v1046 = vld [vmem:[%s370 + $0x1] sm:$0xff]
        %v1047 = vld [vmem:[%s370 + $0x9] sm:$0xff]
        %v1048 = vld [vmem:[%s370 + $0x19] sm:$0xff]
        %v1049 = vld [vmem:[%s370 + $0x21] sm:$0xff]
        %v1050 = vld [vmem:[%s370 + $0x31] sm:$0xff]
        %v1051 = vld [vmem:[%s370 + $0x39] sm:$0xff]
        %v1052 = vld [vmem:[%s370 + $0x49] sm:$0xff]
        %v1053 = vld [vmem:[%s370 + $0x51] sm:$0xff]
        %v1054 = vld [vmem:[%s370 + $0x61] sm:$0xff]
        %v1055 = vld [vmem:[%s370 + $0x69] sm:$0xff]
        %v1056 = vld [vmem:[%s370 + $0x79] sm:$0xff]
        %v1057 = vld [vmem:[%s370 + $0x81] sm:$0xff]
        %v1058 = vld [vmem:[%s370 + $0x91] sm:$0xff]
        %v1059 = vld [vmem:[%s370 + $0x99] sm:$0xff]
        %v1060 = vld [vmem:[%s370 + $0xa9] sm:$0xff]
        %v1061 = vld [vmem:[%s370 + $0xb1] sm:$0xff]
        %v1062 = vld [vmem:[%s370 + $0xc1] sm:$0xff]
        %v1063 = vld [vmem:[%s370 + $0xc9] sm:$0xff]
        %v1064 = vld [vmem:[%s370 + $0xd9] sm:$0xff]
        %v1065 = vld [vmem:[%s370 + $0xe1] sm:$0xff]
        %v1066 = vld [vmem:[%s370 + $0xf1] sm:$0xff]
        %v1067 = vld [vmem:[%s370 + $0xf9] sm:$0xff]
        %v1068 = vld [vmem:[%s370 + $0x109] sm:$0xff]
        %v1069 = vld [vmem:[%s370 + $0x111] sm:$0xff]
        %v1070 = vld [vmem:[%s370 + $0x121] sm:$0xff]
        %v1071 = vld [vmem:[%s370 + $0x129] sm:$0xff]
        %v1072 = vld [vmem:[%s370 + $0x139] sm:$0xff]
        %v1073 = vld [vmem:[%s370 + $0x141] sm:$0xff]
        %v1074 = vld [vmem:[%s370 + $0x151] sm:$0xff]
        %v1075 = vld [vmem:[%s370 + $0x159] sm:$0xff]
        %v1076 = vld [vmem:[%s370 + $0x169] sm:$0xff]
        %v1077 = vld [vmem:[%s370 + $0x171] sm:$0xff]
        %1110 = vrot.lane.b32.xlu0 %v1046, 16
        %v1111 = vpop.permute.xlu0 %1110
        %1112 = vrot.lane.b32.xlu0 %v1047, 16
        %v1113 = vpop.permute.xlu0 %1112
        %1114 = vrot.lane.b32.xlu0 %v1048, 16
        %v1115 = vpop.permute.xlu0 %1114
        %1116 = vrot.lane.b32.xlu0 %v1049, 16
        %v1117 = vpop.permute.xlu0 %1116
        %1118 = vrot.lane.b32.xlu0 %v1050, 16
        %v1119 = vpop.permute.xlu0 %1118
        %1120 = vrot.lane.b32.xlu0 %v1051, 16
        %v1121 = vpop.permute.xlu0 %1120
        %1122 = vrot.lane.b32.xlu0 %v1052, 16
        %v1123 = vpop.permute.xlu0 %1122
        %1124 = vrot.lane.b32.xlu0 %v1053, 16
        %v1125 = vpop.permute.xlu0 %1124
        %1126 = vrot.lane.b32.xlu0 %v1054, 16
        %v1127 = vpop.permute.xlu0 %1126
        %1128 = vrot.lane.b32.xlu0 %v1055, 16
        %v1129 = vpop.permute.xlu0 %1128
        %1130 = vrot.lane.b32.xlu0 %v1056, 16
        %v1131 = vpop.permute.xlu0 %1130
        %1132 = vrot.lane.b32.xlu0 %v1057, 16
        %v1133 = vpop.permute.xlu0 %1132
        %1134 = vrot.lane.b32.xlu0 %v1058, 16
        %v1135 = vpop.permute.xlu0 %1134
        %1136 = vrot.lane.b32.xlu0 %v1059, 16
        %v1137 = vpop.permute.xlu0 %1136
        %1138 = vrot.lane.b32.xlu0 %v1060, 16
        %v1139 = vpop.permute.xlu0 %1138
        %1140 = vrot.lane.b32.xlu0 %v1061, 16
        %v1141 = vpop.permute.xlu0 %1140
        %1142 = vrot.lane.b32.xlu0 %v1062, 16
        %v1143 = vpop.permute.xlu0 %1142
        %1144 = vrot.lane.b32.xlu0 %v1063, 16
        %v1145 = vpop.permute.xlu0 %1144
        %1146 = vrot.lane.b32.xlu0 %v1064, 16
        %v1147 = vpop.permute.xlu0 %1146
        %1148 = vrot.lane.b32.xlu0 %v1065, 16
        %v1149 = vpop.permute.xlu0 %1148
        %1150 = vrot.lane.b32.xlu0 %v1066, 16
        %v1151 = vpop.permute.xlu0 %1150
        %1152 = vrot.lane.b32.xlu0 %v1067, 16
        %v1153 = vpop.permute.xlu0 %1152
        %1154 = vrot.lane.b32.xlu0 %v1068, 16
        %v1155 = vpop.permute.xlu0 %1154
        %1156 = vrot.lane.b32.xlu0 %v1069, 16
        %v1157 = vpop.permute.xlu0 %1156
        %1158 = vrot.lane.b32.xlu0 %v1070, 16
        %v1159 = vpop.permute.xlu0 %1158
        %1160 = vrot.lane.b32.xlu0 %v1071, 16
        %v1161 = vpop.permute.xlu0 %1160
        %1162 = vrot.lane.b32.xlu0 %v1072, 16
        %v1163 = vpop.permute.xlu0 %1162
        %1164 = vrot.lane.b32.xlu0 %v1073, 16
        %v1165 = vpop.permute.xlu0 %1164
        %1166 = vrot.lane.b32.xlu0 %v1074, 16
        %v1167 = vpop.permute.xlu0 %1166
        %1168 = vrot.lane.b32.xlu0 %v1075, 16
        %v1169 = vpop.permute.xlu0 %1168
        %1170 = vrot.lane.b32.xlu0 %v1076, 16
        %v1171 = vpop.permute.xlu0 %1170
        %1172 = vrot.lane.b32.xlu0 %v1077, 16
        %v1173 = vpop.permute.xlu0 %1172
        %vm1206 = vcmask 162944
        %1207 = vst.msk [vmem:[#allocation3] sm:$0xff] %vm1206, %v1111
        %1208 = vst.msk [vmem:[#allocation3 + $0x8] sm:$0xff] %vm1206, %v1113
        %1209 = vst.msk [vmem:[#allocation3 + $0x10] sm:$0xff] %vm1206, %v1115
        %1210 = vst.msk [vmem:[#allocation3 + $0x18] sm:$0xff] %vm1206, %v1117
        %1211 = vst.msk [vmem:[#allocation3 + $0x20] sm:$0xff] %vm1206, %v1119
        %1212 = vst.msk [vmem:[#allocation3 + $0x28] sm:$0xff] %vm1206, %v1121
        %1213 = vst.msk [vmem:[#allocation3 + $0x30] sm:$0xff] %vm1206, %v1123
        %1214 = vst.msk [vmem:[#allocation3 + $0x38] sm:$0xff] %vm1206, %v1125
        %1215 = vst.msk [vmem:[#allocation3 + $0x40] sm:$0xff] %vm1206, %v1127
        %1216 = vst.msk [vmem:[#allocation3 + $0x48] sm:$0xff] %vm1206, %v1129
        %1217 = vst.msk [vmem:[#allocation3 + $0x50] sm:$0xff] %vm1206, %v1131
        %1218 = vst.msk [vmem:[#allocation3 + $0x58] sm:$0xff] %vm1206, %v1133
        %1219 = vst.msk [vmem:[#allocation3 + $0x60] sm:$0xff] %vm1206, %v1135
        %1220 = vst.msk [vmem:[#allocation3 + $0x68] sm:$0xff] %vm1206, %v1137
        %1221 = vst.msk [vmem:[#allocation3 + $0x70] sm:$0xff] %vm1206, %v1139
        %1222 = vst.msk [vmem:[#allocation3 + $0x78] sm:$0xff] %vm1206, %v1141
        %1223 = vst.msk [vmem:[#allocation3 + $0x80] sm:$0xff] %vm1206, %v1143
        %1224 = vst.msk [vmem:[#allocation3 + $0x88] sm:$0xff] %vm1206, %v1145
        %1225 = vst.msk [vmem:[#allocation3 + $0x90] sm:$0xff] %vm1206, %v1147
        %1226 = vst.msk [vmem:[#allocation3 + $0x98] sm:$0xff] %vm1206, %v1149
        %1227 = vst.msk [vmem:[#allocation3 + $0xa0] sm:$0xff] %vm1206, %v1151
        %1228 = vst.msk [vmem:[#allocation3 + $0xa8] sm:$0xff] %vm1206, %v1153
        %1229 = vst.msk [vmem:[#allocation3 + $0xb0] sm:$0xff] %vm1206, %v1155
        %1230 = vst.msk [vmem:[#allocation3 + $0xb8] sm:$0xff] %vm1206, %v1157
        %1231 = vst.msk [vmem:[#allocation3 + $0xc0] sm:$0xff] %vm1206, %v1159
        %1232 = vst.msk [vmem:[#allocation3 + $0xc8] sm:$0xff] %vm1206, %v1161
        %1233 = vst.msk [vmem:[#allocation3 + $0xd0] sm:$0xff] %vm1206, %v1163
        %1234 = vst.msk [vmem:[#allocation3 + $0xd8] sm:$0xff] %vm1206, %v1165
        %1235 = vst.msk [vmem:[#allocation3 + $0xe0] sm:$0xff] %vm1206, %v1167
        %1236 = vst.msk [vmem:[#allocation3 + $0xe8] sm:$0xff] %vm1206, %v1169
        %1237 = vst.msk [vmem:[#allocation3 + $0xf0] sm:$0xff] %vm1206, %v1171
        %1238 = vst.msk [vmem:[#allocation3 + $0xf8] sm:$0xff] %vm1206, %v1173
        %v1239 = vld [vmem:[%s370 + $0x2] sm:$0xff]
        %v1240 = vld [vmem:[%s370 + $0xa] sm:$0xff]
        %v1241 = vld [vmem:[%s370 + $0x1a] sm:$0xff]
        %v1242 = vld [vmem:[%s370 + $0x22] sm:$0xff]
        %v1243 = vld [vmem:[%s370 + $0x32] sm:$0xff]
        %v1244 = vld [vmem:[%s370 + $0x3a] sm:$0xff]
        %v1245 = vld [vmem:[%s370 + $0x4a] sm:$0xff]
        %v1246 = vld [vmem:[%s370 + $0x52] sm:$0xff]
        %v1247 = vld [vmem:[%s370 + $0x62] sm:$0xff]
        %v1248 = vld [vmem:[%s370 + $0x6a] sm:$0xff]
        %v1249 = vld [vmem:[%s370 + $0x7a] sm:$0xff]
        %v1250 = vld [vmem:[%s370 + $0x82] sm:$0xff]
        %v1251 = vld [vmem:[%s370 + $0x92] sm:$0xff]
        %v1252 = vld [vmem:[%s370 + $0x9a] sm:$0xff]
        %v1253 = vld [vmem:[%s370 + $0xaa] sm:$0xff]
        %v1254 = vld [vmem:[%s370 + $0xb2] sm:$0xff]
        %v1255 = vld [vmem:[%s370 + $0xc2] sm:$0xff]
        %v1256 = vld [vmem:[%s370 + $0xca] sm:$0xff]
        %v1257 = vld [vmem:[%s370 + $0xda] sm:$0xff]
        %v1258 = vld [vmem:[%s370 + $0xe2] sm:$0xff]
        %v1259 = vld [vmem:[%s370 + $0xf2] sm:$0xff]
        %v1260 = vld [vmem:[%s370 + $0xfa] sm:$0xff]
        %v1261 = vld [vmem:[%s370 + $0x10a] sm:$0xff]
        %v1262 = vld [vmem:[%s370 + $0x112] sm:$0xff]
        %v1263 = vld [vmem:[%s370 + $0x122] sm:$0xff]
        %v1264 = vld [vmem:[%s370 + $0x12a] sm:$0xff]
        %v1265 = vld [vmem:[%s370 + $0x13a] sm:$0xff]
        %v1266 = vld [vmem:[%s370 + $0x142] sm:$0xff]
        %v1267 = vld [vmem:[%s370 + $0x152] sm:$0xff]
        %v1268 = vld [vmem:[%s370 + $0x15a] sm:$0xff]
        %v1269 = vld [vmem:[%s370 + $0x16a] sm:$0xff]
        %v1270 = vld [vmem:[%s370 + $0x172] sm:$0xff]
        %1303 = vrot.lane.b32.xlu0 %v1239, 20
        %v1304 = vpop.permute.xlu0 %1303
        %1305 = vrot.lane.b32.xlu0 %v1240, 20
        %v1306 = vpop.permute.xlu0 %1305
        %1307 = vrot.lane.b32.xlu0 %v1241, 20
        %v1308 = vpop.permute.xlu0 %1307
        %1309 = vrot.lane.b32.xlu0 %v1242, 20
        %v1310 = vpop.permute.xlu0 %1309
        %1311 = vrot.lane.b32.xlu0 %v1243, 20
        %v1312 = vpop.permute.xlu0 %1311
        %1313 = vrot.lane.b32.xlu0 %v1244, 20
        %v1314 = vpop.permute.xlu0 %1313
        %1315 = vrot.lane.b32.xlu0 %v1245, 20
        %v1316 = vpop.permute.xlu0 %1315
        %1317 = vrot.lane.b32.xlu0 %v1246, 20
        %v1318 = vpop.permute.xlu0 %1317
        %1319 = vrot.lane.b32.xlu0 %v1247, 20
        %v1320 = vpop.permute.xlu0 %1319
        %1321 = vrot.lane.b32.xlu0 %v1248, 20
        %v1322 = vpop.permute.xlu0 %1321
        %1323 = vrot.lane.b32.xlu0 %v1249, 20
        %v1324 = vpop.permute.xlu0 %1323
        %1325 = vrot.lane.b32.xlu0 %v1250, 20
        %v1326 = vpop.permute.xlu0 %1325
        %1327 = vrot.lane.b32.xlu0 %v1251, 20
        %v1328 = vpop.permute.xlu0 %1327
        %1329 = vrot.lane.b32.xlu0 %v1252, 20
        %v1330 = vpop.permute.xlu0 %1329
        %1331 = vrot.lane.b32.xlu0 %v1253, 20
        %v1332 = vpop.permute.xlu0 %1331
        %1333 = vrot.lane.b32.xlu0 %v1254, 20
        %v1334 = vpop.permute.xlu0 %1333
        %1335 = vrot.lane.b32.xlu0 %v1255, 20
        %v1336 = vpop.permute.xlu0 %1335
        %1337 = vrot.lane.b32.xlu0 %v1256, 20
        %v1338 = vpop.permute.xlu0 %1337
        %1339 = vrot.lane.b32.xlu0 %v1257, 20
        %v1340 = vpop.permute.xlu0 %1339
        %1341 = vrot.lane.b32.xlu0 %v1258, 20
        %v1342 = vpop.permute.xlu0 %1341
        %1343 = vrot.lane.b32.xlu0 %v1259, 20
        %v1344 = vpop.permute.xlu0 %1343
        %1345 = vrot.lane.b32.xlu0 %v1260, 20
        %v1346 = vpop.permute.xlu0 %1345
        %1347 = vrot.lane.b32.xlu0 %v1261, 20
        %v1348 = vpop.permute.xlu0 %1347
        %1349 = vrot.lane.b32.xlu0 %v1262, 20
        %v1350 = vpop.permute.xlu0 %1349
        %1351 = vrot.lane.b32.xlu0 %v1263, 20
        %v1352 = vpop.permute.xlu0 %1351
        %1353 = vrot.lane.b32.xlu0 %v1264, 20
        %v1354 = vpop.permute.xlu0 %1353
        %1355 = vrot.lane.b32.xlu0 %v1265, 20
        %v1356 = vpop.permute.xlu0 %1355
        %1357 = vrot.lane.b32.xlu0 %v1266, 20
        %v1358 = vpop.permute.xlu0 %1357
        %1359 = vrot.lane.b32.xlu0 %v1267, 20
        %v1360 = vpop.permute.xlu0 %1359
        %1361 = vrot.lane.b32.xlu0 %v1268, 20
        %v1362 = vpop.permute.xlu0 %1361
        %1363 = vrot.lane.b32.xlu0 %v1269, 20
        %v1364 = vpop.permute.xlu0 %1363
        %1365 = vrot.lane.b32.xlu0 %v1270, 20
        %v1366 = vpop.permute.xlu0 %1365
        %vm1399 = vcmask 195744
        %1400 = vst.msk [vmem:[#allocation3] sm:$0xff] %vm1399, %v1304
        %1401 = vst.msk [vmem:[#allocation3 + $0x8] sm:$0xff] %vm1399, %v1306
        %1402 = vst.msk [vmem:[#allocation3 + $0x10] sm:$0xff] %vm1399, %v1308
        %1403 = vst.msk [vmem:[#allocation3 + $0x18] sm:$0xff] %vm1399, %v1310
        %1404 = vst.msk [vmem:[#allocation3 + $0x20] sm:$0xff] %vm1399, %v1312
        %1405 = vst.msk [vmem:[#allocation3 + $0x28] sm:$0xff] %vm1399, %v1314
        %1406 = vst.msk [vmem:[#allocation3 + $0x30] sm:$0xff] %vm1399, %v1316
        %1407 = vst.msk [vmem:[#allocation3 + $0x38] sm:$0xff] %vm1399, %v1318
        %1408 = vst.msk [vmem:[#allocation3 + $0x40] sm:$0xff] %vm1399, %v1320
        %1409 = vst.msk [vmem:[#allocation3 + $0x48] sm:$0xff] %vm1399, %v1322
        %1410 = vst.msk [vmem:[#allocation3 + $0x50] sm:$0xff] %vm1399, %v1324
        %1411 = vst.msk [vmem:[#allocation3 + $0x58] sm:$0xff] %vm1399, %v1326
        %1412 = vst.msk [vmem:[#allocation3 + $0x60] sm:$0xff] %vm1399, %v1328
        %1413 = vst.msk [vmem:[#allocation3 + $0x68] sm:$0xff] %vm1399, %v1330
        %1414 = vst.msk [vmem:[#allocation3 + $0x70] sm:$0xff] %vm1399, %v1332
        %1415 = vst.msk [vmem:[#allocation3 + $0x78] sm:$0xff] %vm1399, %v1334
        %1416 = vst.msk [vmem:[#allocation3 + $0x80] sm:$0xff] %vm1399, %v1336
        %1417 = vst.msk [vmem:[#allocation3 + $0x88] sm:$0xff] %vm1399, %v1338
        %1418 = vst.msk [vmem:[#allocation3 + $0x90] sm:$0xff] %vm1399, %v1340
        %1419 = vst.msk [vmem:[#allocation3 + $0x98] sm:$0xff] %vm1399, %v1342
        %1420 = vst.msk [vmem:[#allocation3 + $0xa0] sm:$0xff] %vm1399, %v1344
        %1421 = vst.msk [vmem:[#allocation3 + $0xa8] sm:$0xff] %vm1399, %v1346
        %1422 = vst.msk [vmem:[#allocation3 + $0xb0] sm:$0xff] %vm1399, %v1348
        %1423 = vst.msk [vmem:[#allocation3 + $0xb8] sm:$0xff] %vm1399, %v1350
        %1424 = vst.msk [vmem:[#allocation3 + $0xc0] sm:$0xff] %vm1399, %v1352
        %1425 = vst.msk [vmem:[#allocation3 + $0xc8] sm:$0xff] %vm1399, %v1354
        %1426 = vst.msk [vmem:[#allocation3 + $0xd0] sm:$0xff] %vm1399, %v1356
        %1427 = vst.msk [vmem:[#allocation3 + $0xd8] sm:$0xff] %vm1399, %v1358
        %1428 = vst.msk [vmem:[#allocation3 + $0xe0] sm:$0xff] %vm1399, %v1360
        %1429 = vst.msk [vmem:[#allocation3 + $0xe8] sm:$0xff] %vm1399, %v1362
        %1430 = vst.msk [vmem:[#allocation3 + $0xf0] sm:$0xff] %vm1399, %v1364
        %1431 = vst.msk [vmem:[#allocation3 + $0xf8] sm:$0xff] %vm1399, %v1366
        %s1432 = scalar_lea.vmem [#allocation2], 48
        %v1433 = vld [vmem:[%s1432] sm:$0xff]
        %v1434 = vld [vmem:[%s1432 + $0x8] sm:$0xff]
        %v1435 = vld [vmem:[%s1432 + $0x18] sm:$0xff]
        %v1436 = vld [vmem:[%s1432 + $0x20] sm:$0xff]
        %v1437 = vld [vmem:[%s1432 + $0x30] sm:$0xff]
        %v1438 = vld [vmem:[%s1432 + $0x38] sm:$0xff]
        %v1439 = vld [vmem:[%s1432 + $0x48] sm:$0xff]
        %v1440 = vld [vmem:[%s1432 + $0x50] sm:$0xff]
        %v1441 = vld [vmem:[%s1432 + $0x60] sm:$0xff]
        %v1442 = vld [vmem:[%s1432 + $0x68] sm:$0xff]
        %v1443 = vld [vmem:[%s1432 + $0x78] sm:$0xff]
        %v1444 = vld [vmem:[%s1432 + $0x80] sm:$0xff]
        %v1445 = vld [vmem:[%s1432 + $0x90] sm:$0xff]
        %v1446 = vld [vmem:[%s1432 + $0x98] sm:$0xff]
        %v1447 = vld [vmem:[%s1432 + $0xa8] sm:$0xff]
        %v1448 = vld [vmem:[%s1432 + $0xb0] sm:$0xff]
        %v1449 = vld [vmem:[%s1432 + $0xc0] sm:$0xff]
        %v1450 = vld [vmem:[%s1432 + $0xc8] sm:$0xff]
        %v1451 = vld [vmem:[%s1432 + $0xd8] sm:$0xff]
        %v1452 = vld [vmem:[%s1432 + $0xe0] sm:$0xff]
        %v1453 = vld [vmem:[%s1432 + $0xf0] sm:$0xff]
        %v1454 = vld [vmem:[%s1432 + $0xf8] sm:$0xff]
        %v1455 = vld [vmem:[%s1432 + $0x108] sm:$0xff]
        %v1456 = vld [vmem:[%s1432 + $0x110] sm:$0xff]
        %v1457 = vld [vmem:[%s1432 + $0x120] sm:$0xff]
        %v1458 = vld [vmem:[%s1432 + $0x128] sm:$0xff]
        %v1459 = vld [vmem:[%s1432 + $0x138] sm:$0xff]
        %v1460 = vld [vmem:[%s1432 + $0x140] sm:$0xff]
        %v1461 = vld [vmem:[%s1432 + $0x150] sm:$0xff]
        %v1462 = vld [vmem:[%s1432 + $0x158] sm:$0xff]
        %v1463 = vld [vmem:[%s1432 + $0x168] sm:$0xff]
        %v1464 = vld [vmem:[%s1432 + $0x170] sm:$0xff]
        %1497 = vrot.lane.b32.xlu0 %v1433, 24
        %v1498 = vpop.permute.xlu0 %1497
        %1499 = vrot.lane.b32.xlu0 %v1434, 24
        %v1500 = vpop.permute.xlu0 %1499
        %1501 = vrot.lane.b32.xlu0 %v1435, 24
        %v1502 = vpop.permute.xlu0 %1501
        %1503 = vrot.lane.b32.xlu0 %v1436, 24
        %v1504 = vpop.permute.xlu0 %1503
        %1505 = vrot.lane.b32.xlu0 %v1437, 24
        %v1506 = vpop.permute.xlu0 %1505
        %1507 = vrot.lane.b32.xlu0 %v1438, 24
        %v1508 = vpop.permute.xlu0 %1507
        %1509 = vrot.lane.b32.xlu0 %v1439, 24
        %v1510 = vpop.permute.xlu0 %1509
        %1511 = vrot.lane.b32.xlu0 %v1440, 24
        %v1512 = vpop.permute.xlu0 %1511
        %1513 = vrot.lane.b32.xlu0 %v1441, 24
        %v1514 = vpop.permute.xlu0 %1513
        %1515 = vrot.lane.b32.xlu0 %v1442, 24
        %v1516 = vpop.permute.xlu0 %1515
        %1517 = vrot.lane.b32.xlu0 %v1443, 24
        %v1518 = vpop.permute.xlu0 %1517
        %1519 = vrot.lane.b32.xlu0 %v1444, 24
        %v1520 = vpop.permute.xlu0 %1519
        %1521 = vrot.lane.b32.xlu0 %v1445, 24
        %v1522 = vpop.permute.xlu0 %1521
        %1523 = vrot.lane.b32.xlu0 %v1446, 24
        %v1524 = vpop.permute.xlu0 %1523
        %1525 = vrot.lane.b32.xlu0 %v1447, 24
        %v1526 = vpop.permute.xlu0 %1525
        %1527 = vrot.lane.b32.xlu0 %v1448, 24
        %v1528 = vpop.permute.xlu0 %1527
        %1529 = vrot.lane.b32.xlu0 %v1449, 24
        %v1530 = vpop.permute.xlu0 %1529
        %1531 = vrot.lane.b32.xlu0 %v1450, 24
        %v1532 = vpop.permute.xlu0 %1531
        %1533 = vrot.lane.b32.xlu0 %v1451, 24
        %v1534 = vpop.permute.xlu0 %1533
        %1535 = vrot.lane.b32.xlu0 %v1452, 24
        %v1536 = vpop.permute.xlu0 %1535
        %1537 = vrot.lane.b32.xlu0 %v1453, 24
        %v1538 = vpop.permute.xlu0 %1537
        %1539 = vrot.lane.b32.xlu0 %v1454, 24
        %v1540 = vpop.permute.xlu0 %1539
        %1541 = vrot.lane.b32.xlu0 %v1455, 24
        %v1542 = vpop.permute.xlu0 %1541
        %1543 = vrot.lane.b32.xlu0 %v1456, 24
        %v1544 = vpop.permute.xlu0 %1543
        %1545 = vrot.lane.b32.xlu0 %v1457, 24
        %v1546 = vpop.permute.xlu0 %1545
        %1547 = vrot.lane.b32.xlu0 %v1458, 24
        %v1548 = vpop.permute.xlu0 %1547
        %1549 = vrot.lane.b32.xlu0 %v1459, 24
        %v1550 = vpop.permute.xlu0 %1549
        %1551 = vrot.lane.b32.xlu0 %v1460, 24
        %v1552 = vpop.permute.xlu0 %1551
        %1553 = vrot.lane.b32.xlu0 %v1461, 24
        %v1554 = vpop.permute.xlu0 %1553
        %1555 = vrot.lane.b32.xlu0 %v1462, 24
        %v1556 = vpop.permute.xlu0 %1555
        %1557 = vrot.lane.b32.xlu0 %v1463, 24
        %v1558 = vpop.permute.xlu0 %1557
        %1559 = vrot.lane.b32.xlu0 %v1464, 24
        %v1560 = vpop.permute.xlu0 %1559
        %vm1593 = vcmask 228544
        %1594 = vst.msk [vmem:[#allocation3] sm:$0xff] %vm1593, %v1498
        %1595 = vst.msk [vmem:[#allocation3 + $0x8] sm:$0xff] %vm1593, %v1500
        %1596 = vst.msk [vmem:[#allocation3 + $0x10] sm:$0xff] %vm1593, %v1502
        %1597 = vst.msk [vmem:[#allocation3 + $0x18] sm:$0xff] %vm1593, %v1504
        %1598 = vst.msk [vmem:[#allocation3 + $0x20] sm:$0xff] %vm1593, %v1506
        %1599 = vst.msk [vmem:[#allocation3 + $0x28] sm:$0xff] %vm1593, %v1508
        %1600 = vst.msk [vmem:[#allocation3 + $0x30] sm:$0xff] %vm1593, %v1510
        %1601 = vst.msk [vmem:[#allocation3 + $0x38] sm:$0xff] %vm1593, %v1512
        %1602 = vst.msk [vmem:[#allocation3 + $0x40] sm:$0xff] %vm1593, %v1514
        %1603 = vst.msk [vmem:[#allocation3 + $0x48] sm:$0xff] %vm1593, %v1516
        %1604 = vst.msk [vmem:[#allocation3 + $0x50] sm:$0xff] %vm1593, %v1518
        %1605 = vst.msk [vmem:[#allocation3 + $0x58] sm:$0xff] %vm1593, %v1520
        %1606 = vst.msk [vmem:[#allocation3 + $0x60] sm:$0xff] %vm1593, %v1522
        %1607 = vst.msk [vmem:[#allocation3 + $0x68] sm:$0xff] %vm1593, %v1524
        %1608 = vst.msk [vmem:[#allocation3 + $0x70] sm:$0xff] %vm1593, %v1526
        %1609 = vst.msk [vmem:[#allocation3 + $0x78] sm:$0xff] %vm1593, %v1528
        %1610 = vst.msk [vmem:[#allocation3 + $0x80] sm:$0xff] %vm1593, %v1530
        %1611 = vst.msk [vmem:[#allocation3 + $0x88] sm:$0xff] %vm1593, %v1532
        %1612 = vst.msk [vmem:[#allocation3 + $0x90] sm:$0xff] %vm1593, %v1534
        %1613 = vst.msk [vmem:[#allocation3 + $0x98] sm:$0xff] %vm1593, %v1536
        %1614 = vst.msk [vmem:[#allocation3 + $0xa0] sm:$0xff] %vm1593, %v1538
        %1615 = vst.msk [vmem:[#allocation3 + $0xa8] sm:$0xff] %vm1593, %v1540
        %1616 = vst.msk [vmem:[#allocation3 + $0xb0] sm:$0xff] %vm1593, %v1542
        %1617 = vst.msk [vmem:[#allocation3 + $0xb8] sm:$0xff] %vm1593, %v1544
        %1618 = vst.msk [vmem:[#allocation3 + $0xc0] sm:$0xff] %vm1593, %v1546
        %1619 = vst.msk [vmem:[#allocation3 + $0xc8] sm:$0xff] %vm1593, %v1548
        %1620 = vst.msk [vmem:[#allocation3 + $0xd0] sm:$0xff] %vm1593, %v1550
        %1621 = vst.msk [vmem:[#allocation3 + $0xd8] sm:$0xff] %vm1593, %v1552
        %1622 = vst.msk [vmem:[#allocation3 + $0xe0] sm:$0xff] %vm1593, %v1554
        %1623 = vst.msk [vmem:[#allocation3 + $0xe8] sm:$0xff] %vm1593, %v1556
        %1624 = vst.msk [vmem:[#allocation3 + $0xf0] sm:$0xff] %vm1593, %v1558
        %1625 = vst.msk [vmem:[#allocation3 + $0xf8] sm:$0xff] %vm1593, %v1560
        %v1626 = vld [vmem:[%s1432 + $0x1] sm:$0xff]
        %v1627 = vld [vmem:[%s1432 + $0x9] sm:$0xff]
        %v1628 = vld [vmem:[%s1432 + $0x19] sm:$0xff]
        %v1629 = vld [vmem:[%s1432 + $0x21] sm:$0xff]
        %v1630 = vld [vmem:[%s1432 + $0x31] sm:$0xff]
        %v1631 = vld [vmem:[%s1432 + $0x39] sm:$0xff]
        %v1632 = vld [vmem:[%s1432 + $0x49] sm:$0xff]
        %v1633 = vld [vmem:[%s1432 + $0x51] sm:$0xff]
        %v1634 = vld [vmem:[%s1432 + $0x61] sm:$0xff]
        %v1635 = vld [vmem:[%s1432 + $0x69] sm:$0xff]
        %v1636 = vld [vmem:[%s1432 + $0x79] sm:$0xff]
        %v1637 = vld [vmem:[%s1432 + $0x81] sm:$0xff]
        %v1638 = vld [vmem:[%s1432 + $0x91] sm:$0xff]
        %v1639 = vld [vmem:[%s1432 + $0x99] sm:$0xff]
        %v1640 = vld [vmem:[%s1432 + $0xa9] sm:$0xff]
        %v1641 = vld [vmem:[%s1432 + $0xb1] sm:$0xff]
        %v1642 = vld [vmem:[%s1432 + $0xc1] sm:$0xff]
        %v1643 = vld [vmem:[%s1432 + $0xc9] sm:$0xff]
        %v1644 = vld [vmem:[%s1432 + $0xd9] sm:$0xff]
        %v1645 = vld [vmem:[%s1432 + $0xe1] sm:$0xff]
        %v1646 = vld [vmem:[%s1432 + $0xf1] sm:$0xff]
        %v1647 = vld [vmem:[%s1432 + $0xf9] sm:$0xff]
        %v1648 = vld [vmem:[%s1432 + $0x109] sm:$0xff]
        %v1649 = vld [vmem:[%s1432 + $0x111] sm:$0xff]
        %v1650 = vld [vmem:[%s1432 + $0x121] sm:$0xff]
        %v1651 = vld [vmem:[%s1432 + $0x129] sm:$0xff]
        %v1652 = vld [vmem:[%s1432 + $0x139] sm:$0xff]
        %v1653 = vld [vmem:[%s1432 + $0x141] sm:$0xff]
        %v1654 = vld [vmem:[%s1432 + $0x151] sm:$0xff]
        %v1655 = vld [vmem:[%s1432 + $0x159] sm:$0xff]
        %v1656 = vld [vmem:[%s1432 + $0x169] sm:$0xff]
        %v1657 = vld [vmem:[%s1432 + $0x171] sm:$0xff]
        %1690 = vrot.lane.b32.xlu0 %v1626, 28
        %v1691 = vpop.permute.xlu0 %1690
        %1692 = vrot.lane.b32.xlu0 %v1627, 28
        %v1693 = vpop.permute.xlu0 %1692
        %1694 = vrot.lane.b32.xlu0 %v1628, 28
        %v1695 = vpop.permute.xlu0 %1694
        %1696 = vrot.lane.b32.xlu0 %v1629, 28
        %v1697 = vpop.permute.xlu0 %1696
        %1698 = vrot.lane.b32.xlu0 %v1630, 28
        %v1699 = vpop.permute.xlu0 %1698
        %1700 = vrot.lane.b32.xlu0 %v1631, 28
        %v1701 = vpop.permute.xlu0 %1700
        %1702 = vrot.lane.b32.xlu0 %v1632, 28
        %v1703 = vpop.permute.xlu0 %1702
        %1704 = vrot.lane.b32.xlu0 %v1633, 28
        %v1705 = vpop.permute.xlu0 %1704
        %1706 = vrot.lane.b32.xlu0 %v1634, 28
        %v1707 = vpop.permute.xlu0 %1706
        %1708 = vrot.lane.b32.xlu0 %v1635, 28
        %v1709 = vpop.permute.xlu0 %1708
        %1710 = vrot.lane.b32.xlu0 %v1636, 28
        %v1711 = vpop.permute.xlu0 %1710
        %1712 = vrot.lane.b32.xlu0 %v1637, 28
        %v1713 = vpop.permute.xlu0 %1712
        %1714 = vrot.lane.b32.xlu0 %v1638, 28
        %v1715 = vpop.permute.xlu0 %1714
        %1716 = vrot.lane.b32.xlu0 %v1639, 28
        %v1717 = vpop.permute.xlu0 %1716
        %1718 = vrot.lane.b32.xlu0 %v1640, 28
        %v1719 = vpop.permute.xlu0 %1718
        %1720 = vrot.lane.b32.xlu0 %v1641, 28
        %v1721 = vpop.permute.xlu0 %1720
        %1722 = vrot.lane.b32.xlu0 %v1642, 28
        %v1723 = vpop.permute.xlu0 %1722
        %1724 = vrot.lane.b32.xlu0 %v1643, 28
        %v1725 = vpop.permute.xlu0 %1724
        %1726 = vrot.lane.b32.xlu0 %v1644, 28
        %v1727 = vpop.permute.xlu0 %1726
        %1728 = vrot.lane.b32.xlu0 %v1645, 28
        %v1729 = vpop.permute.xlu0 %1728
        %1730 = vrot.lane.b32.xlu0 %v1646, 28
        %v1731 = vpop.permute.xlu0 %1730
        %1732 = vrot.lane.b32.xlu0 %v1647, 28
        %v1733 = vpop.permute.xlu0 %1732
        %1734 = vrot.lane.b32.xlu0 %v1648, 28
        %v1735 = vpop.permute.xlu0 %1734
        %1736 = vrot.lane.b32.xlu0 %v1649, 28
        %v1737 = vpop.permute.xlu0 %1736
        %1738 = vrot.lane.b32.xlu0 %v1650, 28
        %v1739 = vpop.permute.xlu0 %1738
        %1740 = vrot.lane.b32.xlu0 %v1651, 28
        %v1741 = vpop.permute.xlu0 %1740
        %1742 = vrot.lane.b32.xlu0 %v1652, 28
        %v1743 = vpop.permute.xlu0 %1742
        %1744 = vrot.lane.b32.xlu0 %v1653, 28
        %v1745 = vpop.permute.xlu0 %1744
        %1746 = vrot.lane.b32.xlu0 %v1654, 28
        %v1747 = vpop.permute.xlu0 %1746
        %1748 = vrot.lane.b32.xlu0 %v1655, 28
        %v1749 = vpop.permute.xlu0 %1748
        %1750 = vrot.lane.b32.xlu0 %v1656, 28
        %v1751 = vpop.permute.xlu0 %1750
        %1752 = vrot.lane.b32.xlu0 %v1657, 28
        %v1753 = vpop.permute.xlu0 %1752
        %vm1786 = vcmask 261344
        %1787 = vst.msk [vmem:[#allocation3] sm:$0xff] %vm1786, %v1691
        %1788 = vst.msk [vmem:[#allocation3 + $0x8] sm:$0xff] %vm1786, %v1693
        %1789 = vst.msk [vmem:[#allocation3 + $0x10] sm:$0xff] %vm1786, %v1695
        %1790 = vst.msk [vmem:[#allocation3 + $0x18] sm:$0xff] %vm1786, %v1697
        %1791 = vst.msk [vmem:[#allocation3 + $0x20] sm:$0xff] %vm1786, %v1699
        %1792 = vst.msk [vmem:[#allocation3 + $0x28] sm:$0xff] %vm1786, %v1701
        %1793 = vst.msk [vmem:[#allocation3 + $0x30] sm:$0xff] %vm1786, %v1703
        %1794 = vst.msk [vmem:[#allocation3 + $0x38] sm:$0xff] %vm1786, %v1705
        %1795 = vst.msk [vmem:[#allocation3 + $0x40] sm:$0xff] %vm1786, %v1707
        %1796 = vst.msk [vmem:[#allocation3 + $0x48] sm:$0xff] %vm1786, %v1709
        %1797 = vst.msk [vmem:[#allocation3 + $0x50] sm:$0xff] %vm1786, %v1711
        %1798 = vst.msk [vmem:[#allocation3 + $0x58] sm:$0xff] %vm1786, %v1713
        %1799 = vst.msk [vmem:[#allocation3 + $0x60] sm:$0xff] %vm1786, %v1715
        %1800 = vst.msk [vmem:[#allocation3 + $0x68] sm:$0xff] %vm1786, %v1717
        %1801 = vst.msk [vmem:[#allocation3 + $0x70] sm:$0xff] %vm1786, %v1719
        %1802 = vst.msk [vmem:[#allocation3 + $0x78] sm:$0xff] %vm1786, %v1721
        %1803 = vst.msk [vmem:[#allocation3 + $0x80] sm:$0xff] %vm1786, %v1723
        %1804 = vst.msk [vmem:[#allocation3 + $0x88] sm:$0xff] %vm1786, %v1725
        %1805 = vst.msk [vmem:[#allocation3 + $0x90] sm:$0xff] %vm1786, %v1727
        %1806 = vst.msk [vmem:[#allocation3 + $0x98] sm:$0xff] %vm1786, %v1729
        %1807 = vst.msk [vmem:[#allocation3 + $0xa0] sm:$0xff] %vm1786, %v1731
        %1808 = vst.msk [vmem:[#allocation3 + $0xa8] sm:$0xff] %vm1786, %v1733
        %1809 = vst.msk [vmem:[#allocation3 + $0xb0] sm:$0xff] %vm1786, %v1735
        %1810 = vst.msk [vmem:[#allocation3 + $0xb8] sm:$0xff] %vm1786, %v1737
        %1811 = vst.msk [vmem:[#allocation3 + $0xc0] sm:$0xff] %vm1786, %v1739
        %1812 = vst.msk [vmem:[#allocation3 + $0xc8] sm:$0xff] %vm1786, %v1741
        %1813 = vst.msk [vmem:[#allocation3 + $0xd0] sm:$0xff] %vm1786, %v1743
        %1814 = vst.msk [vmem:[#allocation3 + $0xd8] sm:$0xff] %vm1786, %v1745
        %1815 = vst.msk [vmem:[#allocation3 + $0xe0] sm:$0xff] %vm1786, %v1747
        %1816 = vst.msk [vmem:[#allocation3 + $0xe8] sm:$0xff] %vm1786, %v1749
        %1817 = vst.msk [vmem:[#allocation3 + $0xf0] sm:$0xff] %vm1786, %v1751
        %1818 = vst.msk [vmem:[#allocation3 + $0xf8] sm:$0xff] %vm1786, %v1753
        %v1819 = vld [vmem:[%s1432 + $0x2] sm:$0xff]
        %v1820 = vld [vmem:[%s1432 + $0xa] sm:$0xff]
        %v1821 = vld [vmem:[%s1432 + $0x1a] sm:$0xff]
        %v1822 = vld [vmem:[%s1432 + $0x22] sm:$0xff]
        %v1823 = vld [vmem:[%s1432 + $0x32] sm:$0xff]
        %v1824 = vld [vmem:[%s1432 + $0x3a] sm:$0xff]
        %v1825 = vld [vmem:[%s1432 + $0x4a] sm:$0xff]
        %v1826 = vld [vmem:[%s1432 + $0x52] sm:$0xff]
        %v1827 = vld [vmem:[%s1432 + $0x62] sm:$0xff]
        %v1828 = vld [vmem:[%s1432 + $0x6a] sm:$0xff]
        %v1829 = vld [vmem:[%s1432 + $0x7a] sm:$0xff]
        %v1830 = vld [vmem:[%s1432 + $0x82] sm:$0xff]
        %v1831 = vld [vmem:[%s1432 + $0x92] sm:$0xff]
        %v1832 = vld [vmem:[%s1432 + $0x9a] sm:$0xff]
        %v1833 = vld [vmem:[%s1432 + $0xaa] sm:$0xff]
        %v1834 = vld [vmem:[%s1432 + $0xb2] sm:$0xff]
        %v1835 = vld [vmem:[%s1432 + $0xc2] sm:$0xff]
        %v1836 = vld [vmem:[%s1432 + $0xca] sm:$0xff]
        %v1837 = vld [vmem:[%s1432 + $0xda] sm:$0xff]
        %v1838 = vld [vmem:[%s1432 + $0xe2] sm:$0xff]
        %v1839 = vld [vmem:[%s1432 + $0xf2] sm:$0xff]
        %v1840 = vld [vmem:[%s1432 + $0xfa] sm:$0xff]
        %v1841 = vld [vmem:[%s1432 + $0x10a] sm:$0xff]
        %v1842 = vld [vmem:[%s1432 + $0x112] sm:$0xff]
        %v1843 = vld [vmem:[%s1432 + $0x122] sm:$0xff]
        %v1844 = vld [vmem:[%s1432 + $0x12a] sm:$0xff]
        %v1845 = vld [vmem:[%s1432 + $0x13a] sm:$0xff]
        %v1846 = vld [vmem:[%s1432 + $0x142] sm:$0xff]
        %v1847 = vld [vmem:[%s1432 + $0x152] sm:$0xff]
        %v1848 = vld [vmem:[%s1432 + $0x15a] sm:$0xff]
        %v1849 = vld [vmem:[%s1432 + $0x16a] sm:$0xff]
        %v1850 = vld [vmem:[%s1432 + $0x172] sm:$0xff]
        %1883 = vrot.lane.b32.xlu0 %v1819, 32
        %v1884 = vpop.permute.xlu0 %1883
        %1885 = vrot.lane.b32.xlu0 %v1820, 32
        %v1886 = vpop.permute.xlu0 %1885
        %1887 = vrot.lane.b32.xlu0 %v1821, 32
        %v1888 = vpop.permute.xlu0 %1887
        %1889 = vrot.lane.b32.xlu0 %v1822, 32
        %v1890 = vpop.permute.xlu0 %1889
        %1891 = vrot.lane.b32.xlu0 %v1823, 32
        %v1892 = vpop.permute.xlu0 %1891
        %1893 = vrot.lane.b32.xlu0 %v1824, 32
        %v1894 = vpop.permute.xlu0 %1893
        %1895 = vrot.lane.b32.xlu0 %v1825, 32
        %v1896 = vpop.permute.xlu0 %1895
        %1897 = vrot.lane.b32.xlu0 %v1826, 32
        %v1898 = vpop.permute.xlu0 %1897
        %1899 = vrot.lane.b32.xlu0 %v1827, 32
        %v1900 = vpop.permute.xlu0 %1899
        %1901 = vrot.lane.b32.xlu0 %v1828, 32
        %v1902 = vpop.permute.xlu0 %1901
        %1903 = vrot.lane.b32.xlu0 %v1829, 32
        %v1904 = vpop.permute.xlu0 %1903
        %1905 = vrot.lane.b32.xlu0 %v1830, 32
        %v1906 = vpop.permute.xlu0 %1905
        %1907 = vrot.lane.b32.xlu0 %v1831, 32
        %v1908 = vpop.permute.xlu0 %1907
        %1909 = vrot.lane.b32.xlu0 %v1832, 32
        %v1910 = vpop.permute.xlu0 %1909
        %1911 = vrot.lane.b32.xlu0 %v1833, 32
        %v1912 = vpop.permute.xlu0 %1911
        %1913 = vrot.lane.b32.xlu0 %v1834, 32
        %v1914 = vpop.permute.xlu0 %1913
        %1915 = vrot.lane.b32.xlu0 %v1835, 32
        %v1916 = vpop.permute.xlu0 %1915
        %1917 = vrot.lane.b32.xlu0 %v1836, 32
        %v1918 = vpop.permute.xlu0 %1917
        %1919 = vrot.lane.b32.xlu0 %v1837, 32
        %v1920 = vpop.permute.xlu0 %1919
        %1921 = vrot.lane.b32.xlu0 %v1838, 32
        %v1922 = vpop.permute.xlu0 %1921
        %1923 = vrot.lane.b32.xlu0 %v1839, 32
        %v1924 = vpop.permute.xlu0 %1923
        %1925 = vrot.lane.b32.xlu0 %v1840, 32
        %v1926 = vpop.permute.xlu0 %1925
        %1927 = vrot.lane.b32.xlu0 %v1841, 32
        %v1928 = vpop.permute.xlu0 %1927
        %1929 = vrot.lane.b32.xlu0 %v1842, 32
        %v1930 = vpop.permute.xlu0 %1929
        %1931 = vrot.lane.b32.xlu0 %v1843, 32
        %v1932 = vpop.permute.xlu0 %1931
        %1933 = vrot.lane.b32.xlu0 %v1844, 32
        %v1934 = vpop.permute.xlu0 %1933
        %1935 = vrot.lane.b32.xlu0 %v1845, 32
        %v1936 = vpop.permute.xlu0 %1935
        %1937 = vrot.lane.b32.xlu0 %v1846, 32
        %v1938 = vpop.permute.xlu0 %1937
        %1939 = vrot.lane.b32.xlu0 %v1847, 32
        %v1940 = vpop.permute.xlu0 %1939
        %1941 = vrot.lane.b32.xlu0 %v1848, 32
        %v1942 = vpop.permute.xlu0 %1941
        %1943 = vrot.lane.b32.xlu0 %v1849, 32
        %v1944 = vpop.permute.xlu0 %1943
        %1945 = vrot.lane.b32.xlu0 %v1850, 32
        %v1946 = vpop.permute.xlu0 %1945
        %vm1979 = vcmask 294144
        %1980 = vst.msk [vmem:[#allocation3] sm:$0xff] %vm1979, %v1884
        %1981 = vst.msk [vmem:[#allocation3 + $0x8] sm:$0xff] %vm1979, %v1886
        %1982 = vst.msk [vmem:[#allocation3 + $0x10] sm:$0xff] %vm1979, %v1888
        %1983 = vst.msk [vmem:[#allocation3 + $0x18] sm:$0xff] %vm1979, %v1890
        %1984 = vst.msk [vmem:[#allocation3 + $0x20] sm:$0xff] %vm1979, %v1892
        %1985 = vst.msk [vmem:[#allocation3 + $0x28] sm:$0xff] %vm1979, %v1894
        %1986 = vst.msk [vmem:[#allocation3 + $0x30] sm:$0xff] %vm1979, %v1896
        %1987 = vst.msk [vmem:[#allocation3 + $0x38] sm:$0xff] %vm1979, %v1898
        %1988 = vst.msk [vmem:[#allocation3 + $0x40] sm:$0xff] %vm1979, %v1900
        %1989 = vst.msk [vmem:[#allocation3 + $0x48] sm:$0xff] %vm1979, %v1902
        %1990 = vst.msk [vmem:[#allocation3 + $0x50] sm:$0xff] %vm1979, %v1904
        %1991 = vst.msk [vmem:[#allocation3 + $0x58] sm:$0xff] %vm1979, %v1906
        %1992 = vst.msk [vmem:[#allocation3 + $0x60] sm:$0xff] %vm1979, %v1908
        %1993 = vst.msk [vmem:[#allocation3 + $0x68] sm:$0xff] %vm1979, %v1910
        %1994 = vst.msk [vmem:[#allocation3 + $0x70] sm:$0xff] %vm1979, %v1912
        %1995 = vst.msk [vmem:[#allocation3 + $0x78] sm:$0xff] %vm1979, %v1914
        %1996 = vst.msk [vmem:[#allocation3 + $0x80] sm:$0xff] %vm1979, %v1916
        %1997 = vst.msk [vmem:[#allocation3 + $0x88] sm:$0xff] %vm1979, %v1918
        %1998 = vst.msk [vmem:[#allocation3 + $0x90] sm:$0xff] %vm1979, %v1920
        %1999 = vst.msk [vmem:[#allocation3 + $0x98] sm:$0xff] %vm1979, %v1922
        %2000 = vst.msk [vmem:[#allocation3 + $0xa0] sm:$0xff] %vm1979, %v1924
        %2001 = vst.msk [vmem:[#allocation3 + $0xa8] sm:$0xff] %vm1979, %v1926
        %2002 = vst.msk [vmem:[#allocation3 + $0xb0] sm:$0xff] %vm1979, %v1928
        %2003 = vst.msk [vmem:[#allocation3 + $0xb8] sm:$0xff] %vm1979, %v1930
        %2004 = vst.msk [vmem:[#allocation3 + $0xc0] sm:$0xff] %vm1979, %v1932
        %2005 = vst.msk [vmem:[#allocation3 + $0xc8] sm:$0xff] %vm1979, %v1934
        %2006 = vst.msk [vmem:[#allocation3 + $0xd0] sm:$0xff] %vm1979, %v1936
        %2007 = vst.msk [vmem:[#allocation3 + $0xd8] sm:$0xff] %vm1979, %v1938
        %2008 = vst.msk [vmem:[#allocation3 + $0xe0] sm:$0xff] %vm1979, %v1940
        %2009 = vst.msk [vmem:[#allocation3 + $0xe8] sm:$0xff] %vm1979, %v1942
        %2010 = vst.msk [vmem:[#allocation3 + $0xf0] sm:$0xff] %vm1979, %v1944
        %2011 = vst.msk [vmem:[#allocation3 + $0xf8] sm:$0xff] %vm1979, %v1946
        %v2012 = vld [vmem:[#allocation3] sm:$0xff]
        %v2013 = vld [vmem:[#allocation3 + $0x8] sm:$0xff]
        %v2014 = vld [vmem:[#allocation3 + $0x10] sm:$0xff]
        %v2015 = vld [vmem:[#allocation3 + $0x18] sm:$0xff]
        %v2016 = vld [vmem:[#allocation3 + $0x20] sm:$0xff]
        %v2017 = vld [vmem:[#allocation3 + $0x28] sm:$0xff]
        %v2018 = vld [vmem:[#allocation3 + $0x30] sm:$0xff]
        %v2019 = vld [vmem:[#allocation3 + $0x38] sm:$0xff]
        %v2020 = vld [vmem:[#allocation3 + $0x40] sm:$0xff]
        %v2021 = vld [vmem:[#allocation3 + $0x48] sm:$0xff]
        %v2022 = vld [vmem:[#allocation3 + $0x50] sm:$0xff]
        %v2023 = vld [vmem:[#allocation3 + $0x58] sm:$0xff]
        %v2024 = vld [vmem:[#allocation3 + $0x60] sm:$0xff]
        %v2025 = vld [vmem:[#allocation3 + $0x68] sm:$0xff]
        %v2026 = vld [vmem:[#allocation3 + $0x70] sm:$0xff]
        %v2027 = vld [vmem:[#allocation3 + $0x78] sm:$0xff]
        %v2028 = vld [vmem:[#allocation3 + $0x80] sm:$0xff]
        %v2029 = vld [vmem:[#allocation3 + $0x88] sm:$0xff]
        %v2030 = vld [vmem:[#allocation3 + $0x90] sm:$0xff]
        %v2031 = vld [vmem:[#allocation3 + $0x98] sm:$0xff]
        %v2032 = vld [vmem:[#allocation3 + $0xa0] sm:$0xff]
        %v2033 = vld [vmem:[#allocation3 + $0xa8] sm:$0xff]
        %v2034 = vld [vmem:[#allocation3 + $0xb0] sm:$0xff]
        %v2035 = vld [vmem:[#allocation3 + $0xb8] sm:$0xff]
        %v2036 = vld [vmem:[#allocation3 + $0xc0] sm:$0xff]
        %v2037 = vld [vmem:[#allocation3 + $0xc8] sm:$0xff]
        %v2038 = vld [vmem:[#allocation3 + $0xd0] sm:$0xff]
        %v2039 = vld [vmem:[#allocation3 + $0xd8] sm:$0xff]
        %v2040 = vld [vmem:[#allocation3 + $0xe0] sm:$0xff]
        %v2041 = vld [vmem:[#allocation3 + $0xe8] sm:$0xff]
        %v2042 = vld [vmem:[#allocation3 + $0xf0] sm:$0xff]
        %v2043 = vld [vmem:[#allocation3 + $0xf8] sm:$0xff]
        %v2044 = vld [vmem:[%s1] sm:$0xff]
        %v2045 = vld [vmem:[%s1 + $0x8] sm:$0xff]
        %v2046 = vld [vmem:[%s1 + $0x10] sm:$0xff]
        %v2047 = vld [vmem:[%s1 + $0x18] sm:$0xff]
        %v2048 = vld [vmem:[%s1 + $0x20] sm:$0xf]
        %v2049 = vld [vmem:[%s2] sm:$0x1]
        %v2051 = vlaneseq
        %v2052 = vshrl.u32 %v2051, 7
        %v2053 = vsub.s32 0, %v2052
        %v2054 = vrot.slane %v2049, %v2053
        %vm2056 = vcmask 293888
        %v2058 = vsel %vm2056, %v2012, 0
        %v2061 = vsel %vm2056, %v2013, 0
        %v2064 = vsel %vm2056, %v2014, 0
        %v2067 = vsel %vm2056, %v2015, 0
        %v2070 = vsel %vm2056, %v2016, 0
        %v2073 = vsel %vm2056, %v2017, 0
        %v2076 = vsel %vm2056, %v2018, 0
        %v2079 = vsel %vm2056, %v2019, 0
        %v2082 = vsel %vm2056, %v2020, 0
        %v2085 = vsel %vm2056, %v2021, 0
        %v2088 = vsel %vm2056, %v2022, 0
        %v2091 = vsel %vm2056, %v2023, 0
        %v2094 = vsel %vm2056, %v2024, 0
        %v2097 = vsel %vm2056, %v2025, 0
        %v2100 = vsel %vm2056, %v2026, 0
        %v2103 = vsel %vm2056, %v2027, 0
        %v2106 = vsel %vm2056, %v2028, 0
        %v2109 = vsel %vm2056, %v2029, 0
        %v2112 = vsel %vm2056, %v2030, 0
        %v2115 = vsel %vm2056, %v2031, 0
        %v2118 = vsel %vm2056, %v2032, 0
        %v2121 = vsel %vm2056, %v2033, 0
        %v2124 = vsel %vm2056, %v2034, 0
        %v2127 = vsel %vm2056, %v2035, 0
        %v2130 = vsel %vm2056, %v2036, 0
        %v2133 = vsel %vm2056, %v2037, 0
        %v2136 = vsel %vm2056, %v2038, 0
        %v2139 = vsel %vm2056, %v2039, 0
        %v2142 = vsel %vm2056, %v2040, 0
        %v2145 = vsel %vm2056, %v2041, 0
        %v2148 = vsel %vm2056, %v2042, 0
        %v2151 = vsel %vm2056, %v2043, 0
        %vm2153 = vcmask 1043456
        %v2155 = vsel %vm2153, %v2048, 0
        %2157 = vmatprep.subr.mxu0 0.0
        %2158 = vmatpush1.msra.mxu0 %v2044
        %2159 = vmatprep.subr.mxu0 0.0
        %2160 = vmatpush1.msra.mxu0 %v2045
        %2161 = vmatprep.subr.mxu0 0.0
        %2162 = vmatpush1.msra.mxu0 %v2046
        %2163 = vmatprep.subr.mxu0 0.0
        %2164 = vmatpush1.msra.mxu0 %v2047
        %2165 = vmatprep.subr.mxu0 0.0
        %2166 = vmatpush1.msra.mxu0 %v2155
        %2167 = vmatprep.subr.mxu0 0.0
        %2168 = vmatpush1.msra.mxu0 0.0
        %2169 = vmatprep.subr.mxu0 0.0
        %2170 = vmatpush1.msra.mxu0 0.0
        %2171 = vmatprep.subr.mxu0 0.0
        %2172 = vmatpush1.msra.mxu0 0.0
        %2173 = vmatprep.subr.mxu0 0.0
        %2174 = vmatpush1.msra.mxu0 0.0
        %2175 = vmatprep.subr.mxu0 0.0
        %2176 = vmatpush1.msra.mxu0 0.0
        %2177 = vmatprep.subr.mxu0 0.0
        %2178 = vmatpush1.msra.mxu0 0.0
        %2179 = vmatprep.subr.mxu0 0.0
        %2180 = vmatpush1.msra.mxu0 0.0
        %2181 = vmatprep.subr.mxu0 0.0
        %2182 = vmatpush1.msra.mxu0 0.0
        %2183 = vmatprep.subr.mxu0 0.0
        %2184 = vmatpush1.msra.mxu0 0.0
        %2185 = vmatprep.subr.mxu0 0.0
        %2186 = vmatpush1.msra.mxu0 0.0
        %2187 = vmatprep.subr.mxu0 0.0
        %2188 = vmatpush1.msra.mxu0 0.0
        %2189 = vmatprep.subr.mxu0 0.0
        %2190 = vmatpush1.msra.mxu0 0.0
        %2191 = vmatprep.subr.mxu0 0.0
        %2192 = vmatpush1.msra.mxu0 0.0
        %2193 = vmatprep.subr.mxu0 0.0
        %2194 = vmatpush1.msra.mxu0 0.0
        %2195 = vmatprep.subr.mxu0 0.0
        %2196 = vmatpush1.msra.mxu0 0.0
        %2197 = vmatprep.subr.mxu0 0.0
        %2198 = vmatpush1.msra.mxu0 0.0
        %2199 = vmatprep.subr.mxu0 0.0
        %2200 = vmatpush1.msra.mxu0 0.0
        %2201 = vmatprep.subr.mxu0 0.0
        %2202 = vmatpush1.msra.mxu0 0.0
        %2203 = vmatprep.subr.mxu0 0.0
        %2204 = vmatpush1.msra.mxu0 0.0
        %2205 = vmatprep.subr.mxu0 0.0
        %2206 = vmatpush1.msra.mxu0 0.0
        %2207 = vmatprep.subr.mxu0 0.0
        %2208 = vmatpush1.msra.mxu0 0.0
        %2209 = vmatprep.subr.mxu0 0.0
        %2210 = vmatpush1.msra.mxu0 0.0
        %2211 = vmatprep.subr.mxu0 0.0
        %2212 = vmatpush1.msra.mxu0 0.0
        %2213 = vmatprep.subr.mxu0 0.0
        %2214 = vmatpush1.msra.mxu0 0.0
        %2215 = vmatprep.subr.mxu0 0.0
        %2216 = vmatpush1.msra.mxu0 0.0
        %2217 = vmatprep.subr.mxu0 0.0
        %2218 = vmatpush1.msra.mxu0 0.0
        %2219 = vmatprep.subr.mxu0 0.0
        %2220 = vmatpush1.msra.mxu0 0.0
        %2221 = vmatprep.mubr.f32.mxu0 0.0
        %2222 = vmatmul.mubr.f32.gmra.mrb[0].mxu0 %v2058
        %v2223 = vpop.f32.mrb[0].mxu0
        %v2224 = vadd.f32 %v2054, %v2223
        %v2225 = vpop.f32.mrb[0].mxu0
        %2226 = vmatprep.mubr.f32.mxu0 0.0
        %2227 = vmatmul.mubr.f32.gmra.mrb[0].mxu0 %v2061
        %v2228 = vpop.f32.mrb[0].mxu0
        %v2229 = vadd.f32 %v2054, %v2228
        %v2230 = vpop.f32.mrb[0].mxu0
        %2231 = vmatprep.mubr.f32.mxu0 0.0
        %2232 = vmatmul.mubr.f32.gmra.mrb[0].mxu0 %v2064
        %v2233 = vpop.f32.mrb[0].mxu0
        %v2234 = vadd.f32 %v2054, %v2233
        %v2235 = vpop.f32.mrb[0].mxu0
        %2236 = vmatprep.mubr.f32.mxu0 0.0
        %2237 = vmatmul.mubr.f32.gmra.mrb[0].mxu0 %v2067
        %v2238 = vpop.f32.mrb[0].mxu0
        %v2239 = vadd.f32 %v2054, %v2238
        %v2240 = vpop.f32.mrb[0].mxu0
        %2241 = vmatprep.mubr.f32.mxu0 0.0
        %2242 = vmatmul.mubr.f32.gmra.mrb[0].mxu0 %v2070
        %v2243 = vpop.f32.mrb[0].mxu0
        %v2244 = vadd.f32 %v2054, %v2243
        %v2245 = vpop.f32.mrb[0].mxu0
        %2246 = vmatprep.mubr.f32.mxu0 0.0
        %2247 = vmatmul.mubr.f32.gmra.mrb[0].mxu0 %v2073
        %v2248 = vpop.f32.mrb[0].mxu0
        %v2249 = vadd.f32 %v2054, %v2248
        %v2250 = vpop.f32.mrb[0].mxu0
        %2251 = vmatprep.mubr.f32.mxu0 0.0
        %2252 = vmatmul.mubr.f32.gmra.mrb[0].mxu0 %v2076
        %v2253 = vpop.f32.mrb[0].mxu0
        %v2254 = vadd.f32 %v2054, %v2253
        %v2255 = vpop.f32.mrb[0].mxu0
        %2256 = vmatprep.mubr.f32.mxu0 0.0
        %2257 = vmatmul.mubr.f32.gmra.mrb[0].mxu0 %v2079
        %v2258 = vpop.f32.mrb[0].mxu0
        %v2259 = vadd.f32 %v2054, %v2258
        %v2260 = vpop.f32.mrb[0].mxu0
        %2261 = vmatprep.mubr.f32.mxu0 0.0
        %2262 = vmatmul.mubr.f32.gmra.mrb[0].mxu0 %v2082
        %v2263 = vpop.f32.mrb[0].mxu0
        %v2264 = vadd.f32 %v2054, %v2263
        %v2265 = vpop.f32.mrb[0].mxu0
        %2266 = vmatprep.mubr.f32.mxu0 0.0
        %2267 = vmatmul.mubr.f32.gmra.mrb[0].mxu0 %v2085
        %v2268 = vpop.f32.mrb[0].mxu0
        %v2269 = vadd.f32 %v2054, %v2268
        %v2270 = vpop.f32.mrb[0].mxu0
        %2271 = vmatprep.mubr.f32.mxu0 0.0
        %2272 = vmatmul.mubr.f32.gmra.mrb[0].mxu0 %v2088
        %v2273 = vpop.f32.mrb[0].mxu0
        %v2274 = vadd.f32 %v2054, %v2273
        %v2275 = vpop.f32.mrb[0].mxu0
        %2276 = vmatprep.mubr.f32.mxu0 0.0
        %2277 = vmatmul.mubr.f32.gmra.mrb[0].mxu0 %v2091
        %v2278 = vpop.f32.mrb[0].mxu0
        %v2279 = vadd.f32 %v2054, %v2278
        %v2280 = vpop.f32.mrb[0].mxu0
        %2281 = vmatprep.mubr.f32.mxu0 0.0
        %2282 = vmatmul.mubr.f32.gmra.mrb[0].mxu0 %v2094
        %v2283 = vpop.f32.mrb[0].mxu0
        %v2284 = vadd.f32 %v2054, %v2283
        %v2285 = vpop.f32.mrb[0].mxu0
        %2286 = vmatprep.mubr.f32.mxu0 0.0
        %2287 = vmatmul.mubr.f32.gmra.mrb[0].mxu0 %v2097
        %v2288 = vpop.f32.mrb[0].mxu0
        %v2289 = vadd.f32 %v2054, %v2288
        %v2290 = vpop.f32.mrb[0].mxu0
        %2291 = vmatprep.mubr.f32.mxu0 0.0
        %2292 = vmatmul.mubr.f32.gmra.mrb[0].mxu0 %v2100
        %v2293 = vpop.f32.mrb[0].mxu0
        %v2294 = vadd.f32 %v2054, %v2293
        %v2295 = vpop.f32.mrb[0].mxu0
        %2296 = vmatprep.mubr.f32.mxu0 0.0
        %2297 = vmatmul.mubr.f32.gmra.mrb[0].mxu0 %v2103
        %v2298 = vpop.f32.mrb[0].mxu0
        %v2299 = vadd.f32 %v2054, %v2298
        %v2300 = vpop.f32.mrb[0].mxu0
        %2301 = vmatprep.mubr.f32.mxu0 0.0
        %2302 = vmatmul.mubr.f32.gmra.mrb[0].mxu0 %v2106
        %v2303 = vpop.f32.mrb[0].mxu0
        %v2304 = vadd.f32 %v2054, %v2303
        %v2305 = vpop.f32.mrb[0].mxu0
        %2306 = vmatprep.mubr.f32.mxu0 0.0
        %2307 = vmatmul.mubr.f32.gmra.mrb[0].mxu0 %v2109
        %v2308 = vpop.f32.mrb[0].mxu0
        %v2309 = vadd.f32 %v2054, %v2308
        %v2310 = vpop.f32.mrb[0].mxu0
        %2311 = vmatprep.mubr.f32.mxu0 0.0
        %2312 = vmatmul.mubr.f32.gmra.mrb[0].mxu0 %v2112
        %v2313 = vpop.f32.mrb[0].mxu0
        %v2314 = vadd.f32 %v2054, %v2313
        %v2315 = vpop.f32.mrb[0].mxu0
        %2316 = vmatprep.mubr.f32.mxu0 0.0
        %2317 = vmatmul.mubr.f32.gmra.mrb[0].mxu0 %v2115
        %v2318 = vpop.f32.mrb[0].mxu0
        %v2319 = vadd.f32 %v2054, %v2318
        %v2320 = vpop.f32.mrb[0].mxu0
        %2321 = vmatprep.mubr.f32.mxu0 0.0
        %2322 = vmatmul.mubr.f32.gmra.mrb[0].mxu0 %v2118
        %v2323 = vpop.f32.mrb[0].mxu0
        %v2324 = vadd.f32 %v2054, %v2323
        %v2325 = vpop.f32.mrb[0].mxu0
        %2326 = vmatprep.mubr.f32.mxu0 0.0
        %2327 = vmatmul.mubr.f32.gmra.mrb[0].mxu0 %v2121
        %v2328 = vpop.f32.mrb[0].mxu0
        %v2329 = vadd.f32 %v2054, %v2328
        %v2330 = vpop.f32.mrb[0].mxu0
        %2331 = vmatprep.mubr.f32.mxu0 0.0
        %2332 = vmatmul.mubr.f32.gmra.mrb[0].mxu0 %v2124
        %v2333 = vpop.f32.mrb[0].mxu0
        %v2334 = vadd.f32 %v2054, %v2333
        %v2335 = vpop.f32.mrb[0].mxu0
        %2336 = vmatprep.mubr.f32.mxu0 0.0
        %2337 = vmatmul.mubr.f32.gmra.mrb[0].mxu0 %v2127
        %v2338 = vpop.f32.mrb[0].mxu0
        %v2339 = vadd.f32 %v2054, %v2338
        %v2340 = vpop.f32.mrb[0].mxu0
        %2341 = vmatprep.mubr.f32.mxu0 0.0
        %2342 = vmatmul.mubr.f32.gmra.mrb[0].mxu0 %v2130
        %v2343 = vpop.f32.mrb[0].mxu0
        %v2344 = vadd.f32 %v2054, %v2343
        %v2345 = vpop.f32.mrb[0].mxu0
        %2346 = vmatprep.mubr.f32.mxu0 0.0
        %2347 = vmatmul.mubr.f32.gmra.mrb[0].mxu0 %v2133
        %v2348 = vpop.f32.mrb[0].mxu0
        %v2349 = vadd.f32 %v2054, %v2348
        %v2350 = vpop.f32.mrb[0].mxu0
        %2351 = vmatprep.mubr.f32.mxu0 0.0
        %2352 = vmatmul.mubr.f32.gmra.mrb[0].mxu0 %v2136
        %v2353 = vpop.f32.mrb[0].mxu0
        %v2354 = vadd.f32 %v2054, %v2353
        %v2355 = vpop.f32.mrb[0].mxu0
        %2356 = vmatprep.mubr.f32.mxu0 0.0
        %2357 = vmatmul.mubr.f32.gmra.mrb[0].mxu0 %v2139
        %v2358 = vpop.f32.mrb[0].mxu0
        %v2359 = vadd.f32 %v2054, %v2358
        %v2360 = vpop.f32.mrb[0].mxu0
        %2361 = vmatprep.mubr.f32.mxu0 0.0
        %2362 = vmatmul.mubr.f32.gmra.mrb[0].mxu0 %v2142
        %v2363 = vpop.f32.mrb[0].mxu0
        %v2364 = vadd.f32 %v2054, %v2363
        %v2365 = vpop.f32.mrb[0].mxu0
        %2366 = vmatprep.mubr.f32.mxu0 0.0
        %2367 = vmatmul.mubr.f32.gmra.mrb[0].mxu0 %v2145
        %v2368 = vpop.f32.mrb[0].mxu0
        %v2369 = vadd.f32 %v2054, %v2368
        %v2370 = vpop.f32.mrb[0].mxu0
        %2371 = vmatprep.mubr.f32.mxu0 0.0
        %2372 = vmatmul.mubr.f32.gmra.mrb[0].mxu0 %v2148
        %v2373 = vpop.f32.mrb[0].mxu0
        %v2374 = vadd.f32 %v2054, %v2373
        %v2375 = vpop.f32.mrb[0].mxu0
        %2376 = vmatprep.mubr.f32.mxu0 0.0
        %2377 = vmatmul.mubr.f32.gmra.mrb[0].mxu0 %v2151
        %v2378 = vpop.f32.mrb[0].mxu0
        %v2379 = vadd.f32 %v2054, %v2378
        %v2380 = vpop.f32.mrb[0].mxu0
        %2381 = vdwg.mxu0
        %vm2382 = vcmp.gt.f32.partialorder %v2224, 0.0
        %vm2383 = vcmp.gt.f32.partialorder %v2229, 0.0
        %vm2384 = vcmp.gt.f32.partialorder %v2234, 0.0
        %vm2385 = vcmp.gt.f32.partialorder %v2239, 0.0
        %vm2386 = vcmp.gt.f32.partialorder %v2244, 0.0
        %vm2387 = vcmp.gt.f32.partialorder %v2249, 0.0
        %vm2388 = vcmp.gt.f32.partialorder %v2254, 0.0
        %vm2389 = vcmp.gt.f32.partialorder %v2259, 0.0
        %vm2390 = vcmp.gt.f32.partialorder %v2264, 0.0
        %vm2391 = vcmp.gt.f32.partialorder %v2269, 0.0
        %vm2392 = vcmp.gt.f32.partialorder %v2274, 0.0
        %vm2393 = vcmp.gt.f32.partialorder %v2279, 0.0
        %vm2394 = vcmp.gt.f32.partialorder %v2284, 0.0
        %vm2395 = vcmp.gt.f32.partialorder %v2289, 0.0
        %vm2396 = vcmp.gt.f32.partialorder %v2294, 0.0
        %vm2397 = vcmp.gt.f32.partialorder %v2299, 0.0
        %vm2398 = vcmp.gt.f32.partialorder %v2304, 0.0
        %vm2399 = vcmp.gt.f32.partialorder %v2309, 0.0
        %vm2400 = vcmp.gt.f32.partialorder %v2314, 0.0
        %vm2401 = vcmp.gt.f32.partialorder %v2319, 0.0
        %vm2402 = vcmp.gt.f32.partialorder %v2324, 0.0
        %vm2403 = vcmp.gt.f32.partialorder %v2329, 0.0
        %vm2404 = vcmp.gt.f32.partialorder %v2334, 0.0
        %vm2405 = vcmp.gt.f32.partialorder %v2339, 0.0
        %vm2406 = vcmp.gt.f32.partialorder %v2344, 0.0
        %vm2407 = vcmp.gt.f32.partialorder %v2349, 0.0
        %vm2408 = vcmp.gt.f32.partialorder %v2354, 0.0
        %vm2409 = vcmp.gt.f32.partialorder %v2359, 0.0
        %vm2410 = vcmp.gt.f32.partialorder %v2364, 0.0
        %vm2411 = vcmp.gt.f32.partialorder %v2369, 0.0
        %vm2412 = vcmp.gt.f32.partialorder %v2374, 0.0
        %vm2413 = vcmp.gt.f32.partialorder %v2379, 0.0
        %v2414 = vld [vmem:[%s3] sm:$0x1]
        %v2416 = vlaneseq
        %v2417 = vshrl.u32 %v2416, 7
        %v2418 = vsub.s32 0, %v2417
        %v2419 = vrot.slane %v2414, %v2418
        %v2421 = vmul.f32 %v2419, %v2224
        %v2422 = vmul.f32 %v2419, %v2229
        %v2423 = vmul.f32 %v2419, %v2234
        %v2424 = vmul.f32 %v2419, %v2239
        %v2425 = vmul.f32 %v2419, %v2244
        %v2426 = vmul.f32 %v2419, %v2249
        %v2427 = vmul.f32 %v2419, %v2254
        %v2428 = vmul.f32 %v2419, %v2259
        %v2429 = vmul.f32 %v2419, %v2264
        %v2430 = vmul.f32 %v2419, %v2269
        %v2431 = vmul.f32 %v2419, %v2274
        %v2432 = vmul.f32 %v2419, %v2279
        %v2433 = vmul.f32 %v2419, %v2284
        %v2434 = vmul.f32 %v2419, %v2289
        %v2435 = vmul.f32 %v2419, %v2294
        %v2436 = vmul.f32 %v2419, %v2299
        %v2437 = vmul.f32 %v2419, %v2304
        %v2438 = vmul.f32 %v2419, %v2309
        %v2439 = vmul.f32 %v2419, %v2314
        %v2440 = vmul.f32 %v2419, %v2319
        %v2441 = vmul.f32 %v2419, %v2324
        %v2442 = vmul.f32 %v2419, %v2329
        %v2443 = vmul.f32 %v2419, %v2334
        %v2444 = vmul.f32 %v2419, %v2339
        %v2445 = vmul.f32 %v2419, %v2344
        %v2446 = vmul.f32 %v2419, %v2349
        %v2447 = vmul.f32 %v2419, %v2354
        %v2448 = vmul.f32 %v2419, %v2359
        %v2449 = vmul.f32 %v2419, %v2364
        %v2450 = vmul.f32 %v2419, %v2369
        %v2451 = vmul.f32 %v2419, %v2374
        %v2452 = vmul.f32 %v2419, %v2379
        %v2453 = vsel %vm2382, %v2224, %v2421
        %v2454 = vsel %vm2383, %v2229, %v2422
        %v2455 = vsel %vm2384, %v2234, %v2423
        %v2456 = vsel %vm2385, %v2239, %v2424
        %v2457 = vsel %vm2386, %v2244, %v2425
        %v2458 = vsel %vm2387, %v2249, %v2426
        %v2459 = vsel %vm2388, %v2254, %v2427
        %v2460 = vsel %vm2389, %v2259, %v2428
        %v2461 = vsel %vm2390, %v2264, %v2429
        %v2462 = vsel %vm2391, %v2269, %v2430
        %v2463 = vsel %vm2392, %v2274, %v2431
        %v2464 = vsel %vm2393, %v2279, %v2432
        %v2465 = vsel %vm2394, %v2284, %v2433
        %v2466 = vsel %vm2395, %v2289, %v2434
        %v2467 = vsel %vm2396, %v2294, %v2435
        %v2468 = vsel %vm2397, %v2299, %v2436
        %v2469 = vsel %vm2398, %v2304, %v2437
        %v2470 = vsel %vm2399, %v2309, %v2438
        %v2471 = vsel %vm2400, %v2314, %v2439
        %v2472 = vsel %vm2401, %v2319, %v2440
        %v2473 = vsel %vm2402, %v2324, %v2441
        %v2474 = vsel %vm2403, %v2329, %v2442
        %v2475 = vsel %vm2404, %v2334, %v2443
        %v2476 = vsel %vm2405, %v2339, %v2444
        %v2477 = vsel %vm2406, %v2344, %v2445
        %v2478 = vsel %vm2407, %v2349, %v2446
        %v2479 = vsel %vm2408, %v2354, %v2447
        %v2480 = vsel %vm2409, %v2359, %v2448
        %v2481 = vsel %vm2410, %v2364, %v2449
        %v2482 = vsel %vm2411, %v2369, %v2450
        %v2483 = vsel %vm2412, %v2374, %v2451
        %v2484 = vsel %vm2413, %v2379, %v2452
        %2485 = vst [vmem:[#allocation4] sm:$0xff] 0.0
        %2486 = vst [vmem:[#allocation4 + $0x8] sm:$0xff] 0.0
        %2487 = vst [vmem:[#allocation4 + $0x10] sm:$0x3] 0.0
        %s2488 = scalar_lea.vmem [#allocation4], 408
        %2489 = vst [vmem:[%s2488] sm:$0xff] 0.0
        %2490 = vst [vmem:[%s2488 + $0x8] sm:$0xff] 0.0
        %2491 = vst [vmem:[%s2488 + $0x10] sm:$0x3] 0.0
        %2492 = vst [vmem:[#allocation4] sm:$0x1] 0.0
        %2493 = vst [vmem:[#allocation4 + $0x18] sm:$0x1] 0.0
        %2494 = vst [vmem:[#allocation4 + $0x30] sm:$0x1] 0.0
        %2495 = vst [vmem:[#allocation4 + $0x48] sm:$0x1] 0.0
        %2496 = vst [vmem:[#allocation4 + $0x60] sm:$0x1] 0.0
        %2497 = vst [vmem:[#allocation4 + $0x78] sm:$0x1] 0.0
        %2498 = vst [vmem:[#allocation4 + $0x90] sm:$0x1] 0.0
        %2499 = vst [vmem:[#allocation4 + $0xa8] sm:$0x1] 0.0
        %2500 = vst [vmem:[#allocation4 + $0xc0] sm:$0x1] 0.0
        %2501 = vst [vmem:[#allocation4 + $0xd8] sm:$0x1] 0.0
        %2502 = vst [vmem:[#allocation4 + $0xf0] sm:$0x1] 0.0
        %2503 = vst [vmem:[#allocation4 + $0x108] sm:$0x1] 0.0
        %2504 = vst [vmem:[#allocation4 + $0x120] sm:$0x1] 0.0
        %2505 = vst [vmem:[#allocation4 + $0x138] sm:$0x1] 0.0
        %2506 = vst [vmem:[#allocation4 + $0x150] sm:$0x1] 0.0
        %2507 = vst [vmem:[#allocation4 + $0x168] sm:$0x1] 0.0
        %2508 = vst [vmem:[#allocation4 + $0x180] sm:$0x1] 0.0
        %2509 = vst [vmem:[#allocation4 + $0x198] sm:$0x1] 0.0
        %2510 = vst [vmem:[#allocation4 + $0x11] sm:$0x1] 0.0
        %2511 = vst [vmem:[#allocation4 + $0x29] sm:$0x1] 0.0
        %2512 = vst [vmem:[#allocation4 + $0x41] sm:$0x1] 0.0
        %2513 = vst [vmem:[#allocation4 + $0x59] sm:$0x1] 0.0
        %2514 = vst [vmem:[#allocation4 + $0x71] sm:$0x1] 0.0
        %2515 = vst [vmem:[#allocation4 + $0x89] sm:$0x1] 0.0
        %2516 = vst [vmem:[#allocation4 + $0xa1] sm:$0x1] 0.0
        %2517 = vst [vmem:[#allocation4 + $0xb9] sm:$0x1] 0.0
        %2518 = vst [vmem:[#allocation4 + $0xd1] sm:$0x1] 0.0
        %2519 = vst [vmem:[#allocation4 + $0xe9] sm:$0x1] 0.0
        %2520 = vst [vmem:[#allocation4 + $0x101] sm:$0x1] 0.0
        %2521 = vst [vmem:[#allocation4 + $0x119] sm:$0x1] 0.0
        %2522 = vst [vmem:[#allocation4 + $0x131] sm:$0x1] 0.0
        %2523 = vst [vmem:[#allocation4 + $0x149] sm:$0x1] 0.0
        %2524 = vst [vmem:[#allocation4 + $0x161] sm:$0x1] 0.0
        %2525 = vst [vmem:[#allocation4 + $0x179] sm:$0x1] 0.0
        %2526 = vst [vmem:[#allocation4 + $0x191] sm:$0x1] 0.0
        %2527 = vst [vmem:[#allocation4 + $0x1a9] sm:$0x1] 0.0
        %s2528 = scalar_lea.vmem [#allocation4], 24
        %2529 = vst [vmem:[%s2528 + $0x1] sm:$0xff] %v2453
        %2530 = vst [vmem:[%s2528 + $0x9] sm:$0xff] %v2454
        %2531 = vst [vmem:[%s2528 + $0x19] sm:$0xff] %v2455
        %2532 = vst [vmem:[%s2528 + $0x21] sm:$0xff] %v2456
        %2533 = vst [vmem:[%s2528 + $0x31] sm:$0xff] %v2457
        %2534 = vst [vmem:[%s2528 + $0x39] sm:$0xff] %v2458
        %2535 = vst [vmem:[%s2528 + $0x49] sm:$0xff] %v2459
        %2536 = vst [vmem:[%s2528 + $0x51] sm:$0xff] %v2460
        %2537 = vst [vmem:[%s2528 + $0x61] sm:$0xff] %v2461
        %2538 = vst [vmem:[%s2528 + $0x69] sm:$0xff] %v2462
        %2539 = vst [vmem:[%s2528 + $0x79] sm:$0xff] %v2463
        %2540 = vst [vmem:[%s2528 + $0x81] sm:$0xff] %v2464
        %2541 = vst [vmem:[%s2528 + $0x91] sm:$0xff] %v2465
        %2542 = vst [vmem:[%s2528 + $0x99] sm:$0xff] %v2466
        %2543 = vst [vmem:[%s2528 + $0xa9] sm:$0xff] %v2467
        %2544 = vst [vmem:[%s2528 + $0xb1] sm:$0xff] %v2468
        %2545 = vst [vmem:[%s2528 + $0xc1] sm:$0xff] %v2469
        %2546 = vst [vmem:[%s2528 + $0xc9] sm:$0xff] %v2470
        %2547 = vst [vmem:[%s2528 + $0xd9] sm:$0xff] %v2471
        %2548 = vst [vmem:[%s2528 + $0xe1] sm:$0xff] %v2472
        %2549 = vst [vmem:[%s2528 + $0xf1] sm:$0xff] %v2473
        %2550 = vst [vmem:[%s2528 + $0xf9] sm:$0xff] %v2474
        %2551 = vst [vmem:[%s2528 + $0x109] sm:$0xff] %v2475
        %2552 = vst [vmem:[%s2528 + $0x111] sm:$0xff] %v2476
        %2553 = vst [vmem:[%s2528 + $0x121] sm:$0xff] %v2477
        %2554 = vst [vmem:[%s2528 + $0x129] sm:$0xff] %v2478
        %2555 = vst [vmem:[%s2528 + $0x139] sm:$0xff] %v2479
        %2556 = vst [vmem:[%s2528 + $0x141] sm:$0xff] %v2480
        %2557 = vst [vmem:[%s2528 + $0x151] sm:$0xff] %v2481
        %2558 = vst [vmem:[%s2528 + $0x159] sm:$0xff] %v2482
        %2559 = vst [vmem:[%s2528 + $0x169] sm:$0xff] %v2483
        %2560 = vst [vmem:[%s2528 + $0x171] sm:$0xff] %v2484
        %2593 = vrot.lane.b32.xlu0 %v338, 4
        %v2594 = vpop.permute.xlu0 %2593
        %2595 = vrot.lane.b32.xlu0 %v339, 4
        %v2596 = vpop.permute.xlu0 %2595
        %2597 = vrot.lane.b32.xlu0 %v340, 4
        %v2598 = vpop.permute.xlu0 %2597
        %2599 = vrot.lane.b32.xlu0 %v341, 4
        %v2600 = vpop.permute.xlu0 %2599
        %2601 = vrot.lane.b32.xlu0 %v342, 4
        %v2602 = vpop.permute.xlu0 %2601
        %2603 = vrot.lane.b32.xlu0 %v343, 4
        %v2604 = vpop.permute.xlu0 %2603
        %2605 = vrot.lane.b32.xlu0 %v344, 4
        %v2606 = vpop.permute.xlu0 %2605
        %2607 = vrot.lane.b32.xlu0 %v345, 4
        %v2608 = vpop.permute.xlu0 %2607
        %2609 = vrot.lane.b32.xlu0 %v346, 4
        %v2610 = vpop.permute.xlu0 %2609
        %2611 = vrot.lane.b32.xlu0 %v347, 4
        %v2612 = vpop.permute.xlu0 %2611
        %2613 = vrot.lane.b32.xlu0 %v348, 4
        %v2614 = vpop.permute.xlu0 %2613
        %2615 = vrot.lane.b32.xlu0 %v349, 4
        %v2616 = vpop.permute.xlu0 %2615
        %2617 = vrot.lane.b32.xlu0 %v350, 4
        %v2618 = vpop.permute.xlu0 %2617
        %2619 = vrot.lane.b32.xlu0 %v351, 4
        %v2620 = vpop.permute.xlu0 %2619
        %2621 = vrot.lane.b32.xlu0 %v352, 4
        %v2622 = vpop.permute.xlu0 %2621
        %2623 = vrot.lane.b32.xlu0 %v353, 4
        %v2624 = vpop.permute.xlu0 %2623
        %2625 = vrot.lane.b32.xlu0 %v354, 4
        %v2626 = vpop.permute.xlu0 %2625
        %2627 = vrot.lane.b32.xlu0 %v355, 4
        %v2628 = vpop.permute.xlu0 %2627
        %2629 = vrot.lane.b32.xlu0 %v356, 4
        %v2630 = vpop.permute.xlu0 %2629
        %2631 = vrot.lane.b32.xlu0 %v357, 4
        %v2632 = vpop.permute.xlu0 %2631
        %2633 = vrot.lane.b32.xlu0 %v358, 4
        %v2634 = vpop.permute.xlu0 %2633
        %2635 = vrot.lane.b32.xlu0 %v359, 4
        %v2636 = vpop.permute.xlu0 %2635
        %2637 = vrot.lane.b32.xlu0 %v360, 4
        %v2638 = vpop.permute.xlu0 %2637
        %2639 = vrot.lane.b32.xlu0 %v361, 4
        %v2640 = vpop.permute.xlu0 %2639
        %2641 = vrot.lane.b32.xlu0 %v362, 4
        %v2642 = vpop.permute.xlu0 %2641
        %2643 = vrot.lane.b32.xlu0 %v363, 4
        %v2644 = vpop.permute.xlu0 %2643
        %2645 = vrot.lane.b32.xlu0 %v364, 4
        %v2646 = vpop.permute.xlu0 %2645
        %2647 = vrot.lane.b32.xlu0 %v365, 4
        %v2648 = vpop.permute.xlu0 %2647
        %2649 = vrot.lane.b32.xlu0 %v366, 4
        %v2650 = vpop.permute.xlu0 %2649
        %2651 = vrot.lane.b32.xlu0 %v367, 4
        %v2652 = vpop.permute.xlu0 %2651
        %2653 = vrot.lane.b32.xlu0 %v368, 4
        %v2654 = vpop.permute.xlu0 %2653
        %2655 = vrot.lane.b32.xlu0 %v369, 4
        %v2656 = vpop.permute.xlu0 %2655
        %2689 = vst.msk [vmem:[%s2528 + $0x1] sm:$0xff] %vm627, %v2594
        %2690 = vst.msk [vmem:[%s2528 + $0x9] sm:$0xff] %vm627, %v2596
        %2691 = vst.msk [vmem:[%s2528 + $0x19] sm:$0xff] %vm627, %v2598
        %2692 = vst.msk [vmem:[%s2528 + $0x21] sm:$0xff] %vm627, %v2600
        %2693 = vst.msk [vmem:[%s2528 + $0x31] sm:$0xff] %vm627, %v2602
        %2694 = vst.msk [vmem:[%s2528 + $0x39] sm:$0xff] %vm627, %v2604
        %2695 = vst.msk [vmem:[%s2528 + $0x49] sm:$0xff] %vm627, %v2606
        %2696 = vst.msk [vmem:[%s2528 + $0x51] sm:$0xff] %vm627, %v2608
        %2697 = vst.msk [vmem:[%s2528 + $0x61] sm:$0xff] %vm627, %v2610
        %2698 = vst.msk [vmem:[%s2528 + $0x69] sm:$0xff] %vm627, %v2612
        %2699 = vst.msk [vmem:[%s2528 + $0x79] sm:$0xff] %vm627, %v2614
        %2700 = vst.msk [vmem:[%s2528 + $0x81] sm:$0xff] %vm627, %v2616
        %2701 = vst.msk [vmem:[%s2528 + $0x91] sm:$0xff] %vm627, %v2618
        %2702 = vst.msk [vmem:[%s2528 + $0x99] sm:$0xff] %vm627, %v2620
        %2703 = vst.msk [vmem:[%s2528 + $0xa9] sm:$0xff] %vm627, %v2622
        %2704 = vst.msk [vmem:[%s2528 + $0xb1] sm:$0xff] %vm627, %v2624
        %2705 = vst.msk [vmem:[%s2528 + $0xc1] sm:$0xff] %vm627, %v2626
        %2706 = vst.msk [vmem:[%s2528 + $0xc9] sm:$0xff] %vm627, %v2628
        %2707 = vst.msk [vmem:[%s2528 + $0xd9] sm:$0xff] %vm627, %v2630
        %2708 = vst.msk [vmem:[%s2528 + $0xe1] sm:$0xff] %vm627, %v2632
        %2709 = vst.msk [vmem:[%s2528 + $0xf1] sm:$0xff] %vm627, %v2634
        %2710 = vst.msk [vmem:[%s2528 + $0xf9] sm:$0xff] %vm627, %v2636
        %2711 = vst.msk [vmem:[%s2528 + $0x109] sm:$0xff] %vm627, %v2638
        %2712 = vst.msk [vmem:[%s2528 + $0x111] sm:$0xff] %vm627, %v2640
        %2713 = vst.msk [vmem:[%s2528 + $0x121] sm:$0xff] %vm627, %v2642
        %2714 = vst.msk [vmem:[%s2528 + $0x129] sm:$0xff] %vm627, %v2644
        %2715 = vst.msk [vmem:[%s2528 + $0x139] sm:$0xff] %vm627, %v2646
        %2716 = vst.msk [vmem:[%s2528 + $0x141] sm:$0xff] %vm627, %v2648
        %2717 = vst.msk [vmem:[%s2528 + $0x151] sm:$0xff] %vm627, %v2650
        %2718 = vst.msk [vmem:[%s2528 + $0x159] sm:$0xff] %vm627, %v2652
        %2719 = vst.msk [vmem:[%s2528 + $0x169] sm:$0xff] %vm627, %v2654
        %2720 = vst.msk [vmem:[%s2528 + $0x171] sm:$0xff] %vm627, %v2656
        %v2721 = vld [vmem:[#allocation4] sm:$0xff]
        %v2722 = vld [vmem:[#allocation4 + $0x8] sm:$0xff]
        %v2723 = vld [vmem:[#allocation4 + $0x18] sm:$0xff]
        %v2724 = vld [vmem:[#allocation4 + $0x20] sm:$0xff]
        %v2725 = vld [vmem:[#allocation4 + $0x30] sm:$0xff]
        %v2726 = vld [vmem:[#allocation4 + $0x38] sm:$0xff]
        %v2727 = vld [vmem:[#allocation4 + $0x48] sm:$0xff]
        %v2728 = vld [vmem:[#allocation4 + $0x50] sm:$0xff]
        %v2729 = vld [vmem:[#allocation4 + $0x60] sm:$0xff]
        %v2730 = vld [vmem:[#allocation4 + $0x68] sm:$0xff]
        %v2731 = vld [vmem:[#allocation4 + $0x78] sm:$0xff]
        %v2732 = vld [vmem:[#allocation4 + $0x80] sm:$0xff]
        %v2733 = vld [vmem:[#allocation4 + $0x90] sm:$0xff]
        %v2734 = vld [vmem:[#allocation4 + $0x98] sm:$0xff]
        %v2735 = vld [vmem:[#allocation4 + $0xa8] sm:$0xff]
        %v2736 = vld [vmem:[#allocation4 + $0xb0] sm:$0xff]
        %v2737 = vld [vmem:[#allocation4 + $0xc0] sm:$0xff]
        %v2738 = vld [vmem:[#allocation4 + $0xc8] sm:$0xff]
        %v2739 = vld [vmem:[#allocation4 + $0xd8] sm:$0xff]
        %v2740 = vld [vmem:[#allocation4 + $0xe0] sm:$0xff]
        %v2741 = vld [vmem:[#allocation4 + $0xf0] sm:$0xff]
        %v2742 = vld [vmem:[#allocation4 + $0xf8] sm:$0xff]
        %v2743 = vld [vmem:[#allocation4 + $0x108] sm:$0xff]
        %v2744 = vld [vmem:[#allocation4 + $0x110] sm:$0xff]
        %v2745 = vld [vmem:[#allocation4 + $0x120] sm:$0xff]
        %v2746 = vld [vmem:[#allocation4 + $0x128] sm:$0xff]
        %v2747 = vld [vmem:[#allocation4 + $0x138] sm:$0xff]
        %v2748 = vld [vmem:[#allocation4 + $0x140] sm:$0xff]
        %v2749 = vld [vmem:[#allocation4 + $0x150] sm:$0xff]
        %v2750 = vld [vmem:[#allocation4 + $0x158] sm:$0xff]
        %v2751 = vld [vmem:[#allocation4 + $0x168] sm:$0xff]
        %v2752 = vld [vmem:[#allocation4 + $0x170] sm:$0xff]
        %v2753 = vld [vmem:[#allocation4 + $0x1] sm:$0xff]
        %v2754 = vld [vmem:[#allocation4 + $0x9] sm:$0xff]
        %v2755 = vld [vmem:[#allocation4 + $0x19] sm:$0xff]
        %v2756 = vld [vmem:[#allocation4 + $0x21] sm:$0xff]
        %v2757 = vld [vmem:[#allocation4 + $0x31] sm:$0xff]
        %v2758 = vld [vmem:[#allocation4 + $0x39] sm:$0xff]
        %v2759 = vld [vmem:[#allocation4 + $0x49] sm:$0xff]
        %v2760 = vld [vmem:[#allocation4 + $0x51] sm:$0xff]
        %v2761 = vld [vmem:[#allocation4 + $0x61] sm:$0xff]
        %v2762 = vld [vmem:[#allocation4 + $0x69] sm:$0xff]
        %v2763 = vld [vmem:[#allocation4 + $0x79] sm:$0xff]
        %v2764 = vld [vmem:[#allocation4 + $0x81] sm:$0xff]
        %v2765 = vld [vmem:[#allocation4 + $0x91] sm:$0xff]
        %v2766 = vld [vmem:[#allocation4 + $0x99] sm:$0xff]
        %v2767 = vld [vmem:[#allocation4 + $0xa9] sm:$0xff]
        %v2768 = vld [vmem:[#allocation4 + $0xb1] sm:$0xff]
        %v2769 = vld [vmem:[#allocation4 + $0xc1] sm:$0xff]
        %v2770 = vld [vmem:[#allocation4 + $0xc9] sm:$0xff]
        %v2771 = vld [vmem:[#allocation4 + $0xd9] sm:$0xff]
        %v2772 = vld [vmem:[#allocation4 + $0xe1] sm:$0xff]
        %v2773 = vld [vmem:[#allocation4 + $0xf1] sm:$0xff]
        %v2774 = vld [vmem:[#allocation4 + $0xf9] sm:$0xff]
        %v2775 = vld [vmem:[#allocation4 + $0x109] sm:$0xff]
        %v2776 = vld [vmem:[#allocation4 + $0x111] sm:$0xff]
        %v2777 = vld [vmem:[#allocation4 + $0x121] sm:$0xff]
        %v2778 = vld [vmem:[#allocation4 + $0x129] sm:$0xff]
        %v2779 = vld [vmem:[#allocation4 + $0x139] sm:$0xff]
        %v2780 = vld [vmem:[#allocation4 + $0x141] sm:$0xff]
        %v2781 = vld [vmem:[#allocation4 + $0x151] sm:$0xff]
        %v2782 = vld [vmem:[#allocation4 + $0x159] sm:$0xff]
        %v2783 = vld [vmem:[#allocation4 + $0x169] sm:$0xff]
        %v2784 = vld [vmem:[#allocation4 + $0x171] sm:$0xff]
        %v2785 = vld [vmem:[#allocation4 + $0x2] sm:$0xff]
        %v2786 = vld [vmem:[#allocation4 + $0xa] sm:$0xff]
        %v2787 = vld [vmem:[#allocation4 + $0x1a] sm:$0xff]
        %v2788 = vld [vmem:[#allocation4 + $0x22] sm:$0xff]
        %v2789 = vld [vmem:[#allocation4 + $0x32] sm:$0xff]
        %v2790 = vld [vmem:[#allocation4 + $0x3a] sm:$0xff]
        %v2791 = vld [vmem:[#allocation4 + $0x4a] sm:$0xff]
        %v2792 = vld [vmem:[#allocation4 + $0x52] sm:$0xff]
        %v2793 = vld [vmem:[#allocation4 + $0x62] sm:$0xff]
        %v2794 = vld [vmem:[#allocation4 + $0x6a] sm:$0xff]
        %v2795 = vld [vmem:[#allocation4 + $0x7a] sm:$0xff]
        %v2796 = vld [vmem:[#allocation4 + $0x82] sm:$0xff]
        %v2797 = vld [vmem:[#allocation4 + $0x92] sm:$0xff]
        %v2798 = vld [vmem:[#allocation4 + $0x9a] sm:$0xff]
        %v2799 = vld [vmem:[#allocation4 + $0xaa] sm:$0xff]
        %v2800 = vld [vmem:[#allocation4 + $0xb2] sm:$0xff]
        %v2801 = vld [vmem:[#allocation4 + $0xc2] sm:$0xff]
        %v2802 = vld [vmem:[#allocation4 + $0xca] sm:$0xff]
        %v2803 = vld [vmem:[#allocation4 + $0xda] sm:$0xff]
        %v2804 = vld [vmem:[#allocation4 + $0xe2] sm:$0xff]
        %v2805 = vld [vmem:[#allocation4 + $0xf2] sm:$0xff]
        %v2806 = vld [vmem:[#allocation4 + $0xfa] sm:$0xff]
        %v2807 = vld [vmem:[#allocation4 + $0x10a] sm:$0xff]
        %v2808 = vld [vmem:[#allocation4 + $0x112] sm:$0xff]
        %v2809 = vld [vmem:[#allocation4 + $0x122] sm:$0xff]
        %v2810 = vld [vmem:[#allocation4 + $0x12a] sm:$0xff]
        %v2811 = vld [vmem:[#allocation4 + $0x13a] sm:$0xff]
        %v2812 = vld [vmem:[#allocation4 + $0x142] sm:$0xff]
        %v2813 = vld [vmem:[#allocation4 + $0x152] sm:$0xff]
        %v2814 = vld [vmem:[#allocation4 + $0x15a] sm:$0xff]
        %v2815 = vld [vmem:[#allocation4 + $0x16a] sm:$0xff]
        %v2816 = vld [vmem:[#allocation4 + $0x172] sm:$0xff]
        %v2817 = vld [vmem:[%s2528] sm:$0xff]
        %v2818 = vld [vmem:[%s2528 + $0x8] sm:$0xff]
        %v2819 = vld [vmem:[%s2528 + $0x18] sm:$0xff]
        %v2820 = vld [vmem:[%s2528 + $0x20] sm:$0xff]
        %v2821 = vld [vmem:[%s2528 + $0x30] sm:$0xff]
        %v2822 = vld [vmem:[%s2528 + $0x38] sm:$0xff]
        %v2823 = vld [vmem:[%s2528 + $0x48] sm:$0xff]
        %v2824 = vld [vmem:[%s2528 + $0x50] sm:$0xff]
        %v2825 = vld [vmem:[%s2528 + $0x60] sm:$0xff]
        %v2826 = vld [vmem:[%s2528 + $0x68] sm:$0xff]
        %v2827 = vld [vmem:[%s2528 + $0x78] sm:$0xff]
        %v2828 = vld [vmem:[%s2528 + $0x80] sm:$0xff]
        %v2829 = vld [vmem:[%s2528 + $0x90] sm:$0xff]
        %v2830 = vld [vmem:[%s2528 + $0x98] sm:$0xff]
        %v2831 = vld [vmem:[%s2528 + $0xa8] sm:$0xff]
        %v2832 = vld [vmem:[%s2528 + $0xb0] sm:$0xff]
        %v2833 = vld [vmem:[%s2528 + $0xc0] sm:$0xff]
        %v2834 = vld [vmem:[%s2528 + $0xc8] sm:$0xff]
        %v2835 = vld [vmem:[%s2528 + $0xd8] sm:$0xff]
        %v2836 = vld [vmem:[%s2528 + $0xe0] sm:$0xff]
        %v2837 = vld [vmem:[%s2528 + $0xf0] sm:$0xff]
        %v2838 = vld [vmem:[%s2528 + $0xf8] sm:$0xff]
        %v2839 = vld [vmem:[%s2528 + $0x108] sm:$0xff]
        %v2840 = vld [vmem:[%s2528 + $0x110] sm:$0xff]
        %v2841 = vld [vmem:[%s2528 + $0x120] sm:$0xff]
        %v2842 = vld [vmem:[%s2528 + $0x128] sm:$0xff]
        %v2843 = vld [vmem:[%s2528 + $0x138] sm:$0xff]
        %v2844 = vld [vmem:[%s2528 + $0x140] sm:$0xff]
        %v2845 = vld [vmem:[%s2528 + $0x150] sm:$0xff]
        %v2846 = vld [vmem:[%s2528 + $0x158] sm:$0xff]
        %v2847 = vld [vmem:[%s2528 + $0x168] sm:$0xff]
        %v2848 = vld [vmem:[%s2528 + $0x170] sm:$0xff]
        %v2849 = vld [vmem:[%s2528 + $0x1] sm:$0xff]
        %v2850 = vld [vmem:[%s2528 + $0x9] sm:$0xff]
        %v2851 = vld [vmem:[%s2528 + $0x19] sm:$0xff]
        %v2852 = vld [vmem:[%s2528 + $0x21] sm:$0xff]
        %v2853 = vld [vmem:[%s2528 + $0x31] sm:$0xff]
        %v2854 = vld [vmem:[%s2528 + $0x39] sm:$0xff]
        %v2855 = vld [vmem:[%s2528 + $0x49] sm:$0xff]
        %v2856 = vld [vmem:[%s2528 + $0x51] sm:$0xff]
        %v2857 = vld [vmem:[%s2528 + $0x61] sm:$0xff]
        %v2858 = vld [vmem:[%s2528 + $0x69] sm:$0xff]
        %v2859 = vld [vmem:[%s2528 + $0x79] sm:$0xff]
        %v2860 = vld [vmem:[%s2528 + $0x81] sm:$0xff]
        %v2861 = vld [vmem:[%s2528 + $0x91] sm:$0xff]
        %v2862 = vld [vmem:[%s2528 + $0x99] sm:$0xff]
        %v2863 = vld [vmem:[%s2528 + $0xa9] sm:$0xff]
        %v2864 = vld [vmem:[%s2528 + $0xb1] sm:$0xff]
        %v2865 = vld [vmem:[%s2528 + $0xc1] sm:$0xff]
        %v2866 = vld [vmem:[%s2528 + $0xc9] sm:$0xff]
        %v2867 = vld [vmem:[%s2528 + $0xd9] sm:$0xff]
        %v2868 = vld [vmem:[%s2528 + $0xe1] sm:$0xff]
        %v2869 = vld [vmem:[%s2528 + $0xf1] sm:$0xff]
        %v2870 = vld [vmem:[%s2528 + $0xf9] sm:$0xff]
        %v2871 = vld [vmem:[%s2528 + $0x109] sm:$0xff]
        %v2872 = vld [vmem:[%s2528 + $0x111] sm:$0xff]
        %v2873 = vld [vmem:[%s2528 + $0x121] sm:$0xff]
        %v2874 = vld [vmem:[%s2528 + $0x129] sm:$0xff]
        %v2875 = vld [vmem:[%s2528 + $0x139] sm:$0xff]
        %v2876 = vld [vmem:[%s2528 + $0x141] sm:$0xff]
        %v2877 = vld [vmem:[%s2528 + $0x151] sm:$0xff]
        %v2878 = vld [vmem:[%s2528 + $0x159] sm:$0xff]
        %v2879 = vld [vmem:[%s2528 + $0x169] sm:$0xff]
        %v2880 = vld [vmem:[%s2528 + $0x171] sm:$0xff]
        %v2881 = vld [vmem:[%s2528 + $0x2] sm:$0xff]
        %v2882 = vld [vmem:[%s2528 + $0xa] sm:$0xff]
        %v2883 = vld [vmem:[%s2528 + $0x1a] sm:$0xff]
        %v2884 = vld [vmem:[%s2528 + $0x22] sm:$0xff]
        %v2885 = vld [vmem:[%s2528 + $0x32] sm:$0xff]
        %v2886 = vld [vmem:[%s2528 + $0x3a] sm:$0xff]
        %v2887 = vld [vmem:[%s2528 + $0x4a] sm:$0xff]
        %v2888 = vld [vmem:[%s2528 + $0x52] sm:$0xff]
        %v2889 = vld [vmem:[%s2528 + $0x62] sm:$0xff]
        %v2890 = vld [vmem:[%s2528 + $0x6a] sm:$0xff]
        %v2891 = vld [vmem:[%s2528 + $0x7a] sm:$0xff]
        %v2892 = vld [vmem:[%s2528 + $0x82] sm:$0xff]
        %v2893 = vld [vmem:[%s2528 + $0x92] sm:$0xff]
        %v2894 = vld [vmem:[%s2528 + $0x9a] sm:$0xff]
        %v2895 = vld [vmem:[%s2528 + $0xaa] sm:$0xff]
        %v2896 = vld [vmem:[%s2528 + $0xb2] sm:$0xff]
        %v2897 = vld [vmem:[%s2528 + $0xc2] sm:$0xff]
        %v2898 = vld [vmem:[%s2528 + $0xca] sm:$0xff]
        %v2899 = vld [vmem:[%s2528 + $0xda] sm:$0xff]
        %v2900 = vld [vmem:[%s2528 + $0xe2] sm:$0xff]
        %v2901 = vld [vmem:[%s2528 + $0xf2] sm:$0xff]
        %v2902 = vld [vmem:[%s2528 + $0xfa] sm:$0xff]
        %v2903 = vld [vmem:[%s2528 + $0x10a] sm:$0xff]
        %v2904 = vld [vmem:[%s2528 + $0x112] sm:$0xff]
        %v2905 = vld [vmem:[%s2528 + $0x122] sm:$0xff]
        %v2906 = vld [vmem:[%s2528 + $0x12a] sm:$0xff]
        %v2907 = vld [vmem:[%s2528 + $0x13a] sm:$0xff]
        %v2908 = vld [vmem:[%s2528 + $0x142] sm:$0xff]
        %v2909 = vld [vmem:[%s2528 + $0x152] sm:$0xff]
        %v2910 = vld [vmem:[%s2528 + $0x15a] sm:$0xff]
        %v2911 = vld [vmem:[%s2528 + $0x16a] sm:$0xff]
        %v2912 = vld [vmem:[%s2528 + $0x172] sm:$0xff]
        %s2913 = scalar_lea.vmem [#allocation4], 48
        %v2914 = vld [vmem:[%s2913] sm:$0xff]
        %v2915 = vld [vmem:[%s2913 + $0x8] sm:$0xff]
        %v2916 = vld [vmem:[%s2913 + $0x18] sm:$0xff]
        %v2917 = vld [vmem:[%s2913 + $0x20] sm:$0xff]
        %v2918 = vld [vmem:[%s2913 + $0x30] sm:$0xff]
        %v2919 = vld [vmem:[%s2913 + $0x38] sm:$0xff]
        %v2920 = vld [vmem:[%s2913 + $0x48] sm:$0xff]
        %v2921 = vld [vmem:[%s2913 + $0x50] sm:$0xff]
        %v2922 = vld [vmem:[%s2913 + $0x60] sm:$0xff]
        %v2923 = vld [vmem:[%s2913 + $0x68] sm:$0xff]
        %v2924 = vld [vmem:[%s2913 + $0x78] sm:$0xff]
        %v2925 = vld [vmem:[%s2913 + $0x80] sm:$0xff]
        %v2926 = vld [vmem:[%s2913 + $0x90] sm:$0xff]
        %v2927 = vld [vmem:[%s2913 + $0x98] sm:$0xff]
        %v2928 = vld [vmem:[%s2913 + $0xa8] sm:$0xff]
        %v2929 = vld [vmem:[%s2913 + $0xb0] sm:$0xff]
        %v2930 = vld [vmem:[%s2913 + $0xc0] sm:$0xff]
        %v2931 = vld [vmem:[%s2913 + $0xc8] sm:$0xff]
        %v2932 = vld [vmem:[%s2913 + $0xd8] sm:$0xff]
        %v2933 = vld [vmem:[%s2913 + $0xe0] sm:$0xff]
        %v2934 = vld [vmem:[%s2913 + $0xf0] sm:$0xff]
        %v2935 = vld [vmem:[%s2913 + $0xf8] sm:$0xff]
        %v2936 = vld [vmem:[%s2913 + $0x108] sm:$0xff]
        %v2937 = vld [vmem:[%s2913 + $0x110] sm:$0xff]
        %v2938 = vld [vmem:[%s2913 + $0x120] sm:$0xff]
        %v2939 = vld [vmem:[%s2913 + $0x128] sm:$0xff]
        %v2940 = vld [vmem:[%s2913 + $0x138] sm:$0xff]
        %v2941 = vld [vmem:[%s2913 + $0x140] sm:$0xff]
        %v2942 = vld [vmem:[%s2913 + $0x150] sm:$0xff]
        %v2943 = vld [vmem:[%s2913 + $0x158] sm:$0xff]
        %v2944 = vld [vmem:[%s2913 + $0x168] sm:$0xff]
        %v2945 = vld [vmem:[%s2913 + $0x170] sm:$0xff]
        %v2946 = vld [vmem:[%s2913 + $0x1] sm:$0xff]
        %v2947 = vld [vmem:[%s2913 + $0x9] sm:$0xff]
        %v2948 = vld [vmem:[%s2913 + $0x19] sm:$0xff]
        %v2949 = vld [vmem:[%s2913 + $0x21] sm:$0xff]
        %v2950 = vld [vmem:[%s2913 + $0x31] sm:$0xff]
        %v2951 = vld [vmem:[%s2913 + $0x39] sm:$0xff]
        %v2952 = vld [vmem:[%s2913 + $0x49] sm:$0xff]
        %v2953 = vld [vmem:[%s2913 + $0x51] sm:$0xff]
        %v2954 = vld [vmem:[%s2913 + $0x61] sm:$0xff]
        %v2955 = vld [vmem:[%s2913 + $0x69] sm:$0xff]
        %v2956 = vld [vmem:[%s2913 + $0x79] sm:$0xff]
        %v2957 = vld [vmem:[%s2913 + $0x81] sm:$0xff]
        %v2958 = vld [vmem:[%s2913 + $0x91] sm:$0xff]
        %v2959 = vld [vmem:[%s2913 + $0x99] sm:$0xff]
        %v2960 = vld [vmem:[%s2913 + $0xa9] sm:$0xff]
        %v2961 = vld [vmem:[%s2913 + $0xb1] sm:$0xff]
        %v2962 = vld [vmem:[%s2913 + $0xc1] sm:$0xff]
        %v2963 = vld [vmem:[%s2913 + $0xc9] sm:$0xff]
        %v2964 = vld [vmem:[%s2913 + $0xd9] sm:$0xff]
        %v2965 = vld [vmem:[%s2913 + $0xe1] sm:$0xff]
        %v2966 = vld [vmem:[%s2913 + $0xf1] sm:$0xff]
        %v2967 = vld [vmem:[%s2913 + $0xf9] sm:$0xff]
        %v2968 = vld [vmem:[%s2913 + $0x109] sm:$0xff]
        %v2969 = vld [vmem:[%s2913 + $0x111] sm:$0xff]
        %v2970 = vld [vmem:[%s2913 + $0x121] sm:$0xff]
        %v2971 = vld [vmem:[%s2913 + $0x129] sm:$0xff]
        %v2972 = vld [vmem:[%s2913 + $0x139] sm:$0xff]
        %v2973 = vld [vmem:[%s2913 + $0x141] sm:$0xff]
        %v2974 = vld [vmem:[%s2913 + $0x151] sm:$0xff]
        %v2975 = vld [vmem:[%s2913 + $0x159] sm:$0xff]
        %v2976 = vld [vmem:[%s2913 + $0x169] sm:$0xff]
        %v2977 = vld [vmem:[%s2913 + $0x171] sm:$0xff]
        %v2978 = vld [vmem:[%s2913 + $0x2] sm:$0xff]
        %v2979 = vld [vmem:[%s2913 + $0xa] sm:$0xff]
        %v2980 = vld [vmem:[%s2913 + $0x1a] sm:$0xff]
        %v2981 = vld [vmem:[%s2913 + $0x22] sm:$0xff]
        %v2982 = vld [vmem:[%s2913 + $0x32] sm:$0xff]
        %v2983 = vld [vmem:[%s2913 + $0x3a] sm:$0xff]
        %v2984 = vld [vmem:[%s2913 + $0x4a] sm:$0xff]
        %v2985 = vld [vmem:[%s2913 + $0x52] sm:$0xff]
        %v2986 = vld [vmem:[%s2913 + $0x62] sm:$0xff]
        %v2987 = vld [vmem:[%s2913 + $0x6a] sm:$0xff]
        %v2988 = vld [vmem:[%s2913 + $0x7a] sm:$0xff]
        %v2989 = vld [vmem:[%s2913 + $0x82] sm:$0xff]
        %v2990 = vld [vmem:[%s2913 + $0x92] sm:$0xff]
        %v2991 = vld [vmem:[%s2913 + $0x9a] sm:$0xff]
        %v2992 = vld [vmem:[%s2913 + $0xaa] sm:$0xff]
        %v2993 = vld [vmem:[%s2913 + $0xb2] sm:$0xff]
        %v2994 = vld [vmem:[%s2913 + $0xc2] sm:$0xff]
        %v2995 = vld [vmem:[%s2913 + $0xca] sm:$0xff]
        %v2996 = vld [vmem:[%s2913 + $0xda] sm:$0xff]
        %v2997 = vld [vmem:[%s2913 + $0xe2] sm:$0xff]
        %v2998 = vld [vmem:[%s2913 + $0xf2] sm:$0xff]
        %v2999 = vld [vmem:[%s2913 + $0xfa] sm:$0xff]
        %v3000 = vld [vmem:[%s2913 + $0x10a] sm:$0xff]
        %v3001 = vld [vmem:[%s2913 + $0x112] sm:$0xff]
        %v3002 = vld [vmem:[%s2913 + $0x122] sm:$0xff]
        %v3003 = vld [vmem:[%s2913 + $0x12a] sm:$0xff]
        %v3004 = vld [vmem:[%s2913 + $0x13a] sm:$0xff]
        %v3005 = vld [vmem:[%s2913 + $0x142] sm:$0xff]
        %v3006 = vld [vmem:[%s2913 + $0x152] sm:$0xff]
        %v3007 = vld [vmem:[%s2913 + $0x15a] sm:$0xff]
        %v3008 = vld [vmem:[%s2913 + $0x16a] sm:$0xff]
        %v3009 = vld [vmem:[%s2913 + $0x172] sm:$0xff]
        %v3010 = vld [vmem:[#allocation5] sm:$0xff]
        %v3011 = vld [vmem:[#allocation5 + $0x8] sm:$0xff]
        %v3012 = vld [vmem:[#allocation5 + $0x10] sm:$0xff]
        %v3013 = vld [vmem:[#allocation5 + $0x18] sm:$0xff]
        %v3014 = vld [vmem:[#allocation5 + $0x20] sm:$0xff]
        %v3015 = vld [vmem:[#allocation5 + $0x28] sm:$0xff]
        %v3016 = vld [vmem:[#allocation5 + $0x30] sm:$0xff]
        %v3017 = vld [vmem:[#allocation5 + $0x38] sm:$0xff]
        %v3018 = vld [vmem:[#allocation5 + $0x40] sm:$0xff]
        %v3019 = vld [vmem:[#allocation5 + $0x48] sm:$0xff]
        %v3020 = vld [vmem:[#allocation5 + $0x50] sm:$0xff]
        %v3021 = vld [vmem:[#allocation5 + $0x58] sm:$0xff]
        %v3022 = vld [vmem:[#allocation5 + $0x60] sm:$0xff]
        %v3023 = vld [vmem:[#allocation5 + $0x68] sm:$0xff]
        %v3024 = vld [vmem:[#allocation5 + $0x70] sm:$0xff]
        %v3025 = vld [vmem:[#allocation5 + $0x78] sm:$0xff]
        %v3026 = vld [vmem:[#allocation5 + $0x80] sm:$0xff]
        %v3027 = vld [vmem:[#allocation5 + $0x88] sm:$0xff]
        %v3028 = vld [vmem:[#allocation5 + $0x90] sm:$0xff]
        %v3029 = vld [vmem:[#allocation5 + $0x98] sm:$0xff]
        %v3030 = vld [vmem:[#allocation5 + $0xa0] sm:$0xff]
        %v3031 = vld [vmem:[#allocation5 + $0xa8] sm:$0xff]
        %v3032 = vld [vmem:[#allocation5 + $0xb0] sm:$0xff]
        %v3033 = vld [vmem:[#allocation5 + $0xb8] sm:$0xff]
        %v3034 = vld [vmem:[#allocation5 + $0xc0] sm:$0xff]
        %v3035 = vld [vmem:[#allocation5 + $0xc8] sm:$0xff]
        %v3036 = vld [vmem:[#allocation5 + $0xd0] sm:$0xff]
        %v3037 = vld [vmem:[#allocation5 + $0xd8] sm:$0xff]
        %v3038 = vld [vmem:[#allocation5 + $0xe0] sm:$0xff]
        %v3039 = vld [vmem:[#allocation5 + $0xe8] sm:$0xff]
        %v3040 = vld [vmem:[#allocation5 + $0xf0] sm:$0xff]
        %v3041 = vld [vmem:[#allocation5 + $0xf8] sm:$0xff]
        %v3042 = vld [vmem:[#allocation5 + $0x100] sm:$0xff]
        %v3043 = vld [vmem:[#allocation5 + $0x108] sm:$0xff]
        %v3044 = vld [vmem:[#allocation5 + $0x110] sm:$0xff]
        %v3045 = vld [vmem:[#allocation5 + $0x118] sm:$0xff]
        %v3046 = vld [vmem:[#allocation5 + $0x120] sm:$0xff]
        %v3047 = vld [vmem:[#allocation5 + $0x128] sm:$0xff]
        %v3048 = vld [vmem:[#allocation5 + $0x130] sm:$0xff]
        %v3049 = vld [vmem:[#allocation5 + $0x138] sm:$0xff]
        %v3050 = vld [vmem:[#allocation5 + $0x140] sm:$0xff]
        %v3051 = vld [vmem:[#allocation5 + $0x148] sm:$0xff]
        %v3052 = vld [vmem:[#allocation5 + $0x150] sm:$0xff]
        %v3053 = vld [vmem:[#allocation5 + $0x158] sm:$0xff]
        %v3054 = vld [vmem:[#allocation5 + $0x160] sm:$0xff]
        %v3055 = vld [vmem:[#allocation5 + $0x168] sm:$0xff]
        %v3056 = vld [vmem:[#allocation5 + $0x170] sm:$0xff]
        %v3057 = vld [vmem:[#allocation5 + $0x178] sm:$0xff]
        %v3058 = vld [vmem:[#allocation5 + $0x180] sm:$0xff]
        %v3059 = vld [vmem:[#allocation5 + $0x188] sm:$0xff]
        %v3060 = vld [vmem:[#allocation5 + $0x190] sm:$0xff]
        %v3061 = vld [vmem:[#allocation5 + $0x198] sm:$0xff]
        %v3062 = vld [vmem:[#allocation5 + $0x1a0] sm:$0xff]
        %v3063 = vld [vmem:[#allocation5 + $0x1a8] sm:$0xff]
        %v3064 = vld [vmem:[#allocation5 + $0x1b0] sm:$0xff]
        %v3065 = vld [vmem:[#allocation5 + $0x1b8] sm:$0xff]
        %v3066 = vld [vmem:[#allocation5 + $0x1c0] sm:$0xff]
        %v3067 = vld [vmem:[#allocation5 + $0x1c8] sm:$0xff]
        %v3068 = vld [vmem:[#allocation5 + $0x1d0] sm:$0xff]
        %v3069 = vld [vmem:[#allocation5 + $0x1d8] sm:$0xff]
        %v3070 = vld [vmem:[#allocation5 + $0x1e0] sm:$0xff]
        %v3071 = vld [vmem:[#allocation5 + $0x1e8] sm:$0xff]
        %v3072 = vld [vmem:[#allocation5 + $0x1f0] sm:$0xff]
        %v3073 = vld [vmem:[#allocation5 + $0x1f8] sm:$0xff]
        %v3074 = vld [vmem:[#allocation5 + $0x200] sm:$0xff]
        %v3075 = vld [vmem:[#allocation5 + $0x208] sm:$0xff]
        %v3076 = vld [vmem:[#allocation5 + $0x210] sm:$0xff]
        %v3077 = vld [vmem:[#allocation5 + $0x218] sm:$0xff]
        %v3078 = vld [vmem:[#allocation5 + $0x220] sm:$0xff]
        %v3079 = vld [vmem:[#allocation5 + $0x228] sm:$0xff]
        %v3080 = vld [vmem:[#allocation5 + $0x230] sm:$0xff]
        %v3081 = vld [vmem:[#allocation5 + $0x238] sm:$0xff]
        %v3082 = vld [vmem:[#allocation5 + $0x240] sm:$0xff]
        %v3083 = vld [vmem:[#allocation5 + $0x248] sm:$0xff]
        %v3084 = vld [vmem:[#allocation5 + $0x250] sm:$0xff]
        %v3085 = vld [vmem:[#allocation5 + $0x258] sm:$0xff]
        %v3086 = vld [vmem:[#allocation5 + $0x260] sm:$0xff]
        %v3087 = vld [vmem:[#allocation5 + $0x268] sm:$0xff]
        %v3088 = vld [vmem:[#allocation5 + $0x270] sm:$0xff]
        %v3089 = vld [vmem:[#allocation5 + $0x278] sm:$0xff]
        %v3090 = vld [vmem:[#allocation5 + $0x280] sm:$0xff]
        %v3091 = vld [vmem:[#allocation5 + $0x288] sm:$0xff]
        %v3092 = vld [vmem:[#allocation5 + $0x290] sm:$0xff]
        %v3093 = vld [vmem:[#allocation5 + $0x298] sm:$0xff]
        %v3094 = vld [vmem:[#allocation5 + $0x2a0] sm:$0xff]
        %v3095 = vld [vmem:[#allocation5 + $0x2a8] sm:$0xff]
        %v3096 = vld [vmem:[#allocation5 + $0x2b0] sm:$0xff]
        %v3097 = vld [vmem:[#allocation5 + $0x2b8] sm:$0xff]
        %v3098 = vld [vmem:[#allocation5 + $0x2c0] sm:$0xff]
        %v3099 = vld [vmem:[#allocation5 + $0x2c8] sm:$0xff]
        %v3100 = vld [vmem:[#allocation5 + $0x2d0] sm:$0xff]
        %v3101 = vld [vmem:[#allocation5 + $0x2d8] sm:$0xff]
        %v3102 = vld [vmem:[#allocation5 + $0x2e0] sm:$0xff]
        %v3103 = vld [vmem:[#allocation5 + $0x2e8] sm:$0xff]
        %v3104 = vld [vmem:[#allocation5 + $0x2f0] sm:$0xff]
        %v3105 = vld [vmem:[#allocation5 + $0x2f8] sm:$0xff]
        %v3106 = vld [vmem:[#allocation5 + $0x300] sm:$0xff]
        %v3107 = vld [vmem:[#allocation5 + $0x308] sm:$0xff]
        %v3108 = vld [vmem:[#allocation5 + $0x310] sm:$0xff]
        %v3109 = vld [vmem:[#allocation5 + $0x318] sm:$0xff]
        %v3110 = vld [vmem:[#allocation5 + $0x320] sm:$0xff]
        %v3111 = vld [vmem:[#allocation5 + $0x328] sm:$0xff]
        %v3112 = vld [vmem:[#allocation5 + $0x330] sm:$0xff]
        %v3113 = vld [vmem:[#allocation5 + $0x338] sm:$0xff]
        %v3114 = vld [vmem:[#allocation5 + $0x340] sm:$0xff]
        %v3115 = vld [vmem:[#allocation5 + $0x348] sm:$0xff]
        %v3116 = vld [vmem:[#allocation5 + $0x350] sm:$0xff]
        %v3117 = vld [vmem:[#allocation5 + $0x358] sm:$0xff]
        %v3118 = vld [vmem:[#allocation5 + $0x360] sm:$0xff]
        %v3119 = vld [vmem:[#allocation5 + $0x368] sm:$0xff]
        %v3120 = vld [vmem:[#allocation5 + $0x370] sm:$0xff]
        %v3121 = vld [vmem:[#allocation5 + $0x378] sm:$0xff]
        %v3122 = vld [vmem:[#allocation5 + $0x380] sm:$0xff]
        %v3123 = vld [vmem:[#allocation5 + $0x388] sm:$0xff]
        %v3124 = vld [vmem:[#allocation5 + $0x390] sm:$0xff]
        %v3125 = vld [vmem:[#allocation5 + $0x398] sm:$0xff]
        %v3126 = vld [vmem:[#allocation5 + $0x3a0] sm:$0xff]
        %v3127 = vld [vmem:[#allocation5 + $0x3a8] sm:$0xff]
        %v3128 = vld [vmem:[#allocation5 + $0x3b0] sm:$0xff]
        %v3129 = vld [vmem:[#allocation5 + $0x3b8] sm:$0xff]
        %v3130 = vld [vmem:[#allocation5 + $0x3c0] sm:$0xff]
        %v3131 = vld [vmem:[#allocation5 + $0x3c8] sm:$0xff]
        %v3132 = vld [vmem:[#allocation5 + $0x3d0] sm:$0xff]
        %v3133 = vld [vmem:[#allocation5 + $0x3d8] sm:$0xff]
        %v3134 = vld [vmem:[#allocation5 + $0x3e0] sm:$0xff]
        %v3135 = vld [vmem:[#allocation5 + $0x3e8] sm:$0xff]
        %v3136 = vld [vmem:[#allocation5 + $0x3f0] sm:$0xff]
        %v3137 = vld [vmem:[#allocation5 + $0x3f8] sm:$0xff]
        %v3138 = vld [vmem:[#allocation5 + $0x400] sm:$0xff]
        %v3139 = vld [vmem:[#allocation5 + $0x408] sm:$0xff]
        %v3140 = vld [vmem:[#allocation5 + $0x410] sm:$0xff]
        %v3141 = vld [vmem:[#allocation5 + $0x418] sm:$0xff]
        %v3142 = vld [vmem:[#allocation5 + $0x420] sm:$0xff]
        %v3143 = vld [vmem:[#allocation5 + $0x428] sm:$0xff]
        %v3144 = vld [vmem:[#allocation5 + $0x430] sm:$0xff]
        %v3145 = vld [vmem:[#allocation5 + $0x438] sm:$0xff]
        %v3146 = vld [vmem:[#allocation5 + $0x440] sm:$0xff]
        %v3147 = vld [vmem:[#allocation5 + $0x448] sm:$0xff]
        %v3148 = vld [vmem:[#allocation5 + $0x450] sm:$0xff]
        %v3149 = vld [vmem:[#allocation5 + $0x458] sm:$0xff]
        %v3150 = vld [vmem:[#allocation5 + $0x460] sm:$0xff]
        %v3151 = vld [vmem:[#allocation5 + $0x468] sm:$0xff]
        %v3152 = vld [vmem:[#allocation5 + $0x470] sm:$0xff]
        %v3153 = vld [vmem:[#allocation5 + $0x478] sm:$0xff]
        %v3154 = vld [vmem:[%s5] sm:$0x1]
        %v3156 = vlaneseq
        %v3157 = vshrl.u32 %v3156, 7
        %v3158 = vsub.s32 0, %v3157
        %v3159 = vrot.slane %v3154, %v3158
        %3161 = vmatprep.subr.mxu0 0.0
        %3162 = vmatpush1.msra.mxu0 %v3010
        %3163 = vmatprep.subr.mxu0 0.0
        %3164 = vmatpush1.msra.mxu0 %v3011
        %3165 = vmatprep.subr.mxu0 0.0
        %3166 = vmatpush1.msra.mxu0 %v3012
        %3167 = vmatprep.subr.mxu0 0.0
        %3168 = vmatpush1.msra.mxu0 %v3013
        %3169 = vmatprep.subr.mxu0 0.0
        %3170 = vmatpush1.msra.mxu0 %v3014
        %3171 = vmatprep.subr.mxu0 0.0
        %3172 = vmatpush1.msra.mxu0 %v3015
        %3173 = vmatprep.subr.mxu0 0.0
        %3174 = vmatpush1.msra.mxu0 %v3016
        %3175 = vmatprep.subr.mxu0 0.0
        %3176 = vmatpush1.msra.mxu0 %v3017
        %3177 = vmatprep.subr.mxu0 0.0
        %3178 = vmatpush1.msra.mxu0 %v3018
        %3179 = vmatprep.subr.mxu0 0.0
        %3180 = vmatpush1.msra.mxu0 %v3019
        %3181 = vmatprep.subr.mxu0 0.0
        %3182 = vmatpush1.msra.mxu0 %v3020
        %3183 = vmatprep.subr.mxu0 0.0
        %3184 = vmatpush1.msra.mxu0 %v3021
        %3185 = vmatprep.subr.mxu0 0.0
        %3186 = vmatpush1.msra.mxu0 %v3022
        %3187 = vmatprep.subr.mxu0 0.0
        %3188 = vmatpush1.msra.mxu0 %v3023
        %3189 = vmatprep.subr.mxu0 0.0
        %3190 = vmatpush1.msra.mxu0 %v3024
        %3191 = vmatprep.subr.mxu0 0.0
        %3192 = vmatpush1.msra.mxu0 %v3025
        %3193 = vmatprep.subr.mxu0 0.0
        %3194 = vmatpush1.msra.mxu0 %v3026
        %3195 = vmatprep.subr.mxu0 0.0
        %3196 = vmatpush1.msra.mxu0 %v3027
        %3197 = vmatprep.subr.mxu0 0.0
        %3198 = vmatpush1.msra.mxu0 %v3028
        %3199 = vmatprep.subr.mxu0 0.0
        %3200 = vmatpush1.msra.mxu0 %v3029
        %3201 = vmatprep.subr.mxu0 0.0
        %3202 = vmatpush1.msra.mxu0 %v3030
        %3203 = vmatprep.subr.mxu0 0.0
        %3204 = vmatpush1.msra.mxu0 %v3031
        %3205 = vmatprep.subr.mxu0 0.0
        %3206 = vmatpush1.msra.mxu0 %v3032
        %3207 = vmatprep.subr.mxu0 0.0
        %3208 = vmatpush1.msra.mxu0 %v3033
        %3209 = vmatprep.subr.mxu0 0.0
        %3210 = vmatpush1.msra.mxu0 %v3034
        %3211 = vmatprep.subr.mxu0 0.0
        %3212 = vmatpush1.msra.mxu0 %v3035
        %3213 = vmatprep.subr.mxu0 0.0
        %3214 = vmatpush1.msra.mxu0 %v3036
        %3215 = vmatprep.subr.mxu0 0.0
        %3216 = vmatpush1.msra.mxu0 %v3037
        %3217 = vmatprep.subr.mxu0 0.0
        %3218 = vmatpush1.msra.mxu0 %v3038
        %3219 = vmatprep.subr.mxu0 0.0
        %3220 = vmatpush1.msra.mxu0 %v3039
        %3221 = vmatprep.subr.mxu0 0.0
        %3222 = vmatpush1.msra.mxu0 %v3040
        %3223 = vmatprep.subr.mxu0 0.0
        %3224 = vmatpush1.msra.mxu0 %v3041
        %3225 = vmatprep.mubr.f32.mxu0 %v2753
        %3226 = vmatmul.mubr.f32.gmra.mrb[0].mxu0 %v2721
        %v3227 = vpop.f32.mrb[0].mxu0
        %v3228 = vadd.f32 %v3159, %v3227
        %v3229 = vpop.f32.mrb[0].mxu0
        %3230 = vmatprep.mubr.f32.mxu0 %v2754
        %3231 = vmatmul.mubr.f32.gmra.mrb[0].mxu0 %v2722
        %v3232 = vpop.f32.mrb[0].mxu0
        %v3233 = vadd.f32 %v3159, %v3232
        %v3234 = vpop.f32.mrb[0].mxu0
        %3235 = vmatprep.mubr.f32.mxu0 %v2755
        %3236 = vmatmul.mubr.f32.gmra.mrb[0].mxu0 %v2723
        %v3237 = vpop.f32.mrb[0].mxu0
        %v3238 = vadd.f32 %v3159, %v3237
        %v3239 = vpop.f32.mrb[0].mxu0
        %3240 = vmatprep.mubr.f32.mxu0 %v2756
        %3241 = vmatmul.mubr.f32.gmra.mrb[0].mxu0 %v2724
        %v3242 = vpop.f32.mrb[0].mxu0
        %v3243 = vadd.f32 %v3159, %v3242
        %v3244 = vpop.f32.mrb[0].mxu0
        %3245 = vmatprep.mubr.f32.mxu0 %v2757
        %3246 = vmatmul.mubr.f32.gmra.mrb[0].mxu0 %v2725
        %v3247 = vpop.f32.mrb[0].mxu0
        %v3248 = vadd.f32 %v3159, %v3247
        %v3249 = vpop.f32.mrb[0].mxu0
        %3250 = vmatprep.mubr.f32.mxu0 %v2758
        %3251 = vmatmul.mubr.f32.gmra.mrb[0].mxu0 %v2726
        %v3252 = vpop.f32.mrb[0].mxu0
        %v3253 = vadd.f32 %v3159, %v3252
        %v3254 = vpop.f32.mrb[0].mxu0
        %3255 = vmatprep.mubr.f32.mxu0 %v2759
        %3256 = vmatmul.mubr.f32.gmra.mrb[0].mxu0 %v2727
        %v3257 = vpop.f32.mrb[0].mxu0
        %v3258 = vadd.f32 %v3159, %v3257
        %v3259 = vpop.f32.mrb[0].mxu0
        %3260 = vmatprep.mubr.f32.mxu0 %v2760
        %3261 = vmatmul.mubr.f32.gmra.mrb[0].mxu0 %v2728
        %v3262 = vpop.f32.mrb[0].mxu0
        %v3263 = vadd.f32 %v3159, %v3262
        %v3264 = vpop.f32.mrb[0].mxu0
        %3265 = vmatprep.mubr.f32.mxu0 %v2761
        %3266 = vmatmul.mubr.f32.gmra.mrb[0].mxu0 %v2729
        %v3267 = vpop.f32.mrb[0].mxu0
        %v3268 = vadd.f32 %v3159, %v3267
        %v3269 = vpop.f32.mrb[0].mxu0
        %3270 = vmatprep.mubr.f32.mxu0 %v2762
        %3271 = vmatmul.mubr.f32.gmra.mrb[0].mxu0 %v2730
        %v3272 = vpop.f32.mrb[0].mxu0
        %v3273 = vadd.f32 %v3159, %v3272
        %v3274 = vpop.f32.mrb[0].mxu0
        %3275 = vmatprep.mubr.f32.mxu0 %v2763
        %3276 = vmatmul.mubr.f32.gmra.mrb[0].mxu0 %v2731
        %v3277 = vpop.f32.mrb[0].mxu0
        %v3278 = vadd.f32 %v3159, %v3277
        %v3279 = vpop.f32.mrb[0].mxu0
        %3280 = vmatprep.mubr.f32.mxu0 %v2764
        %3281 = vmatmul.mubr.f32.gmra.mrb[0].mxu0 %v2732
        %v3282 = vpop.f32.mrb[0].mxu0
        %v3283 = vadd.f32 %v3159, %v3282
        %v3284 = vpop.f32.mrb[0].mxu0
        %3285 = vmatprep.mubr.f32.mxu0 %v2765
        %3286 = vmatmul.mubr.f32.gmra.mrb[0].mxu0 %v2733
        %v3287 = vpop.f32.mrb[0].mxu0
        %v3288 = vadd.f32 %v3159, %v3287
        %v3289 = vpop.f32.mrb[0].mxu0
        %3290 = vmatprep.mubr.f32.mxu0 %v2766
        %3291 = vmatmul.mubr.f32.gmra.mrb[0].mxu0 %v2734
        %v3292 = vpop.f32.mrb[0].mxu0
        %v3293 = vadd.f32 %v3159, %v3292
        %v3294 = vpop.f32.mrb[0].mxu0
        %3295 = vmatprep.mubr.f32.mxu0 %v2767
        %3296 = vmatmul.mubr.f32.gmra.mrb[0].mxu0 %v2735
        %v3297 = vpop.f32.mrb[0].mxu0
        %v3298 = vadd.f32 %v3159, %v3297
        %v3299 = vpop.f32.mrb[0].mxu0
        %3300 = vmatprep.mubr.f32.mxu0 %v2768
        %3301 = vmatmul.mubr.f32.gmra.mrb[0].mxu0 %v2736
        %v3302 = vpop.f32.mrb[0].mxu0
        %v3303 = vadd.f32 %v3159, %v3302
        %v3304 = vpop.f32.mrb[0].mxu0
        %3305 = vmatprep.mubr.f32.mxu0 %v2769
        %3306 = vmatmul.mubr.f32.gmra.mrb[0].mxu0 %v2737
        %v3307 = vpop.f32.mrb[0].mxu0
        %v3308 = vadd.f32 %v3159, %v3307
        %v3309 = vpop.f32.mrb[0].mxu0
        %3310 = vmatprep.mubr.f32.mxu0 %v2770
        %3311 = vmatmul.mubr.f32.gmra.mrb[0].mxu0 %v2738
        %v3312 = vpop.f32.mrb[0].mxu0
        %v3313 = vadd.f32 %v3159, %v3312
        %v3314 = vpop.f32.mrb[0].mxu0
        %3315 = vmatprep.mubr.f32.mxu0 %v2771
        %3316 = vmatmul.mubr.f32.gmra.mrb[0].mxu0 %v2739
        %v3317 = vpop.f32.mrb[0].mxu0
        %v3318 = vadd.f32 %v3159, %v3317
        %v3319 = vpop.f32.mrb[0].mxu0
        %3320 = vmatprep.mubr.f32.mxu0 %v2772
        %3321 = vmatmul.mubr.f32.gmra.mrb[0].mxu0 %v2740
        %v3322 = vpop.f32.mrb[0].mxu0
        %v3323 = vadd.f32 %v3159, %v3322
        %v3324 = vpop.f32.mrb[0].mxu0
        %3325 = vmatprep.mubr.f32.mxu0 %v2773
        %3326 = vmatmul.mubr.f32.gmra.mrb[0].mxu0 %v2741
        %v3327 = vpop.f32.mrb[0].mxu0
        %v3328 = vadd.f32 %v3159, %v3327
        %v3329 = vpop.f32.mrb[0].mxu0
        %3330 = vmatprep.mubr.f32.mxu0 %v2774
        %3331 = vmatmul.mubr.f32.gmra.mrb[0].mxu0 %v2742
        %v3332 = vpop.f32.mrb[0].mxu0
        %v3333 = vadd.f32 %v3159, %v3332
        %v3334 = vpop.f32.mrb[0].mxu0
        %3335 = vmatprep.mubr.f32.mxu0 %v2775
        %3336 = vmatmul.mubr.f32.gmra.mrb[0].mxu0 %v2743
        %v3337 = vpop.f32.mrb[0].mxu0
        %v3338 = vadd.f32 %v3159, %v3337
        %v3339 = vpop.f32.mrb[0].mxu0
        %3340 = vmatprep.mubr.f32.mxu0 %v2776
        %3341 = vmatmul.mubr.f32.gmra.mrb[0].mxu0 %v2744
        %v3342 = vpop.f32.mrb[0].mxu0
        %v3343 = vadd.f32 %v3159, %v3342
        %v3344 = vpop.f32.mrb[0].mxu0
        %3345 = vmatprep.mubr.f32.mxu0 %v2777
        %3346 = vmatmul.mubr.f32.gmra.mrb[0].mxu0 %v2745
        %v3347 = vpop.f32.mrb[0].mxu0
        %v3348 = vadd.f32 %v3159, %v3347
        %v3349 = vpop.f32.mrb[0].mxu0
        %3350 = vmatprep.mubr.f32.mxu0 %v2778
        %3351 = vmatmul.mubr.f32.gmra.mrb[0].mxu0 %v2746
        %v3352 = vpop.f32.mrb[0].mxu0
        %v3353 = vadd.f32 %v3159, %v3352
        %v3354 = vpop.f32.mrb[0].mxu0
        %3355 = vmatprep.mubr.f32.mxu0 %v2779
        %3356 = vmatmul.mubr.f32.gmra.mrb[0].mxu0 %v2747
        %v3357 = vpop.f32.mrb[0].mxu0
        %v3358 = vadd.f32 %v3159, %v3357
        %v3359 = vpop.f32.mrb[0].mxu0
        %3360 = vmatprep.mubr.f32.mxu0 %v2780
        %3361 = vmatmul.mubr.f32.gmra.mrb[0].mxu0 %v2748
        %v3362 = vpop.f32.mrb[0].mxu0
        %v3363 = vadd.f32 %v3159, %v3362
        %v3364 = vpop.f32.mrb[0].mxu0
        %3365 = vmatprep.mubr.f32.mxu0 %v2781
        %3366 = vmatmul.mubr.f32.gmra.mrb[0].mxu0 %v2749
        %v3367 = vpop.f32.mrb[0].mxu0
        %v3368 = vadd.f32 %v3159, %v3367
        %v3369 = vpop.f32.mrb[0].mxu0
        %3370 = vmatprep.mubr.f32.mxu0 %v2782
        %3371 = vmatmul.mubr.f32.gmra.mrb[0].mxu0 %v2750
        %v3372 = vpop.f32.mrb[0].mxu0
        %v3373 = vadd.f32 %v3159, %v3372
        %v3374 = vpop.f32.mrb[0].mxu0
        %3375 = vmatprep.mubr.f32.mxu0 %v2783
        %3376 = vmatmul.mubr.f32.gmra.mrb[0].mxu0 %v2751
        %v3377 = vpop.f32.mrb[0].mxu0
        %v3378 = vadd.f32 %v3159, %v3377
        %v3379 = vpop.f32.mrb[0].mxu0
        %3380 = vmatprep.mubr.f32.mxu0 %v2784
        %3381 = vmatmul.mubr.f32.gmra.mrb[0].mxu0 %v2752
        %v3382 = vpop.f32.mrb[0].mxu0
        %v3383 = vadd.f32 %v3159, %v3382
        %v3384 = vpop.f32.mrb[0].mxu0
        %3385 = vdwg.mxu0
        %3386 = vmatprep.subr.mxu0 0.0
        %3387 = vmatpush1.msra.mxu0 %v3042
        %3388 = vmatprep.subr.mxu0 0.0
        %3389 = vmatpush1.msra.mxu0 %v3043
        %3390 = vmatprep.subr.mxu0 0.0
        %3391 = vmatpush1.msra.mxu0 %v3044
        %3392 = vmatprep.subr.mxu0 0.0
        %3393 = vmatpush1.msra.mxu0 %v3045
        %3394 = vmatprep.subr.mxu0 0.0
        %3395 = vmatpush1.msra.mxu0 %v3046
        %3396 = vmatprep.subr.mxu0 0.0
        %3397 = vmatpush1.msra.mxu0 %v3047
        %3398 = vmatprep.subr.mxu0 0.0
        %3399 = vmatpush1.msra.mxu0 %v3048
        %3400 = vmatprep.subr.mxu0 0.0
        %3401 = vmatpush1.msra.mxu0 %v3049
        %3402 = vmatprep.subr.mxu0 0.0
        %3403 = vmatpush1.msra.mxu0 %v3050
        %3404 = vmatprep.subr.mxu0 0.0
        %3405 = vmatpush1.msra.mxu0 %v3051
        %3406 = vmatprep.subr.mxu0 0.0
        %3407 = vmatpush1.msra.mxu0 %v3052
        %3408 = vmatprep.subr.mxu0 0.0
        %3409 = vmatpush1.msra.mxu0 %v3053
        %3410 = vmatprep.subr.mxu0 0.0
        %3411 = vmatpush1.msra.mxu0 %v3054
        %3412 = vmatprep.subr.mxu0 0.0
        %3413 = vmatpush1.msra.mxu0 %v3055
        %3414 = vmatprep.subr.mxu0 0.0
        %3415 = vmatpush1.msra.mxu0 %v3056
        %3416 = vmatprep.subr.mxu0 0.0
        %3417 = vmatpush1.msra.mxu0 %v3057
        %3418 = vmatprep.subr.mxu0 0.0
        %3419 = vmatpush1.msra.mxu0 %v3058
        %3420 = vmatprep.subr.mxu0 0.0
        %3421 = vmatpush1.msra.mxu0 %v3059
        %3422 = vmatprep.subr.mxu0 0.0
        %3423 = vmatpush1.msra.mxu0 %v3060
        %3424 = vmatprep.subr.mxu0 0.0
        %3425 = vmatpush1.msra.mxu0 %v3061
        %3426 = vmatprep.subr.mxu0 0.0
        %3427 = vmatpush1.msra.mxu0 %v3062
        %3428 = vmatprep.subr.mxu0 0.0
        %3429 = vmatpush1.msra.mxu0 %v3063
        %3430 = vmatprep.subr.mxu0 0.0
        %3431 = vmatpush1.msra.mxu0 %v3064
        %3432 = vmatprep.subr.mxu0 0.0
        %3433 = vmatpush1.msra.mxu0 %v3065
        %3434 = vmatprep.subr.mxu0 0.0
        %3435 = vmatpush1.msra.mxu0 %v3066
        %3436 = vmatprep.subr.mxu0 0.0
        %3437 = vmatpush1.msra.mxu0 %v3067
        %3438 = vmatprep.subr.mxu0 0.0
        %3439 = vmatpush1.msra.mxu0 %v3068
        %3440 = vmatprep.subr.mxu0 0.0
        %3441 = vmatpush1.msra.mxu0 %v3069
        %3442 = vmatprep.subr.mxu0 0.0
        %3443 = vmatpush1.msra.mxu0 %v3070
        %3444 = vmatprep.subr.mxu0 0.0
        %3445 = vmatpush1.msra.mxu0 %v3071
        %3446 = vmatprep.subr.mxu0 0.0
        %3447 = vmatpush1.msra.mxu0 %v3072
        %3448 = vmatprep.subr.mxu0 0.0
        %3449 = vmatpush1.msra.mxu0 %v3073
        %3450 = vmatprep.mubr.f32.mxu0 %v2817
        %3451 = vmatmul.mubr.f32.gmra.mrb[0].mxu0 %v2785
        %v3452 = vpop.f32.mrb[0].mxu0
        %v3453 = vadd.f32 %v3228, %v3452
        %v3454 = vpop.f32.mrb[0].mxu0
        %3455 = vmatprep.mubr.f32.mxu0 %v2818
        %3456 = vmatmul.mubr.f32.gmra.mrb[0].mxu0 %v2786
        %v3457 = vpop.f32.mrb[0].mxu0
        %v3458 = vadd.f32 %v3233, %v3457
        %v3459 = vpop.f32.mrb[0].mxu0
        %3460 = vmatprep.mubr.f32.mxu0 %v2819
        %3461 = vmatmul.mubr.f32.gmra.mrb[0].mxu0 %v2787
        %v3462 = vpop.f32.mrb[0].mxu0
        %v3463 = vadd.f32 %v3238, %v3462
        %v3464 = vpop.f32.mrb[0].mxu0
        %3465 = vmatprep.mubr.f32.mxu0 %v2820
        %3466 = vmatmul.mubr.f32.gmra.mrb[0].mxu0 %v2788
        %v3467 = vpop.f32.mrb[0].mxu0
        %v3468 = vadd.f32 %v3243, %v3467
        %v3469 = vpop.f32.mrb[0].mxu0
        %3470 = vmatprep.mubr.f32.mxu0 %v2821
        %3471 = vmatmul.mubr.f32.gmra.mrb[0].mxu0 %v2789
        %v3472 = vpop.f32.mrb[0].mxu0
        %v3473 = vadd.f32 %v3248, %v3472
        %v3474 = vpop.f32.mrb[0].mxu0
        %3475 = vmatprep.mubr.f32.mxu0 %v2822
        %3476 = vmatmul.mubr.f32.gmra.mrb[0].mxu0 %v2790
        %v3477 = vpop.f32.mrb[0].mxu0
        %v3478 = vadd.f32 %v3253, %v3477
        %v3479 = vpop.f32.mrb[0].mxu0
        %3480 = vmatprep.mubr.f32.mxu0 %v2823
        %3481 = vmatmul.mubr.f32.gmra.mrb[0].mxu0 %v2791
        %v3482 = vpop.f32.mrb[0].mxu0
        %v3483 = vadd.f32 %v3258, %v3482
        %v3484 = vpop.f32.mrb[0].mxu0
        %3485 = vmatprep.mubr.f32.mxu0 %v2824
        %3486 = vmatmul.mubr.f32.gmra.mrb[0].mxu0 %v2792
        %v3487 = vpop.f32.mrb[0].mxu0
        %v3488 = vadd.f32 %v3263, %v3487
        %v3489 = vpop.f32.mrb[0].mxu0
        %3490 = vmatprep.mubr.f32.mxu0 %v2825
        %3491 = vmatmul.mubr.f32.gmra.mrb[0].mxu0 %v2793
        %v3492 = vpop.f32.mrb[0].mxu0
        %v3493 = vadd.f32 %v3268, %v3492
        %v3494 = vpop.f32.mrb[0].mxu0
        %3495 = vmatprep.mubr.f32.mxu0 %v2826
        %3496 = vmatmul.mubr.f32.gmra.mrb[0].mxu0 %v2794
        %v3497 = vpop.f32.mrb[0].mxu0
        %v3498 = vadd.f32 %v3273, %v3497
        %v3499 = vpop.f32.mrb[0].mxu0
        %3500 = vmatprep.mubr.f32.mxu0 %v2827
        %3501 = vmatmul.mubr.f32.gmra.mrb[0].mxu0 %v2795
        %v3502 = vpop.f32.mrb[0].mxu0
        %v3503 = vadd.f32 %v3278, %v3502
        %v3504 = vpop.f32.mrb[0].mxu0
        %3505 = vmatprep.mubr.f32.mxu0 %v2828
        %3506 = vmatmul.mubr.f32.gmra.mrb[0].mxu0 %v2796
        %v3507 = vpop.f32.mrb[0].mxu0
        %v3508 = vadd.f32 %v3283, %v3507
        %v3509 = vpop.f32.mrb[0].mxu0
        %3510 = vmatprep.mubr.f32.mxu0 %v2829
        %3511 = vmatmul.mubr.f32.gmra.mrb[0].mxu0 %v2797
        %v3512 = vpop.f32.mrb[0].mxu0
        %v3513 = vadd.f32 %v3288, %v3512
        %v3514 = vpop.f32.mrb[0].mxu0
        %3515 = vmatprep.mubr.f32.mxu0 %v2830
        %3516 = vmatmul.mubr.f32.gmra.mrb[0].mxu0 %v2798
        %v3517 = vpop.f32.mrb[0].mxu0
        %v3518 = vadd.f32 %v3293, %v3517
        %v3519 = vpop.f32.mrb[0].mxu0
        %3520 = vmatprep.mubr.f32.mxu0 %v2831
        %3521 = vmatmul.mubr.f32.gmra.mrb[0].mxu0 %v2799
        %v3522 = vpop.f32.mrb[0].mxu0
        %v3523 = vadd.f32 %v3298, %v3522
        %v3524 = vpop.f32.mrb[0].mxu0
        %3525 = vmatprep.mubr.f32.mxu0 %v2832
        %3526 = vmatmul.mubr.f32.gmra.mrb[0].mxu0 %v2800
        %v3527 = vpop.f32.mrb[0].mxu0
        %v3528 = vadd.f32 %v3303, %v3527
        %v3529 = vpop.f32.mrb[0].mxu0
        %3530 = vmatprep.mubr.f32.mxu0 %v2833
        %3531 = vmatmul.mubr.f32.gmra.mrb[0].mxu0 %v2801
        %v3532 = vpop.f32.mrb[0].mxu0
        %v3533 = vadd.f32 %v3308, %v3532
        %v3534 = vpop.f32.mrb[0].mxu0
        %3535 = vmatprep.mubr.f32.mxu0 %v2834
        %3536 = vmatmul.mubr.f32.gmra.mrb[0].mxu0 %v2802
        %v3537 = vpop.f32.mrb[0].mxu0
        %v3538 = vadd.f32 %v3313, %v3537
        %v3539 = vpop.f32.mrb[0].mxu0
        %3540 = vmatprep.mubr.f32.mxu0 %v2835
        %3541 = vmatmul.mubr.f32.gmra.mrb[0].mxu0 %v2803
        %v3542 = vpop.f32.mrb[0].mxu0
        %v3543 = vadd.f32 %v3318, %v3542
        %v3544 = vpop.f32.mrb[0].mxu0
        %3545 = vmatprep.mubr.f32.mxu0 %v2836
        %3546 = vmatmul.mubr.f32.gmra.mrb[0].mxu0 %v2804
        %v3547 = vpop.f32.mrb[0].mxu0
        %v3548 = vadd.f32 %v3323, %v3547
        %v3549 = vpop.f32.mrb[0].mxu0
        %3550 = vmatprep.mubr.f32.mxu0 %v2837
        %3551 = vmatmul.mubr.f32.gmra.mrb[0].mxu0 %v2805
        %v3552 = vpop.f32.mrb[0].mxu0
        %v3553 = vadd.f32 %v3328, %v3552
        %v3554 = vpop.f32.mrb[0].mxu0
        %3555 = vmatprep.mubr.f32.mxu0 %v2838
        %3556 = vmatmul.mubr.f32.gmra.mrb[0].mxu0 %v2806
        %v3557 = vpop.f32.mrb[0].mxu0
        %v3558 = vadd.f32 %v3333, %v3557
        %v3559 = vpop.f32.mrb[0].mxu0
        %3560 = vmatprep.mubr.f32.mxu0 %v2839
        %3561 = vmatmul.mubr.f32.gmra.mrb[0].mxu0 %v2807
        %v3562 = vpop.f32.mrb[0].mxu0
        %v3563 = vadd.f32 %v3338, %v3562
        %v3564 = vpop.f32.mrb[0].mxu0
        %3565 = vmatprep.mubr.f32.mxu0 %v2840
        %3566 = vmatmul.mubr.f32.gmra.mrb[0].mxu0 %v2808
        %v3567 = vpop.f32.mrb[0].mxu0
        %v3568 = vadd.f32 %v3343, %v3567
        %v3569 = vpop.f32.mrb[0].mxu0
        %3570 = vmatprep.mubr.f32.mxu0 %v2841
        %3571 = vmatmul.mubr.f32.gmra.mrb[0].mxu0 %v2809
        %v3572 = vpop.f32.mrb[0].mxu0
        %v3573 = vadd.f32 %v3348, %v3572
        %v3574 = vpop.f32.mrb[0].mxu0
        %3575 = vmatprep.mubr.f32.mxu0 %v2842
        %3576 = vmatmul.mubr.f32.gmra.mrb[0].mxu0 %v2810
        %v3577 = vpop.f32.mrb[0].mxu0
        %v3578 = vadd.f32 %v3353, %v3577
        %v3579 = vpop.f32.mrb[0].mxu0
        %3580 = vmatprep.mubr.f32.mxu0 %v2843
        %3581 = vmatmul.mubr.f32.gmra.mrb[0].mxu0 %v2811
        %v3582 = vpop.f32.mrb[0].mxu0
        %v3583 = vadd.f32 %v3358, %v3582
        %v3584 = vpop.f32.mrb[0].mxu0
        %3585 = vmatprep.mubr.f32.mxu0 %v2844
        %3586 = vmatmul.mubr.f32.gmra.mrb[0].mxu0 %v2812
        %v3587 = vpop.f32.mrb[0].mxu0
        %v3588 = vadd.f32 %v3363, %v3587
        %v3589 = vpop.f32.mrb[0].mxu0
        %3590 = vmatprep.mubr.f32.mxu0 %v2845
        %3591 = vmatmul.mubr.f32.gmra.mrb[0].mxu0 %v2813
        %v3592 = vpop.f32.mrb[0].mxu0
        %v3593 = vadd.f32 %v3368, %v3592
        %v3594 = vpop.f32.mrb[0].mxu0
        %3595 = vmatprep.mubr.f32.mxu0 %v2846
        %3596 = vmatmul.mubr.f32.gmra.mrb[0].mxu0 %v2814
        %v3597 = vpop.f32.mrb[0].mxu0
        %v3598 = vadd.f32 %v3373, %v3597
        %v3599 = vpop.f32.mrb[0].mxu0
        %3600 = vmatprep.mubr.f32.mxu0 %v2847
        %3601 = vmatmul.mubr.f32.gmra.mrb[0].mxu0 %v2815
        %v3602 = vpop.f32.mrb[0].mxu0
        %v3603 = vadd.f32 %v3378, %v3602
        %v3604 = vpop.f32.mrb[0].mxu0
        %3605 = vmatprep.mubr.f32.mxu0 %v2848
        %3606 = vmatmul.mubr.f32.gmra.mrb[0].mxu0 %v2816
        %v3607 = vpop.f32.mrb[0].mxu0
        %v3608 = vadd.f32 %v3383, %v3607
        %v3609 = vpop.f32.mrb[0].mxu0
        %3610 = vdwg.mxu0
        %3611 = vmatprep.subr.mxu0 0.0
        %3612 = vmatpush1.msra.mxu0 %v3074
        %3613 = vmatprep.subr.mxu0 0.0
        %3614 = vmatpush1.msra.mxu0 %v3075
        %3615 = vmatprep.subr.mxu0 0.0
        %3616 = vmatpush1.msra.mxu0 %v3076
        %3617 = vmatprep.subr.mxu0 0.0
        %3618 = vmatpush1.msra.mxu0 %v3077
        %3619 = vmatprep.subr.mxu0 0.0
        %3620 = vmatpush1.msra.mxu0 %v3078
        %3621 = vmatprep.subr.mxu0 0.0
        %3622 = vmatpush1.msra.mxu0 %v3079
        %3623 = vmatprep.subr.mxu0 0.0
        %3624 = vmatpush1.msra.mxu0 %v3080
        %3625 = vmatprep.subr.mxu0 0.0
        %3626 = vmatpush1.msra.mxu0 %v3081
        %3627 = vmatprep.subr.mxu0 0.0
        %3628 = vmatpush1.msra.mxu0 %v3082
        %3629 = vmatprep.subr.mxu0 0.0
        %3630 = vmatpush1.msra.mxu0 %v3083
        %3631 = vmatprep.subr.mxu0 0.0
        %3632 = vmatpush1.msra.mxu0 %v3084
        %3633 = vmatprep.subr.mxu0 0.0
        %3634 = vmatpush1.msra.mxu0 %v3085
        %3635 = vmatprep.subr.mxu0 0.0
        %3636 = vmatpush1.msra.mxu0 %v3086
        %3637 = vmatprep.subr.mxu0 0.0
        %3638 = vmatpush1.msra.mxu0 %v3087
        %3639 = vmatprep.subr.mxu0 0.0
        %3640 = vmatpush1.msra.mxu0 %v3088
        %3641 = vmatprep.subr.mxu0 0.0
        %3642 = vmatpush1.msra.mxu0 %v3089
        %3643 = vmatprep.subr.mxu0 0.0
        %3644 = vmatpush1.msra.mxu0 %v3090
        %3645 = vmatprep.subr.mxu0 0.0
        %3646 = vmatpush1.msra.mxu0 %v3091
        %3647 = vmatprep.subr.mxu0 0.0
        %3648 = vmatpush1.msra.mxu0 %v3092
        %3649 = vmatprep.subr.mxu0 0.0
        %3650 = vmatpush1.msra.mxu0 %v3093
        %3651 = vmatprep.subr.mxu0 0.0
        %3652 = vmatpush1.msra.mxu0 %v3094
        %3653 = vmatprep.subr.mxu0 0.0
        %3654 = vmatpush1.msra.mxu0 %v3095
        %3655 = vmatprep.subr.mxu0 0.0
        %3656 = vmatpush1.msra.mxu0 %v3096
        %3657 = vmatprep.subr.mxu0 0.0
        %3658 = vmatpush1.msra.mxu0 %v3097
        %3659 = vmatprep.subr.mxu0 0.0
        %3660 = vmatpush1.msra.mxu0 %v3098
        %3661 = vmatprep.subr.mxu0 0.0
        %3662 = vmatpush1.msra.mxu0 %v3099
        %3663 = vmatprep.subr.mxu0 0.0
        %3664 = vmatpush1.msra.mxu0 %v3100
        %3665 = vmatprep.subr.mxu0 0.0
        %3666 = vmatpush1.msra.mxu0 %v3101
        %3667 = vmatprep.subr.mxu0 0.0
        %3668 = vmatpush1.msra.mxu0 %v3102
        %3669 = vmatprep.subr.mxu0 0.0
        %3670 = vmatpush1.msra.mxu0 %v3103
        %3671 = vmatprep.subr.mxu0 0.0
        %3672 = vmatpush1.msra.mxu0 %v3104
        %3673 = vmatprep.subr.mxu0 0.0
        %3674 = vmatpush1.msra.mxu0 %v3105
        %3675 = vmatprep.mubr.f32.mxu0 %v2881
        %3676 = vmatmul.mubr.f32.gmra.mrb[0].mxu0 %v2849
        %v3677 = vpop.f32.mrb[0].mxu0
        %v3678 = vadd.f32 %v3453, %v3677
        %v3679 = vpop.f32.mrb[0].mxu0
        %3680 = vmatprep.mubr.f32.mxu0 %v2882
        %3681 = vmatmul.mubr.f32.gmra.mrb[0].mxu0 %v2850
        %v3682 = vpop.f32.mrb[0].mxu0
        %v3683 = vadd.f32 %v3458, %v3682
        %v3684 = vpop.f32.mrb[0].mxu0
        %3685 = vmatprep.mubr.f32.mxu0 %v2883
        %3686 = vmatmul.mubr.f32.gmra.mrb[0].mxu0 %v2851
        %v3687 = vpop.f32.mrb[0].mxu0
        %v3688 = vadd.f32 %v3463, %v3687
        %v3689 = vpop.f32.mrb[0].mxu0
        %3690 = vmatprep.mubr.f32.mxu0 %v2884
        %3691 = vmatmul.mubr.f32.gmra.mrb[0].mxu0 %v2852
        %v3692 = vpop.f32.mrb[0].mxu0
        %v3693 = vadd.f32 %v3468, %v3692
        %v3694 = vpop.f32.mrb[0].mxu0
        %3695 = vmatprep.mubr.f32.mxu0 %v2885
        %3696 = vmatmul.mubr.f32.gmra.mrb[0].mxu0 %v2853
        %v3697 = vpop.f32.mrb[0].mxu0
        %v3698 = vadd.f32 %v3473, %v3697
        %v3699 = vpop.f32.mrb[0].mxu0
        %3700 = vmatprep.mubr.f32.mxu0 %v2886
        %3701 = vmatmul.mubr.f32.gmra.mrb[0].mxu0 %v2854
        %v3702 = vpop.f32.mrb[0].mxu0
        %v3703 = vadd.f32 %v3478, %v3702
        %v3704 = vpop.f32.mrb[0].mxu0
        %3705 = vmatprep.mubr.f32.mxu0 %v2887
        %3706 = vmatmul.mubr.f32.gmra.mrb[0].mxu0 %v2855
        %v3707 = vpop.f32.mrb[0].mxu0
        %v3708 = vadd.f32 %v3483, %v3707
        %v3709 = vpop.f32.mrb[0].mxu0
        %3710 = vmatprep.mubr.f32.mxu0 %v2888
        %3711 = vmatmul.mubr.f32.gmra.mrb[0].mxu0 %v2856
        %v3712 = vpop.f32.mrb[0].mxu0
        %v3713 = vadd.f32 %v3488, %v3712
        %v3714 = vpop.f32.mrb[0].mxu0
        %3715 = vmatprep.mubr.f32.mxu0 %v2889
        %3716 = vmatmul.mubr.f32.gmra.mrb[0].mxu0 %v2857
        %v3717 = vpop.f32.mrb[0].mxu0
        %v3718 = vadd.f32 %v3493, %v3717
        %v3719 = vpop.f32.mrb[0].mxu0
        %3720 = vmatprep.mubr.f32.mxu0 %v2890
        %3721 = vmatmul.mubr.f32.gmra.mrb[0].mxu0 %v2858
        %v3722 = vpop.f32.mrb[0].mxu0
        %v3723 = vadd.f32 %v3498, %v3722
        %v3724 = vpop.f32.mrb[0].mxu0
        %3725 = vmatprep.mubr.f32.mxu0 %v2891
        %3726 = vmatmul.mubr.f32.gmra.mrb[0].mxu0 %v2859
        %v3727 = vpop.f32.mrb[0].mxu0
        %v3728 = vadd.f32 %v3503, %v3727
        %v3729 = vpop.f32.mrb[0].mxu0
        %3730 = vmatprep.mubr.f32.mxu0 %v2892
        %3731 = vmatmul.mubr.f32.gmra.mrb[0].mxu0 %v2860
        %v3732 = vpop.f32.mrb[0].mxu0
        %v3733 = vadd.f32 %v3508, %v3732
        %v3734 = vpop.f32.mrb[0].mxu0
        %3735 = vmatprep.mubr.f32.mxu0 %v2893
        %3736 = vmatmul.mubr.f32.gmra.mrb[0].mxu0 %v2861
        %v3737 = vpop.f32.mrb[0].mxu0
        %v3738 = vadd.f32 %v3513, %v3737
        %v3739 = vpop.f32.mrb[0].mxu0
        %3740 = vmatprep.mubr.f32.mxu0 %v2894
        %3741 = vmatmul.mubr.f32.gmra.mrb[0].mxu0 %v2862
        %v3742 = vpop.f32.mrb[0].mxu0
        %v3743 = vadd.f32 %v3518, %v3742
        %v3744 = vpop.f32.mrb[0].mxu0
        %3745 = vmatprep.mubr.f32.mxu0 %v2895
        %3746 = vmatmul.mubr.f32.gmra.mrb[0].mxu0 %v2863
        %v3747 = vpop.f32.mrb[0].mxu0
        %v3748 = vadd.f32 %v3523, %v3747
        %v3749 = vpop.f32.mrb[0].mxu0
        %3750 = vmatprep.mubr.f32.mxu0 %v2896
        %3751 = vmatmul.mubr.f32.gmra.mrb[0].mxu0 %v2864
        %v3752 = vpop.f32.mrb[0].mxu0
        %v3753 = vadd.f32 %v3528, %v3752
        %v3754 = vpop.f32.mrb[0].mxu0
        %3755 = vmatprep.mubr.f32.mxu0 %v2897
        %3756 = vmatmul.mubr.f32.gmra.mrb[0].mxu0 %v2865
        %v3757 = vpop.f32.mrb[0].mxu0
        %v3758 = vadd.f32 %v3533, %v3757
        %v3759 = vpop.f32.mrb[0].mxu0
        %3760 = vmatprep.mubr.f32.mxu0 %v2898
        %3761 = vmatmul.mubr.f32.gmra.mrb[0].mxu0 %v2866
        %v3762 = vpop.f32.mrb[0].mxu0
        %v3763 = vadd.f32 %v3538, %v3762
        %v3764 = vpop.f32.mrb[0].mxu0
        %3765 = vmatprep.mubr.f32.mxu0 %v2899
        %3766 = vmatmul.mubr.f32.gmra.mrb[0].mxu0 %v2867
        %v3767 = vpop.f32.mrb[0].mxu0
        %v3768 = vadd.f32 %v3543, %v3767
        %v3769 = vpop.f32.mrb[0].mxu0
        %3770 = vmatprep.mubr.f32.mxu0 %v2900
        %3771 = vmatmul.mubr.f32.gmra.mrb[0].mxu0 %v2868
        %v3772 = vpop.f32.mrb[0].mxu0
        %v3773 = vadd.f32 %v3548, %v3772
        %v3774 = vpop.f32.mrb[0].mxu0
        %3775 = vmatprep.mubr.f32.mxu0 %v2901
        %3776 = vmatmul.mubr.f32.gmra.mrb[0].mxu0 %v2869
        %v3777 = vpop.f32.mrb[0].mxu0
        %v3778 = vadd.f32 %v3553, %v3777
        %v3779 = vpop.f32.mrb[0].mxu0
        %3780 = vmatprep.mubr.f32.mxu0 %v2902
        %3781 = vmatmul.mubr.f32.gmra.mrb[0].mxu0 %v2870
        %v3782 = vpop.f32.mrb[0].mxu0
        %v3783 = vadd.f32 %v3558, %v3782
        %v3784 = vpop.f32.mrb[0].mxu0
        %3785 = vmatprep.mubr.f32.mxu0 %v2903
        %3786 = vmatmul.mubr.f32.gmra.mrb[0].mxu0 %v2871
        %v3787 = vpop.f32.mrb[0].mxu0
        %v3788 = vadd.f32 %v3563, %v3787
        %v3789 = vpop.f32.mrb[0].mxu0
        %3790 = vmatprep.mubr.f32.mxu0 %v2904
        %3791 = vmatmul.mubr.f32.gmra.mrb[0].mxu0 %v2872
        %v3792 = vpop.f32.mrb[0].mxu0
        %v3793 = vadd.f32 %v3568, %v3792
        %v3794 = vpop.f32.mrb[0].mxu0
        %3795 = vmatprep.mubr.f32.mxu0 %v2905
        %3796 = vmatmul.mubr.f32.gmra.mrb[0].mxu0 %v2873
        %v3797 = vpop.f32.mrb[0].mxu0
        %v3798 = vadd.f32 %v3573, %v3797
        %v3799 = vpop.f32.mrb[0].mxu0
        %3800 = vmatprep.mubr.f32.mxu0 %v2906
        %3801 = vmatmul.mubr.f32.gmra.mrb[0].mxu0 %v2874
        %v3802 = vpop.f32.mrb[0].mxu0
        %v3803 = vadd.f32 %v3578, %v3802
        %v3804 = vpop.f32.mrb[0].mxu0
        %3805 = vmatprep.mubr.f32.mxu0 %v2907
        %3806 = vmatmul.mubr.f32.gmra.mrb[0].mxu0 %v2875
        %v3807 = vpop.f32.mrb[0].mxu0
        %v3808 = vadd.f32 %v3583, %v3807
        %v3809 = vpop.f32.mrb[0].mxu0
        %3810 = vmatprep.mubr.f32.mxu0 %v2908
        %3811 = vmatmul.mubr.f32.gmra.mrb[0].mxu0 %v2876
        %v3812 = vpop.f32.mrb[0].mxu0
        %v3813 = vadd.f32 %v3588, %v3812
        %v3814 = vpop.f32.mrb[0].mxu0
        %3815 = vmatprep.mubr.f32.mxu0 %v2909
        %3816 = vmatmul.mubr.f32.gmra.mrb[0].mxu0 %v2877
        %v3817 = vpop.f32.mrb[0].mxu0
        %v3818 = vadd.f32 %v3593, %v3817
        %v3819 = vpop.f32.mrb[0].mxu0
        %3820 = vmatprep.mubr.f32.mxu0 %v2910
        %3821 = vmatmul.mubr.f32.gmra.mrb[0].mxu0 %v2878
        %v3822 = vpop.f32.mrb[0].mxu0
        %v3823 = vadd.f32 %v3598, %v3822
        %v3824 = vpop.f32.mrb[0].mxu0
        %3825 = vmatprep.mubr.f32.mxu0 %v2911
        %3826 = vmatmul.mubr.f32.gmra.mrb[0].mxu0 %v2879
        %v3827 = vpop.f32.mrb[0].mxu0
        %v3828 = vadd.f32 %v3603, %v3827
        %v3829 = vpop.f32.mrb[0].mxu0
        %3830 = vmatprep.mubr.f32.mxu0 %v2912
        %3831 = vmatmul.mubr.f32.gmra.mrb[0].mxu0 %v2880
        %v3832 = vpop.f32.mrb[0].mxu0
        %v3833 = vadd.f32 %v3608, %v3832
        %v3834 = vpop.f32.mrb[0].mxu0
        %3835 = vdwg.mxu0
        %3836 = vmatprep.subr.mxu0 0.0
        %3837 = vmatpush1.msra.mxu0 %v3106
        %3838 = vmatprep.subr.mxu0 0.0
        %3839 = vmatpush1.msra.mxu0 %v3107
        %3840 = vmatprep.subr.mxu0 0.0
        %3841 = vmatpush1.msra.mxu0 %v3108
        %3842 = vmatprep.subr.mxu0 0.0
        %3843 = vmatpush1.msra.mxu0 %v3109
        %3844 = vmatprep.subr.mxu0 0.0
        %3845 = vmatpush1.msra.mxu0 %v3110
        %3846 = vmatprep.subr.mxu0 0.0
        %3847 = vmatpush1.msra.mxu0 %v3111
        %3848 = vmatprep.subr.mxu0 0.0
        %3849 = vmatpush1.msra.mxu0 %v3112
        %3850 = vmatprep.subr.mxu0 0.0
        %3851 = vmatpush1.msra.mxu0 %v3113
        %3852 = vmatprep.subr.mxu0 0.0
        %3853 = vmatpush1.msra.mxu0 %v3114
        %3854 = vmatprep.subr.mxu0 0.0
        %3855 = vmatpush1.msra.mxu0 %v3115
        %3856 = vmatprep.subr.mxu0 0.0
        %3857 = vmatpush1.msra.mxu0 %v3116
        %3858 = vmatprep.subr.mxu0 0.0
        %3859 = vmatpush1.msra.mxu0 %v3117
        %3860 = vmatprep.subr.mxu0 0.0
        %3861 = vmatpush1.msra.mxu0 %v3118
        %3862 = vmatprep.subr.mxu0 0.0
        %3863 = vmatpush1.msra.mxu0 %v3119
        %3864 = vmatprep.subr.mxu0 0.0
        %3865 = vmatpush1.msra.mxu0 %v3120
        %3866 = vmatprep.subr.mxu0 0.0
        %3867 = vmatpush1.msra.mxu0 %v3121
        %3868 = vmatprep.subr.mxu0 0.0
        %3869 = vmatpush1.msra.mxu0 %v3122
        %3870 = vmatprep.subr.mxu0 0.0
        %3871 = vmatpush1.msra.mxu0 %v3123
        %3872 = vmatprep.subr.mxu0 0.0
        %3873 = vmatpush1.msra.mxu0 %v3124
        %3874 = vmatprep.subr.mxu0 0.0
        %3875 = vmatpush1.msra.mxu0 %v3125
        %3876 = vmatprep.subr.mxu0 0.0
        %3877 = vmatpush1.msra.mxu0 %v3126
        %3878 = vmatprep.subr.mxu0 0.0
        %3879 = vmatpush1.msra.mxu0 %v3127
        %3880 = vmatprep.subr.mxu0 0.0
        %3881 = vmatpush1.msra.mxu0 %v3128
        %3882 = vmatprep.subr.mxu0 0.0
        %3883 = vmatpush1.msra.mxu0 %v3129
        %3884 = vmatprep.subr.mxu0 0.0
        %3885 = vmatpush1.msra.mxu0 %v3130
        %3886 = vmatprep.subr.mxu0 0.0
        %3887 = vmatpush1.msra.mxu0 %v3131
        %3888 = vmatprep.subr.mxu0 0.0
        %3889 = vmatpush1.msra.mxu0 %v3132
        %3890 = vmatprep.subr.mxu0 0.0
        %3891 = vmatpush1.msra.mxu0 %v3133
        %3892 = vmatprep.subr.mxu0 0.0
        %3893 = vmatpush1.msra.mxu0 %v3134
        %3894 = vmatprep.subr.mxu0 0.0
        %3895 = vmatpush1.msra.mxu0 %v3135
        %3896 = vmatprep.subr.mxu0 0.0
        %3897 = vmatpush1.msra.mxu0 %v3136
        %3898 = vmatprep.subr.mxu0 0.0
        %3899 = vmatpush1.msra.mxu0 %v3137
        %3900 = vmatprep.mubr.f32.mxu0 %v2946
        %3901 = vmatmul.mubr.f32.gmra.mrb[0].mxu0 %v2914
        %v3902 = vpop.f32.mrb[0].mxu0
        %v3903 = vadd.f32 %v3678, %v3902
        %v3904 = vpop.f32.mrb[0].mxu0
        %3905 = vmatprep.mubr.f32.mxu0 %v2947
        %3906 = vmatmul.mubr.f32.gmra.mrb[0].mxu0 %v2915
        %v3907 = vpop.f32.mrb[0].mxu0
        %v3908 = vadd.f32 %v3683, %v3907
        %v3909 = vpop.f32.mrb[0].mxu0
        %3910 = vmatprep.mubr.f32.mxu0 %v2948
        %3911 = vmatmul.mubr.f32.gmra.mrb[0].mxu0 %v2916
        %v3912 = vpop.f32.mrb[0].mxu0
        %v3913 = vadd.f32 %v3688, %v3912
        %v3914 = vpop.f32.mrb[0].mxu0
        %3915 = vmatprep.mubr.f32.mxu0 %v2949
        %3916 = vmatmul.mubr.f32.gmra.mrb[0].mxu0 %v2917
        %v3917 = vpop.f32.mrb[0].mxu0
        %v3918 = vadd.f32 %v3693, %v3917
        %v3919 = vpop.f32.mrb[0].mxu0
        %3920 = vmatprep.mubr.f32.mxu0 %v2950
        %3921 = vmatmul.mubr.f32.gmra.mrb[0].mxu0 %v2918
        %v3922 = vpop.f32.mrb[0].mxu0
        %v3923 = vadd.f32 %v3698, %v3922
        %v3924 = vpop.f32.mrb[0].mxu0
        %3925 = vmatprep.mubr.f32.mxu0 %v2951
        %3926 = vmatmul.mubr.f32.gmra.mrb[0].mxu0 %v2919
        %v3927 = vpop.f32.mrb[0].mxu0
        %v3928 = vadd.f32 %v3703, %v3927
        %v3929 = vpop.f32.mrb[0].mxu0
        %3930 = vmatprep.mubr.f32.mxu0 %v2952
        %3931 = vmatmul.mubr.f32.gmra.mrb[0].mxu0 %v2920
        %v3932 = vpop.f32.mrb[0].mxu0
        %v3933 = vadd.f32 %v3708, %v3932
        %v3934 = vpop.f32.mrb[0].mxu0
        %3935 = vmatprep.mubr.f32.mxu0 %v2953
        %3936 = vmatmul.mubr.f32.gmra.mrb[0].mxu0 %v2921
        %v3937 = vpop.f32.mrb[0].mxu0
        %v3938 = vadd.f32 %v3713, %v3937
        %v3939 = vpop.f32.mrb[0].mxu0
        %3940 = vmatprep.mubr.f32.mxu0 %v2954
        %3941 = vmatmul.mubr.f32.gmra.mrb[0].mxu0 %v2922
        %v3942 = vpop.f32.mrb[0].mxu0
        %v3943 = vadd.f32 %v3718, %v3942
        %v3944 = vpop.f32.mrb[0].mxu0
        %3945 = vmatprep.mubr.f32.mxu0 %v2955
        %3946 = vmatmul.mubr.f32.gmra.mrb[0].mxu0 %v2923
        %v3947 = vpop.f32.mrb[0].mxu0
        %v3948 = vadd.f32 %v3723, %v3947
        %v3949 = vpop.f32.mrb[0].mxu0
        %3950 = vmatprep.mubr.f32.mxu0 %v2956
        %3951 = vmatmul.mubr.f32.gmra.mrb[0].mxu0 %v2924
        %v3952 = vpop.f32.mrb[0].mxu0
        %v3953 = vadd.f32 %v3728, %v3952
        %v3954 = vpop.f32.mrb[0].mxu0
        %3955 = vmatprep.mubr.f32.mxu0 %v2957
        %3956 = vmatmul.mubr.f32.gmra.mrb[0].mxu0 %v2925
        %v3957 = vpop.f32.mrb[0].mxu0
        %v3958 = vadd.f32 %v3733, %v3957
        %v3959 = vpop.f32.mrb[0].mxu0
        %3960 = vmatprep.mubr.f32.mxu0 %v2958
        %3961 = vmatmul.mubr.f32.gmra.mrb[0].mxu0 %v2926
        %v3962 = vpop.f32.mrb[0].mxu0
        %v3963 = vadd.f32 %v3738, %v3962
        %v3964 = vpop.f32.mrb[0].mxu0
        %3965 = vmatprep.mubr.f32.mxu0 %v2959
        %3966 = vmatmul.mubr.f32.gmra.mrb[0].mxu0 %v2927
        %v3967 = vpop.f32.mrb[0].mxu0
        %v3968 = vadd.f32 %v3743, %v3967
        %v3969 = vpop.f32.mrb[0].mxu0
        %3970 = vmatprep.mubr.f32.mxu0 %v2960
        %3971 = vmatmul.mubr.f32.gmra.mrb[0].mxu0 %v2928
        %v3972 = vpop.f32.mrb[0].mxu0
        %v3973 = vadd.f32 %v3748, %v3972
        %v3974 = vpop.f32.mrb[0].mxu0
        %3975 = vmatprep.mubr.f32.mxu0 %v2961
        %3976 = vmatmul.mubr.f32.gmra.mrb[0].mxu0 %v2929
        %v3977 = vpop.f32.mrb[0].mxu0
        %v3978 = vadd.f32 %v3753, %v3977
        %v3979 = vpop.f32.mrb[0].mxu0
        %3980 = vmatprep.mubr.f32.mxu0 %v2962
        %3981 = vmatmul.mubr.f32.gmra.mrb[0].mxu0 %v2930
        %v3982 = vpop.f32.mrb[0].mxu0
        %v3983 = vadd.f32 %v3758, %v3982
        %v3984 = vpop.f32.mrb[0].mxu0
        %3985 = vmatprep.mubr.f32.mxu0 %v2963
        %3986 = vmatmul.mubr.f32.gmra.mrb[0].mxu0 %v2931
        %v3987 = vpop.f32.mrb[0].mxu0
        %v3988 = vadd.f32 %v3763, %v3987
        %v3989 = vpop.f32.mrb[0].mxu0
        %3990 = vmatprep.mubr.f32.mxu0 %v2964
        %3991 = vmatmul.mubr.f32.gmra.mrb[0].mxu0 %v2932
        %v3992 = vpop.f32.mrb[0].mxu0
        %v3993 = vadd.f32 %v3768, %v3992
        %v3994 = vpop.f32.mrb[0].mxu0
        %3995 = vmatprep.mubr.f32.mxu0 %v2965
        %3996 = vmatmul.mubr.f32.gmra.mrb[0].mxu0 %v2933
        %v3997 = vpop.f32.mrb[0].mxu0
        %v3998 = vadd.f32 %v3773, %v3997
        %v3999 = vpop.f32.mrb[0].mxu0
        %4000 = vmatprep.mubr.f32.mxu0 %v2966
        %4001 = vmatmul.mubr.f32.gmra.mrb[0].mxu0 %v2934
        %v4002 = vpop.f32.mrb[0].mxu0
        %v4003 = vadd.f32 %v3778, %v4002
        %v4004 = vpop.f32.mrb[0].mxu0
        %4005 = vmatprep.mubr.f32.mxu0 %v2967
        %4006 = vmatmul.mubr.f32.gmra.mrb[0].mxu0 %v2935
        %v4007 = vpop.f32.mrb[0].mxu0
        %v4008 = vadd.f32 %v3783, %v4007
        %v4009 = vpop.f32.mrb[0].mxu0
        %4010 = vmatprep.mubr.f32.mxu0 %v2968
        %4011 = vmatmul.mubr.f32.gmra.mrb[0].mxu0 %v2936
        %v4012 = vpop.f32.mrb[0].mxu0
        %v4013 = vadd.f32 %v3788, %v4012
        %v4014 = vpop.f32.mrb[0].mxu0
        %4015 = vmatprep.mubr.f32.mxu0 %v2969
        %4016 = vmatmul.mubr.f32.gmra.mrb[0].mxu0 %v2937
        %v4017 = vpop.f32.mrb[0].mxu0
        %v4018 = vadd.f32 %v3793, %v4017
        %v4019 = vpop.f32.mrb[0].mxu0
        %4020 = vmatprep.mubr.f32.mxu0 %v2970
        %4021 = vmatmul.mubr.f32.gmra.mrb[0].mxu0 %v2938
        %v4022 = vpop.f32.mrb[0].mxu0
        %v4023 = vadd.f32 %v3798, %v4022
        %v4024 = vpop.f32.mrb[0].mxu0
        %4025 = vmatprep.mubr.f32.mxu0 %v2971
        %4026 = vmatmul.mubr.f32.gmra.mrb[0].mxu0 %v2939
        %v4027 = vpop.f32.mrb[0].mxu0
        %v4028 = vadd.f32 %v3803, %v4027
        %v4029 = vpop.f32.mrb[0].mxu0
        %4030 = vmatprep.mubr.f32.mxu0 %v2972
        %4031 = vmatmul.mubr.f32.gmra.mrb[0].mxu0 %v2940
        %v4032 = vpop.f32.mrb[0].mxu0
        %v4033 = vadd.f32 %v3808, %v4032
        %v4034 = vpop.f32.mrb[0].mxu0
        %4035 = vmatprep.mubr.f32.mxu0 %v2973
        %4036 = vmatmul.mubr.f32.gmra.mrb[0].mxu0 %v2941
        %v4037 = vpop.f32.mrb[0].mxu0
        %v4038 = vadd.f32 %v3813, %v4037
        %v4039 = vpop.f32.mrb[0].mxu0
        %4040 = vmatprep.mubr.f32.mxu0 %v2974
        %4041 = vmatmul.mubr.f32.gmra.mrb[0].mxu0 %v2942
        %v4042 = vpop.f32.mrb[0].mxu0
        %v4043 = vadd.f32 %v3818, %v4042
        %v4044 = vpop.f32.mrb[0].mxu0
        %4045 = vmatprep.mubr.f32.mxu0 %v2975
        %4046 = vmatmul.mubr.f32.gmra.mrb[0].mxu0 %v2943
        %v4047 = vpop.f32.mrb[0].mxu0
        %v4048 = vadd.f32 %v3823, %v4047
        %v4049 = vpop.f32.mrb[0].mxu0
        %4050 = vmatprep.mubr.f32.mxu0 %v2976
        %4051 = vmatmul.mubr.f32.gmra.mrb[0].mxu0 %v2944
        %v4052 = vpop.f32.mrb[0].mxu0
        %v4053 = vadd.f32 %v3828, %v4052
        %v4054 = vpop.f32.mrb[0].mxu0
        %4055 = vmatprep.mubr.f32.mxu0 %v2977
        %4056 = vmatmul.mubr.f32.gmra.mrb[0].mxu0 %v2945
        %v4057 = vpop.f32.mrb[0].mxu0
        %v4058 = vadd.f32 %v3833, %v4057
        %v4059 = vpop.f32.mrb[0].mxu0
        %4060 = vdwg.mxu0
        %4061 = vmatprep.subr.mxu0 0.0
        %4062 = vmatpush1.msra.mxu0 %v3138
        %4063 = vmatprep.subr.mxu0 0.0
        %4064 = vmatpush1.msra.mxu0 %v3139
        %4065 = vmatprep.subr.mxu0 0.0
        %4066 = vmatpush1.msra.mxu0 %v3140
        %4067 = vmatprep.subr.mxu0 0.0
        %4068 = vmatpush1.msra.mxu0 %v3141
        %4069 = vmatprep.subr.mxu0 0.0
        %4070 = vmatpush1.msra.mxu0 %v3142
        %4071 = vmatprep.subr.mxu0 0.0
        %4072 = vmatpush1.msra.mxu0 %v3143
        %4073 = vmatprep.subr.mxu0 0.0
        %4074 = vmatpush1.msra.mxu0 %v3144
        %4075 = vmatprep.subr.mxu0 0.0
        %4076 = vmatpush1.msra.mxu0 %v3145
        %4077 = vmatprep.subr.mxu0 0.0
        %4078 = vmatpush1.msra.mxu0 %v3146
        %4079 = vmatprep.subr.mxu0 0.0
        %4080 = vmatpush1.msra.mxu0 %v3147
        %4081 = vmatprep.subr.mxu0 0.0
        %4082 = vmatpush1.msra.mxu0 %v3148
        %4083 = vmatprep.subr.mxu0 0.0
        %4084 = vmatpush1.msra.mxu0 %v3149
        %4085 = vmatprep.subr.mxu0 0.0
        %4086 = vmatpush1.msra.mxu0 %v3150
        %4087 = vmatprep.subr.mxu0 0.0
        %4088 = vmatpush1.msra.mxu0 %v3151
        %4089 = vmatprep.subr.mxu0 0.0
        %4090 = vmatpush1.msra.mxu0 %v3152
        %4091 = vmatprep.subr.mxu0 0.0
        %4092 = vmatpush1.msra.mxu0 %v3153
        %4093 = vmatprep.subr.mxu0 0.0
        %4094 = vmatpush1.msra.mxu0 0.0
        %4095 = vmatprep.subr.mxu0 0.0
        %4096 = vmatpush1.msra.mxu0 0.0
        %4097 = vmatprep.subr.mxu0 0.0
        %4098 = vmatpush1.msra.mxu0 0.0
        %4099 = vmatprep.subr.mxu0 0.0
        %4100 = vmatpush1.msra.mxu0 0.0
        %4101 = vmatprep.subr.mxu0 0.0
        %4102 = vmatpush1.msra.mxu0 0.0
        %4103 = vmatprep.subr.mxu0 0.0
        %4104 = vmatpush1.msra.mxu0 0.0
        %4105 = vmatprep.subr.mxu0 0.0
        %4106 = vmatpush1.msra.mxu0 0.0
        %4107 = vmatprep.subr.mxu0 0.0
        %4108 = vmatpush1.msra.mxu0 0.0
        %4109 = vmatprep.subr.mxu0 0.0
        %4110 = vmatpush1.msra.mxu0 0.0
        %4111 = vmatprep.subr.mxu0 0.0
        %4112 = vmatpush1.msra.mxu0 0.0
        %4113 = vmatprep.subr.mxu0 0.0
        %4114 = vmatpush1.msra.mxu0 0.0
        %4115 = vmatprep.subr.mxu0 0.0
        %4116 = vmatpush1.msra.mxu0 0.0
        %4117 = vmatprep.subr.mxu0 0.0
        %4118 = vmatpush1.msra.mxu0 0.0
        %4119 = vmatprep.subr.mxu0 0.0
        %4120 = vmatpush1.msra.mxu0 0.0
        %4121 = vmatprep.subr.mxu0 0.0
        %4122 = vmatpush1.msra.mxu0 0.0
        %4123 = vmatprep.subr.mxu0 0.0
        %4124 = vmatpush1.msra.mxu0 0.0
        %4125 = vmatprep.mubr.f32.mxu0 0.0
        %4126 = vmatmul.mubr.f32.gmra.mrb[0].mxu0 %v2978
        %v4127 = vpop.f32.mrb[0].mxu0
        %v4128 = vadd.f32 %v3903, %v4127
        %v4129 = vpop.f32.mrb[0].mxu0
        %4130 = vmatprep.mubr.f32.mxu0 0.0
        %4131 = vmatmul.mubr.f32.gmra.mrb[0].mxu0 %v2979
        %v4132 = vpop.f32.mrb[0].mxu0
        %v4133 = vadd.f32 %v3908, %v4132
        %v4134 = vpop.f32.mrb[0].mxu0
        %4135 = vmatprep.mubr.f32.mxu0 0.0
        %4136 = vmatmul.mubr.f32.gmra.mrb[0].mxu0 %v2980
        %v4137 = vpop.f32.mrb[0].mxu0
        %v4138 = vadd.f32 %v3913, %v4137
        %v4139 = vpop.f32.mrb[0].mxu0
        %4140 = vmatprep.mubr.f32.mxu0 0.0
        %4141 = vmatmul.mubr.f32.gmra.mrb[0].mxu0 %v2981
        %v4142 = vpop.f32.mrb[0].mxu0
        %v4143 = vadd.f32 %v3918, %v4142
        %v4144 = vpop.f32.mrb[0].mxu0
        %4145 = vmatprep.mubr.f32.mxu0 0.0
        %4146 = vmatmul.mubr.f32.gmra.mrb[0].mxu0 %v2982
        %v4147 = vpop.f32.mrb[0].mxu0
        %v4148 = vadd.f32 %v3923, %v4147
        %v4149 = vpop.f32.mrb[0].mxu0
        %4150 = vmatprep.mubr.f32.mxu0 0.0
        %4151 = vmatmul.mubr.f32.gmra.mrb[0].mxu0 %v2983
        %v4152 = vpop.f32.mrb[0].mxu0
        %v4153 = vadd.f32 %v3928, %v4152
        %v4154 = vpop.f32.mrb[0].mxu0
        %4155 = vmatprep.mubr.f32.mxu0 0.0
        %4156 = vmatmul.mubr.f32.gmra.mrb[0].mxu0 %v2984
        %v4157 = vpop.f32.mrb[0].mxu0
        %v4158 = vadd.f32 %v3933, %v4157
        %v4159 = vpop.f32.mrb[0].mxu0
        %4160 = vmatprep.mubr.f32.mxu0 0.0
        %4161 = vmatmul.mubr.f32.gmra.mrb[0].mxu0 %v2985
        %v4162 = vpop.f32.mrb[0].mxu0
        %v4163 = vadd.f32 %v3938, %v4162
        %v4164 = vpop.f32.mrb[0].mxu0
        %4165 = vmatprep.mubr.f32.mxu0 0.0
        %4166 = vmatmul.mubr.f32.gmra.mrb[0].mxu0 %v2986
        %v4167 = vpop.f32.mrb[0].mxu0
        %v4168 = vadd.f32 %v3943, %v4167
        %v4169 = vpop.f32.mrb[0].mxu0
        %4170 = vmatprep.mubr.f32.mxu0 0.0
        %4171 = vmatmul.mubr.f32.gmra.mrb[0].mxu0 %v2987
        %v4172 = vpop.f32.mrb[0].mxu0
        %v4173 = vadd.f32 %v3948, %v4172
        %v4174 = vpop.f32.mrb[0].mxu0
        %4175 = vmatprep.mubr.f32.mxu0 0.0
        %4176 = vmatmul.mubr.f32.gmra.mrb[0].mxu0 %v2988
        %v4177 = vpop.f32.mrb[0].mxu0
        %v4178 = vadd.f32 %v3953, %v4177
        %v4179 = vpop.f32.mrb[0].mxu0
        %4180 = vmatprep.mubr.f32.mxu0 0.0
        %4181 = vmatmul.mubr.f32.gmra.mrb[0].mxu0 %v2989
        %v4182 = vpop.f32.mrb[0].mxu0
        %v4183 = vadd.f32 %v3958, %v4182
        %v4184 = vpop.f32.mrb[0].mxu0
        %4185 = vmatprep.mubr.f32.mxu0 0.0
        %4186 = vmatmul.mubr.f32.gmra.mrb[0].mxu0 %v2990
        %v4187 = vpop.f32.mrb[0].mxu0
        %v4188 = vadd.f32 %v3963, %v4187
        %v4189 = vpop.f32.mrb[0].mxu0
        %4190 = vmatprep.mubr.f32.mxu0 0.0
        %4191 = vmatmul.mubr.f32.gmra.mrb[0].mxu0 %v2991
        %v4192 = vpop.f32.mrb[0].mxu0
        %v4193 = vadd.f32 %v3968, %v4192
        %v4194 = vpop.f32.mrb[0].mxu0
        %4195 = vmatprep.mubr.f32.mxu0 0.0
        %4196 = vmatmul.mubr.f32.gmra.mrb[0].mxu0 %v2992
        %v4197 = vpop.f32.mrb[0].mxu0
        %v4198 = vadd.f32 %v3973, %v4197
        %v4199 = vpop.f32.mrb[0].mxu0
        %4200 = vmatprep.mubr.f32.mxu0 0.0
        %4201 = vmatmul.mubr.f32.gmra.mrb[0].mxu0 %v2993
        %v4202 = vpop.f32.mrb[0].mxu0
        %v4203 = vadd.f32 %v3978, %v4202
        %v4204 = vpop.f32.mrb[0].mxu0
        %4205 = vmatprep.mubr.f32.mxu0 0.0
        %4206 = vmatmul.mubr.f32.gmra.mrb[0].mxu0 %v2994
        %v4207 = vpop.f32.mrb[0].mxu0
        %v4208 = vadd.f32 %v3983, %v4207
        %v4209 = vpop.f32.mrb[0].mxu0
        %4210 = vmatprep.mubr.f32.mxu0 0.0
        %4211 = vmatmul.mubr.f32.gmra.mrb[0].mxu0 %v2995
        %v4212 = vpop.f32.mrb[0].mxu0
        %v4213 = vadd.f32 %v3988, %v4212
        %v4214 = vpop.f32.mrb[0].mxu0
        %4215 = vmatprep.mubr.f32.mxu0 0.0
        %4216 = vmatmul.mubr.f32.gmra.mrb[0].mxu0 %v2996
        %v4217 = vpop.f32.mrb[0].mxu0
        %v4218 = vadd.f32 %v3993, %v4217
        %v4219 = vpop.f32.mrb[0].mxu0
        %4220 = vmatprep.mubr.f32.mxu0 0.0
        %4221 = vmatmul.mubr.f32.gmra.mrb[0].mxu0 %v2997
        %v4222 = vpop.f32.mrb[0].mxu0
        %v4223 = vadd.f32 %v3998, %v4222
        %v4224 = vpop.f32.mrb[0].mxu0
        %4225 = vmatprep.mubr.f32.mxu0 0.0
        %4226 = vmatmul.mubr.f32.gmra.mrb[0].mxu0 %v2998
        %v4227 = vpop.f32.mrb[0].mxu0
        %v4228 = vadd.f32 %v4003, %v4227
        %v4229 = vpop.f32.mrb[0].mxu0
        %4230 = vmatprep.mubr.f32.mxu0 0.0
        %4231 = vmatmul.mubr.f32.gmra.mrb[0].mxu0 %v2999
        %v4232 = vpop.f32.mrb[0].mxu0
        %v4233 = vadd.f32 %v4008, %v4232
        %v4234 = vpop.f32.mrb[0].mxu0
        %4235 = vmatprep.mubr.f32.mxu0 0.0
        %4236 = vmatmul.mubr.f32.gmra.mrb[0].mxu0 %v3000
        %v4237 = vpop.f32.mrb[0].mxu0
        %v4238 = vadd.f32 %v4013, %v4237
        %v4239 = vpop.f32.mrb[0].mxu0
        %4240 = vmatprep.mubr.f32.mxu0 0.0
        %4241 = vmatmul.mubr.f32.gmra.mrb[0].mxu0 %v3001
        %v4242 = vpop.f32.mrb[0].mxu0
        %v4243 = vadd.f32 %v4018, %v4242
        %v4244 = vpop.f32.mrb[0].mxu0
        %4245 = vmatprep.mubr.f32.mxu0 0.0
        %4246 = vmatmul.mubr.f32.gmra.mrb[0].mxu0 %v3002
        %v4247 = vpop.f32.mrb[0].mxu0
        %v4248 = vadd.f32 %v4023, %v4247
        %v4249 = vpop.f32.mrb[0].mxu0
        %4250 = vmatprep.mubr.f32.mxu0 0.0
        %4251 = vmatmul.mubr.f32.gmra.mrb[0].mxu0 %v3003
        %v4252 = vpop.f32.mrb[0].mxu0
        %v4253 = vadd.f32 %v4028, %v4252
        %v4254 = vpop.f32.mrb[0].mxu0
        %4255 = vmatprep.mubr.f32.mxu0 0.0
        %4256 = vmatmul.mubr.f32.gmra.mrb[0].mxu0 %v3004
        %v4257 = vpop.f32.mrb[0].mxu0
        %v4258 = vadd.f32 %v4033, %v4257
        %v4259 = vpop.f32.mrb[0].mxu0
        %4260 = vmatprep.mubr.f32.mxu0 0.0
        %4261 = vmatmul.mubr.f32.gmra.mrb[0].mxu0 %v3005
        %v4262 = vpop.f32.mrb[0].mxu0
        %v4263 = vadd.f32 %v4038, %v4262
        %v4264 = vpop.f32.mrb[0].mxu0
        %4265 = vmatprep.mubr.f32.mxu0 0.0
        %4266 = vmatmul.mubr.f32.gmra.mrb[0].mxu0 %v3006
        %v4267 = vpop.f32.mrb[0].mxu0
        %v4268 = vadd.f32 %v4043, %v4267
        %v4269 = vpop.f32.mrb[0].mxu0
        %4270 = vmatprep.mubr.f32.mxu0 0.0
        %4271 = vmatmul.mubr.f32.gmra.mrb[0].mxu0 %v3007
        %v4272 = vpop.f32.mrb[0].mxu0
        %v4273 = vadd.f32 %v4048, %v4272
        %v4274 = vpop.f32.mrb[0].mxu0
        %4275 = vmatprep.mubr.f32.mxu0 0.0
        %4276 = vmatmul.mubr.f32.gmra.mrb[0].mxu0 %v3008
        %v4277 = vpop.f32.mrb[0].mxu0
        %v4278 = vadd.f32 %v4053, %v4277
        %v4279 = vpop.f32.mrb[0].mxu0
        %4280 = vmatprep.mubr.f32.mxu0 0.0
        %4281 = vmatmul.mubr.f32.gmra.mrb[0].mxu0 %v3009
        %v4282 = vpop.f32.mrb[0].mxu0
        %v4283 = vadd.f32 %v4058, %v4282
        %v4284 = vpop.f32.mrb[0].mxu0
        %4285 = vdwg.mxu0
        %vm4286 = vcmp.gt.f32.partialorder %v4128, 0.0
        %vm4287 = vcmp.gt.f32.partialorder %v4133, 0.0
        %vm4288 = vcmp.gt.f32.partialorder %v4138, 0.0
        %vm4289 = vcmp.gt.f32.partialorder %v4143, 0.0
        %vm4290 = vcmp.gt.f32.partialorder %v4148, 0.0
        %vm4291 = vcmp.gt.f32.partialorder %v4153, 0.0
        %vm4292 = vcmp.gt.f32.partialorder %v4158, 0.0
        %vm4293 = vcmp.gt.f32.partialorder %v4163, 0.0
        %vm4294 = vcmp.gt.f32.partialorder %v4168, 0.0
        %vm4295 = vcmp.gt.f32.partialorder %v4173, 0.0
        %vm4296 = vcmp.gt.f32.partialorder %v4178, 0.0
        %vm4297 = vcmp.gt.f32.partialorder %v4183, 0.0
        %vm4298 = vcmp.gt.f32.partialorder %v4188, 0.0
        %vm4299 = vcmp.gt.f32.partialorder %v4193, 0.0
        %vm4300 = vcmp.gt.f32.partialorder %v4198, 0.0
        %vm4301 = vcmp.gt.f32.partialorder %v4203, 0.0
        %vm4302 = vcmp.gt.f32.partialorder %v4208, 0.0
        %vm4303 = vcmp.gt.f32.partialorder %v4213, 0.0
        %vm4304 = vcmp.gt.f32.partialorder %v4218, 0.0
        %vm4305 = vcmp.gt.f32.partialorder %v4223, 0.0
        %vm4306 = vcmp.gt.f32.partialorder %v4228, 0.0
        %vm4307 = vcmp.gt.f32.partialorder %v4233, 0.0
        %vm4308 = vcmp.gt.f32.partialorder %v4238, 0.0
        %vm4309 = vcmp.gt.f32.partialorder %v4243, 0.0
        %vm4310 = vcmp.gt.f32.partialorder %v4248, 0.0
        %vm4311 = vcmp.gt.f32.partialorder %v4253, 0.0
        %vm4312 = vcmp.gt.f32.partialorder %v4258, 0.0
        %vm4313 = vcmp.gt.f32.partialorder %v4263, 0.0
        %vm4314 = vcmp.gt.f32.partialorder %v4268, 0.0
        %vm4315 = vcmp.gt.f32.partialorder %v4273, 0.0
        %vm4316 = vcmp.gt.f32.partialorder %v4278, 0.0
        %vm4317 = vcmp.gt.f32.partialorder %v4283, 0.0
        %v4318 = vld [vmem:[%s6] sm:$0x1]
        %v4320 = vlaneseq
        %v4321 = vshrl.u32 %v4320, 7
        %v4322 = vsub.s32 0, %v4321
        %v4323 = vrot.slane %v4318, %v4322
        %v4325 = vmul.f32 %v4323, %v4128
        %v4326 = vmul.f32 %v4323, %v4133
        %v4327 = vmul.f32 %v4323, %v4138
        %v4328 = vmul.f32 %v4323, %v4143
        %v4329 = vmul.f32 %v4323, %v4148
        %v4330 = vmul.f32 %v4323, %v4153
        %v4331 = vmul.f32 %v4323, %v4158
        %v4332 = vmul.f32 %v4323, %v4163
        %v4333 = vmul.f32 %v4323, %v4168
        %v4334 = vmul.f32 %v4323, %v4173
        %v4335 = vmul.f32 %v4323, %v4178
        %v4336 = vmul.f32 %v4323, %v4183
        %v4337 = vmul.f32 %v4323, %v4188
        %v4338 = vmul.f32 %v4323, %v4193
        %v4339 = vmul.f32 %v4323, %v4198
        %v4340 = vmul.f32 %v4323, %v4203
        %v4341 = vmul.f32 %v4323, %v4208
        %v4342 = vmul.f32 %v4323, %v4213
        %v4343 = vmul.f32 %v4323, %v4218
        %v4344 = vmul.f32 %v4323, %v4223
        %v4345 = vmul.f32 %v4323, %v4228
        %v4346 = vmul.f32 %v4323, %v4233
        %v4347 = vmul.f32 %v4323, %v4238
        %v4348 = vmul.f32 %v4323, %v4243
        %v4349 = vmul.f32 %v4323, %v4248
        %v4350 = vmul.f32 %v4323, %v4253
        %v4351 = vmul.f32 %v4323, %v4258
        %v4352 = vmul.f32 %v4323, %v4263
        %v4353 = vmul.f32 %v4323, %v4268
        %v4354 = vmul.f32 %v4323, %v4273
        %v4355 = vmul.f32 %v4323, %v4278
        %v4356 = vmul.f32 %v4323, %v4283
        %v4357 = vsel %vm4286, %v4128, %v4325
        %v4358 = vsel %vm4287, %v4133, %v4326
        %v4359 = vsel %vm4288, %v4138, %v4327
        %v4360 = vsel %vm4289, %v4143, %v4328
        %v4361 = vsel %vm4290, %v4148, %v4329
        %v4362 = vsel %vm4291, %v4153, %v4330
        %v4363 = vsel %vm4292, %v4158, %v4331
        %v4364 = vsel %vm4293, %v4163, %v4332
        %v4365 = vsel %vm4294, %v4168, %v4333
        %v4366 = vsel %vm4295, %v4173, %v4334
        %v4367 = vsel %vm4296, %v4178, %v4335
        %v4368 = vsel %vm4297, %v4183, %v4336
        %v4369 = vsel %vm4298, %v4188, %v4337
        %v4370 = vsel %vm4299, %v4193, %v4338
        %v4371 = vsel %vm4300, %v4198, %v4339
        %v4372 = vsel %vm4301, %v4203, %v4340
        %v4373 = vsel %vm4302, %v4208, %v4341
        %v4374 = vsel %vm4303, %v4213, %v4342
        %v4375 = vsel %vm4304, %v4218, %v4343
        %v4376 = vsel %vm4305, %v4223, %v4344
        %v4377 = vsel %vm4306, %v4228, %v4345
        %v4378 = vsel %vm4307, %v4233, %v4346
        %v4379 = vsel %vm4308, %v4238, %v4347
        %v4380 = vsel %vm4309, %v4243, %v4348
        %v4381 = vsel %vm4310, %v4248, %v4349
        %v4382 = vsel %vm4311, %v4253, %v4350
        %v4383 = vsel %vm4312, %v4258, %v4351
        %v4384 = vsel %vm4313, %v4263, %v4352
        %v4385 = vsel %vm4314, %v4268, %v4353
        %v4386 = vsel %vm4315, %v4273, %v4354
        %v4387 = vsel %vm4316, %v4278, %v4355
        %v4388 = vsel %vm4317, %v4283, %v4356
        %4389 = vst [vmem:[%s286] sm:$0xff] %v4357
        %4390 = vst [vmem:[%s286 + $0x8] sm:$0xff] %v4358
        %4391 = vst [vmem:[%s286 + $0x10] sm:$0xff] %v4359
        %4392 = vst [vmem:[%s286 + $0x18] sm:$0xff] %v4360
        %4393 = vst [vmem:[%s286 + $0x20] sm:$0xff] %v4361
        %4394 = vst [vmem:[%s286 + $0x28] sm:$0xff] %v4362
        %4395 = vst [vmem:[%s286 + $0x30] sm:$0xff] %v4363
        %4396 = vst [vmem:[%s286 + $0x38] sm:$0xff] %v4364
        %4397 = vst [vmem:[%s286 + $0x40] sm:$0xff] %v4365
        %4398 = vst [vmem:[%s286 + $0x48] sm:$0xff] %v4366
        %4399 = vst [vmem:[%s286 + $0x50] sm:$0xff] %v4367
        %4400 = vst [vmem:[%s286 + $0x58] sm:$0xff] %v4368
        %4401 = vst [vmem:[%s286 + $0x60] sm:$0xff] %v4369
        %4402 = vst [vmem:[%s286 + $0x68] sm:$0xff] %v4370
        %4403 = vst [vmem:[%s286 + $0x70] sm:$0xff] %v4371
        %4404 = vst [vmem:[%s286 + $0x78] sm:$0xff] %v4372
        %4405 = vst [vmem:[%s286 + $0x80] sm:$0xff] %v4373
        %4406 = vst [vmem:[%s286 + $0x88] sm:$0xff] %v4374
        %4407 = vst [vmem:[%s286 + $0x90] sm:$0xff] %v4375
        %4408 = vst [vmem:[%s286 + $0x98] sm:$0xff] %v4376
        %4409 = vst [vmem:[%s286 + $0xa0] sm:$0xff] %v4377
        %4410 = vst [vmem:[%s286 + $0xa8] sm:$0xff] %v4378
        %4411 = vst [vmem:[%s286 + $0xb0] sm:$0xff] %v4379
        %4412 = vst [vmem:[%s286 + $0xb8] sm:$0xff] %v4380
        %4413 = vst [vmem:[%s286 + $0xc0] sm:$0xff] %v4381
        %4414 = vst [vmem:[%s286 + $0xc8] sm:$0xff] %v4382
        %4415 = vst [vmem:[%s286 + $0xd0] sm:$0xff] %v4383
        %4416 = vst [vmem:[%s286 + $0xd8] sm:$0xff] %v4384
        %4417 = vst [vmem:[%s286 + $0xe0] sm:$0xff] %v4385
        %4418 = vst [vmem:[%s286 + $0xe8] sm:$0xff] %v4386
        %4419 = vst [vmem:[%s286 + $0xf0] sm:$0xff] %v4387
        %4420 = vst [vmem:[%s286 + $0xf8] sm:$0xff] %v4388
        %s4421 = sand.u32 %s182, 1
        %s4422 = scalar_lea.sflag [#allocation7], %s4421
        %s4423 = sand.u32 %s182, 1
        %s4424 = smul.addr %s4423, 256
        %s4425 = scalar_lea.vmem [#allocation8], %s4424
        // Predicated region
        $region53: #{tpu_custom_call.1} parent=47 // pred_check
          %p4426 = pneg %p192
        $region54: #{tpu_custom_call.1} parent=47 // pred_check_branch
          %4428 = sbr.rel (%p4426) target = $region56
        $region55: #{tpu_custom_call.1} parent=47 // pred_region
          %s4430 = ssub.s32 4096, 4096
          %4431 = vsyncadd %s4422, %s4430
          %s4432 = smul.addr %s22, 32
          %s4433 = smul.addr %s4432, 128
          %s4434 = scalar_lea.hbm %s7, %s4433
          %s4435 = sshll.u32 %s4425, 4
          %s4436 = int_to_ptr.vmem [resolvable:$true] %s4435
          %4441 = dma.vmem_to_hbm [thread:$0]  %s4436, 4096, %s4434, %s4422, 128, 128, 8
        $region56: #{tpu_custom_call.1} parent=47 // pred_fallthru
          _
      $region48: #{tpu_custom_call.1} parent=5 // pred_fallthru
        _
      %p4442 = scmp.le.s32.totalorder 2, %s17
      // Predicated region
      $region57: #{tpu_custom_call.1} parent=5 // pred_check
        %p4443 = pneg %p4442
      $region58: #{tpu_custom_call.1} parent=5 // pred_check_branch
        %4445 = sbr.rel (%p4443) target = $region60
      $region59: #{tpu_custom_call.1} parent=5 // pred_region
        %s4446 = ssub.s32 %s17, 2
        // Predicated region
        $region61: #{tpu_custom_call.1} parent=59 // pred_check
          %p4447 = pneg %p198
        $region62: #{tpu_custom_call.1} parent=59 // pred_check_branch
          %4449 = sbr.rel (%p4447) target = $region64
        $region63: #{tpu_custom_call.1} parent=59 // pred_region
          %s4450 = sand.u32 %s183, 1
          %s4451 = scalar_lea.sflag [#allocation7], %s4450
          %s4452 = sand.u32 %s183, 1
          %s4453 = smul.addr %s4452, 256
          %s4454 = scalar_lea.vmem [#allocation8], %s4453
          %4455 = dma.done %s4451, 4096
        $region64: #{tpu_custom_call.1} parent=59 // pred_fallthru
          _
      $region60: #{tpu_custom_call.1} parent=5 // pred_fallthru
        _
    $region6: #{tpu_custom_call.1} parent=1 // loop_footer
      %s21 = sadd.s32 1, %s17
    $region7: #{tpu_custom_call.1} parent=1 // loop_footer_branch
      %16 = sbr.rel target = $region3
    $region8: #{tpu_custom_call.1} parent=1 // loop_exit
      _
    %4456 = vsyncpa [#allocation6], 1
    %s4457 = scalar_lea.sflag [#allocation6], 1
    %4458 = vsyncpa %s4457, 1
    %4459 = vsyncpa [#allocation7], 1
    %s4460 = scalar_lea.sflag [#allocation7], 1
    %4461 = vsyncpa %s4460, 1

</llo_original>
